<compile_context>
chip_gen: v7x
topology: tpu7x:2x2x1
jax: 0.10.0
libtpu: 0.0.40
codegen_flags: <defaults>
</compile_context>

<pallas_src>
import functools

import jax
import jax.numpy as jnp
import numpy as np
from jax.experimental import pallas as pl
from jax.experimental.pallas import tpu as pltpu

F32 = jnp.float32
BF16 = jnp.bfloat16


def _cdiv(a, b):
    return -(-a // b)


# ----------------------------------------------------------------------------
# Kernel: fused additive attention (projections + tanh + softmax + bmm)
# ----------------------------------------------------------------------------
def _attention_kernel(ctx_ref, asp_ref, wct_ref, wat_ref, v_ref, out_ref,
                      *, bf16_scores):
    Bt, L1t, D = ctx_ref.shape
    L2 = asp_ref.shape[1]

    # MXU inputs in bf16, f32 accumulation (native single-pass MXU everywhere).
    ctx = ctx_ref[...].astype(BF16)                       # (Bt, L1t, D)
    asp = asp_ref[...].astype(BF16)                       # (Bt, L2,  D)

    # Projections: fold Bt*L into the MXU M dimension (weights already bf16).
    wc_c = jnp.dot(ctx.reshape(Bt * L1t, D), wct_ref[...],
                   preferred_element_type=F32).reshape(Bt, L1t, D)
    wa_a = jnp.dot(asp.reshape(Bt * L2, D), wat_ref[...],
                   preferred_element_type=F32).reshape(Bt, L2, D)

    # Score path: bf16 on bf16-capable VPU/EUP (v6e / v7x), f32 on v5e.
    sdt = BF16 if bf16_scores else F32
    v = v_ref[...].astype(sdt)                            # (1, D)
    s = jnp.tanh(wc_c.astype(sdt)[:, :, None, :]
                 + wa_a.astype(sdt)[:, None, :, :])       # (Bt, L1t, L2, D)
    # VPU multiply + lane reduce over D with f32 accumulation; keeps L2 on the
    # lane axis of the result so the softmax stays lane-dense.
    scores = jnp.sum((s * v).astype(F32), axis=-1)        # (Bt, L1t, L2)

    # Softmax over L2 (last axis); EUP exp + approx reciprocal.
    scores = scores - jnp.max(scores, axis=-1, keepdims=True)
    e = jnp.exp(scores)
    att = e * pl.reciprocal(jnp.sum(e, axis=-1, keepdims=True), approx=True)

    # Weighted sum over aspect: batched MXU matmul (bf16 in, f32 acc),
    # lane-dense (..., D) output store.
    out = jnp.einsum("blk,bkd->bld", att.astype(BF16), asp,
                     preferred_element_type=F32)
    out_ref[...] = out.astype(out_ref.dtype)


# ----------------------------------------------------------------------------
# Hardware-aware block picking
# ----------------------------------------------------------------------------
def _hw_info():
    """Returns (bf16_score_path_ok, num_tensorcores, vmem_capacity_bytes)."""
    kind = ""
    try:
        kind = jax.devices()[0].device_kind.lower()
    except Exception:
        pass
    old_gen = any(t in kind for t in ("v2", "v3", "v4", "v5"))
    bf16_scores = not old_gen                 # v5e and older: no bf16 VPU/EUP
    n_tc = 2 if ("7" in kind and not old_gen) else 1   # v7x: 2 TCs / chip
    vmem = 64 * 1024 * 1024 if n_tc == 2 else 128 * 1024 * 1024
    try:
        vmem = int(pltpu.get_tpu_info().vmem_capacity_bytes)
    except Exception:
        pass
    return bf16_scores, n_tc, vmem


def _pick_blocks(B, L1, L2, D, *, bf16_scores, n_tc, vmem_capacity):
    score_item = 2 if bf16_scores else 4

    def need(bt, l1t):
        io = 2 * 4 * (2 * bt * l1t * D + bt * L2 * D)   # ctx/out + asp, dbl-buffered f32
        w = 2 * (2 * 2 * D * D + 4 * D)                 # bf16 Wc/Wa + f32 v, dbl-buffered
        inter = (3 * bt * l1t * L2 * D) * score_item    # pre-tanh sum / tanh / s*v
        inter += 4 * (bt * l1t * D + bt * L2 * D)       # wc_c / wa_a (f32)
        inter += 2 * 4 * bt * l1t * L2                  # scores / att (f32)
        return io + w + inter

    budget = vmem_capacity // 2

    bt, l1t = max(B, 1), max(L1, 1)
    while bt > 1 and need(bt, l1t) > budget:            # shrink batch tile first
        bt = _cdiv(bt, 2)
    while l1t > 8 and need(bt, l1t) > budget:           # then L1 tile (mult of 8)
        l1t = max(8, _cdiv(_cdiv(l1t, 2), 8) * 8)

    # On 2-TC chips (v7x) make sure there are >= n_tc grid steps so the
    # "parallel" axes can be sharded across TensorCores.
    if n_tc > 1 and _cdiv(B, bt) * _cdiv(L1, l1t) < n_tc:
        if B >= n_tc:
            bt = _cdiv(B, n_tc)
        elif L1 > 8:
            l1t = max(8, _cdiv(_cdiv(L1, n_tc), 8) * 8)

    vmem_limit = min(int(0.9 * vmem_capacity),
                     max(32 * 1024 * 1024, 2 * need(bt, l1t)))
    return bt, l1t, vmem_limit


# ----------------------------------------------------------------------------
# Wrapper
# ----------------------------------------------------------------------------
@functools.partial(
    jax.jit,
    static_argnames=("block_b", "block_l1", "bf16_scores", "vmem_limit"))
def _attention_forward_impl(context, aspect, wc, wa, v, *, block_b, block_l1,
                            bf16_scores, vmem_limit):
    B, L1, D = context.shape
    L2 = aspect.shape[1]

    # Ragged-tail handling: pad B / L1 to block multiples, slice at the end.
    Bp = _cdiv(B, block_b) * block_b
    L1p = _cdiv(L1, block_l1) * block_l1
    if Bp != B or L1p != L1:
        context = jnp.pad(context, ((0, Bp - B), (0, L1p - L1), (0, 0)))
        aspect = jnp.pad(aspect, ((0, Bp - B), (0, 0), (0, 0)))

    # nn.Linear weights are (out, in): transpose so the kernel does x @ W, and
    # pre-cast to bf16 (native MXU input dtype, halves weight DMA).
    wct = wc.T.astype(BF16)
    wat = wa.T.astype(BF16)

    grid = (Bp // block_b, L1p // block_l1)

    out = pl.pallas_call(
        functools.partial(_attention_kernel, bf16_scores=bf16_scores),
        out_shape=jax.ShapeDtypeStruct((Bp, L1p, D), context.dtype),
        grid=grid,
        in_specs=[
            pl.BlockSpec((block_b, block_l1, D), lambda i, j: (i, j, 0)),
            pl.BlockSpec((block_b, L2, D), lambda i, j: (i, 0, 0)),
            pl.BlockSpec((D, D), lambda i, j: (0, 0)),
            pl.BlockSpec((D, D), lambda i, j: (0, 0)),
            pl.BlockSpec((1, D), lambda i, j: (0, 0)),
        ],
        out_specs=pl.BlockSpec((block_b, block_l1, D), lambda i, j: (i, j, 0)),
        compiler_params=pltpu.CompilerParams(
            dimension_semantics=("parallel", "parallel"),
            vmem_limit_bytes=vmem_limit),
    )(context, aspect, wct, wat, v)

    if Bp != B or L1p != L1:
        out = out[:B, :L1]
    return out


def attention_forward(context, aspect, wc, wa, v, *, block_b=None,
                      block_l1=None):
    """Pallas forward of the PyTorch Attention module.

    context : (B, L1, D) f32
    aspect  : (B, L2, D) f32
    wc, wa  : (D, D) f32   (PyTorch nn.Linear layout: (out, in))
    v       : (1, D) f32
    returns : (B, L1, D) f32
    """
    B, L1, D = context.shape
    L2 = aspect.shape[1]
    assert aspect.shape == (B, L2, D)
    assert wc.shape == (D, D) and wa.shape == (D, D) and v.shape == (1, D)

    bf16_scores, n_tc, vmem_capacity = _hw_info()
    bb, bl1, vmem_limit = _pick_blocks(
        B, L1, L2, D, bf16_scores=bf16_scores, n_tc=n_tc,
        vmem_capacity=vmem_capacity)
    if block_b is not None:
        bb = max(1, min(block_b, B))
    if block_l1 is not None:
        bl1 = min(max(8, _cdiv(block_l1, 8) * 8), L1)   # keep (8,128)-legal

    return _attention_forward_impl(context, aspect, wc, wa, v,
                                   block_b=bb, block_l1=bl1,
                                   bf16_scores=bf16_scores,
                                   vmem_limit=vmem_limit)


# ----------------------------------------------------------------------------
# Pure-JAX reference (mirrors the PyTorch module exactly, true f32 matmuls)
# ----------------------------------------------------------------------------
def reference_attention(context, aspect, wc, wa, v):
    hp = jax.lax.Precision.HIGHEST
    s = (jnp.einsum("bld,ed->ble", context, wc, precision=hp)[:, :, None, :]
         + jnp.einsum("bkd,ed->bke", aspect, wa, precision=hp)[:, None, :, :])
    scores = jnp.einsum("blkd,od->blko", jnp.tanh(s), v, precision=hp)[..., 0]
    att = jax.nn.softmax(scores, axis=2)
    return jnp.einsum("blk,bkd->bld", att, aspect, precision=hp)


if __name__ == "__main__":
    # Small shapes consistent with the module: batch=4, l1=16, l2=8,
    # dim_hidden=128 (lane-dense layout).
    B, L1, L2, D = 4, 16, 8, 128
    key = jax.random.PRNGKey(0)
    kc, ka, k1, k2, k3 = jax.random.split(key, 5)

    context = jax.random.normal(kc, (B, L1, D), F32)
    aspect = jax.random.normal(ka, (B, L2, D), F32)
    wc = jax.random.uniform(k1, (D, D), F32, minval=-0.2, maxval=0.2)
    wa = jax.random.uniform(k2, (D, D), F32, minval=-0.2, maxval=0.2)
    v = jax.random.uniform(k3, (1, D), F32, minval=-0.2, maxval=0.2)

    out = attention_forward(context, aspect, wc, wa, v)
    out = jax.block_until_ready(out)

    ref = reference_attention(context, aspect, wc, wa, v)
    # bf16 MXU inputs + (on v6e/v7x) bf16 score path => bf16-level tolerance
    # against the exact-f32 reference.
    np.testing.assert_allclose(np.asarray(out), np.asarray(ref),
                               atol=2e-2, rtol=2e-2)
    print("KERNEL_OK")
</pallas_src>

<mosaic_0001>
module attributes {stable_mosaic.version = 11 : i64} {
  func.func @_attention_kernel(%arg0: i32, %arg1: i32, %arg2: memref<4x16x128xf32, #tpu.memory_space<vmem>>, %arg3: memref<4x8x128xf32, #tpu.memory_space<vmem>>, %arg4: memref<128x128xbf16, #tpu.memory_space<vmem>>, %arg5: memref<128x128xbf16, #tpu.memory_space<vmem>>, %arg6: memref<1x128xf32, #tpu.memory_space<vmem>>, %arg7: memref<4x16x128xf32, #tpu.memory_space<vmem>>) attributes {dimension_semantics = [#tpu.dimension_semantics<parallel>, #tpu.dimension_semantics<parallel>], iteration_bounds = array<i64: 1, 1>, scalar_prefetch = 0 : i64, scratch_operands = 0 : i64, tpu.core_type = #tpu.core_type<tc>, window_params = [{transform_indices = @transform_0, window_bounds = array<i64: 4, 16, 128>}, {transform_indices = @transform_1, window_bounds = array<i64: 4, 8, 128>}, {pipeline_mode = #tpu.pipeline_mode<synchronous>, transform_indices = @transform_2, window_bounds = array<i64: 128, 128>}, {pipeline_mode = #tpu.pipeline_mode<synchronous>, transform_indices = @transform_3, window_bounds = array<i64: 128, 128>}, {pipeline_mode = #tpu.pipeline_mode<synchronous>, transform_indices = @transform_4, window_bounds = array<i64: 1, 128>}, {transform_indices = @transform_5, window_bounds = array<i64: 4, 16, 128>}]} {
    %c0 = arith.constant 0 : index
    %c0_0 = arith.constant 0 : index
    %c0_1 = arith.constant 0 : index
    %0 = vector.load %arg2[%c0, %c0_0, %c0_1] : memref<4x16x128xf32, #tpu.memory_space<vmem>>, vector<4x16x128xf32>
    %1 = arith.truncf %0 : vector<4x16x128xf32> to vector<4x16x128xbf16>
    %c0_2 = arith.constant 0 : index
    %c0_3 = arith.constant 0 : index
    %c0_4 = arith.constant 0 : index
    %2 = vector.load %arg3[%c0_2, %c0_3, %c0_4] : memref<4x8x128xf32, #tpu.memory_space<vmem>>, vector<4x8x128xf32>
    %3 = arith.truncf %2 : vector<4x8x128xf32> to vector<4x8x128xbf16>
    %4 = vector.shape_cast %1 : vector<4x16x128xbf16> to vector<64x128xbf16>
    %c0_5 = arith.constant 0 : index
    %c0_6 = arith.constant 0 : index
    %5 = vector.load %arg4[%c0_5, %c0_6] : memref<128x128xbf16, #tpu.memory_space<vmem>>, vector<128x128xbf16>
    %cst = arith.constant dense<0.000000e+00> : vector<64x128xf32>
    %6 = tpu.matmul %4, %5, %cst {dimension_numbers = #tpu.dot_dimension_numbers<[1], [0], [0], [1], [0, 0, 1, 1], [], []>} : vector<64x128xbf16>, vector<128x128xbf16>, vector<64x128xf32> -> vector<64x128xf32>
    %7 = vector.shape_cast %6 : vector<64x128xf32> to vector<4x16x128xf32>
    %8 = vector.shape_cast %3 : vector<4x8x128xbf16> to vector<32x128xbf16>
    %c0_7 = arith.constant 0 : index
    %c0_8 = arith.constant 0 : index
    %9 = vector.load %arg5[%c0_7, %c0_8] : memref<128x128xbf16, #tpu.memory_space<vmem>>, vector<128x128xbf16>
    %cst_9 = arith.constant dense<0.000000e+00> : vector<32x128xf32>
    %10 = tpu.matmul %8, %9, %cst_9 {dimension_numbers = #tpu.dot_dimension_numbers<[1], [0], [0], [1], [0, 0, 1, 1], [], []>} : vector<32x128xbf16>, vector<128x128xbf16>, vector<32x128xf32> -> vector<32x128xf32>
    %11 = vector.shape_cast %10 : vector<32x128xf32> to vector<4x8x128xf32>
    %c0_10 = arith.constant 0 : index
    %c0_11 = arith.constant 0 : index
    %12 = vector.load %arg6[%c0_10, %c0_11] : memref<1x128xf32, #tpu.memory_space<vmem>>, vector<1x128xf32>
    %13 = arith.truncf %12 : vector<1x128xf32> to vector<1x128xbf16>
    %14 = arith.truncf %7 : vector<4x16x128xf32> to vector<4x16x128xbf16>
    %15 = vector.shape_cast %14 : vector<4x16x128xbf16> to vector<4x16x1x128xbf16>
    %16 = arith.truncf %11 : vector<4x8x128xf32> to vector<4x8x128xbf16>
    %17 = vector.shape_cast %16 : vector<4x8x128xbf16> to vector<4x1x8x128xbf16>
    %18 = vector.broadcast %15 : vector<4x16x1x128xbf16> to vector<4x16x8x128xbf16>
    %19 = vector.broadcast %17 : vector<4x1x8x128xbf16> to vector<4x16x8x128xbf16>
    %20 = arith.addf %18, %19 : vector<4x16x8x128xbf16>
    %21 = math.tanh %20 : vector<4x16x8x128xbf16>
    %22 = vector.shape_cast %13 : vector<1x128xbf16> to vector<1x1x1x128xbf16>
    %23 = vector.broadcast %22 : vector<1x1x1x128xbf16> to vector<4x16x8x128xbf16>
    %24 = arith.mulf %21, %23 : vector<4x16x8x128xbf16>
    %25 = arith.extf %24 : vector<4x16x8x128xbf16> to vector<4x16x8x128xf32>
    %cst_12 = arith.constant dense<0.000000e+00> : vector<4x16x8xf32>
    %26 = vector.multi_reduction <add>, %25, %cst_12 [3] : vector<4x16x8x128xf32> to vector<4x16x8xf32>
    %cst_13 = arith.constant dense<0xFF800000> : vector<4x16xf32>
    %27 = vector.multi_reduction <maximumf>, %26, %cst_13 [2] : vector<4x16x8xf32> to vector<4x16xf32>
    %28 = vector.shape_cast %27 : vector<4x16xf32> to vector<4x16x1xf32>
    %29 = vector.broadcast %28 : vector<4x16x1xf32> to vector<4x16x8xf32>
    %30 = arith.subf %26, %29 : vector<4x16x8xf32>
    %31 = math.exp %30 : vector<4x16x8xf32>
    %cst_14 = arith.constant dense<0.000000e+00> : vector<4x16xf32>
    %32 = vector.multi_reduction <add>, %31, %cst_14 [2] : vector<4x16x8xf32> to vector<4x16xf32>
    %33 = vector.shape_cast %32 : vector<4x16xf32> to vector<4x16x1xf32>
    %34 = tpu.reciprocal %33 {approx = true} : vector<4x16x1xf32> -> vector<4x16x1xf32>
    %35 = vector.broadcast %34 : vector<4x16x1xf32> to vector<4x16x8xf32>
    %36 = arith.mulf %31, %35 : vector<4x16x8xf32>
    %37 = arith.truncf %36 : vector<4x16x8xf32> to vector<4x16x8xbf16>
    "tpu.trace_start"() <{level = 10 : i32, message = "blk,bkd->bld"}> : () -> ()
    %cst_15 = arith.constant dense<0.000000e+00> : vector<4x16x128xf32>
    %38 = tpu.matmul %37, %3, %cst_15 {dimension_numbers = #tpu.dot_dimension_numbers<[2], [1], [1], [2], [0, 0, 0, 1, 1, 2], [0], [0]>} : vector<4x16x8xbf16>, vector<4x8x128xbf16>, vector<4x16x128xf32> -> vector<4x16x128xf32>
    "tpu.trace_stop"() : () -> ()
    %c0_16 = arith.constant 0 : index
    %c0_17 = arith.constant 0 : index
    %c0_18 = arith.constant 0 : index
    %39 = vector.load %arg7[%c0_16, %c0_17, %c0_18] : memref<4x16x128xf32, #tpu.memory_space<vmem>>, vector<4x16x128xf32>
    tpu.vector_store %arg7[%c0_16, %c0_17, %c0_18], %38 {strides = array<i32>} : memref<4x16x128xf32, #tpu.memory_space<vmem>>, vector<4x16x128xf32>,
    return
  }
  func.func @transform_0(%arg0: i32, %arg1: i32) -> (i32, i32, i32) {
    %c0_i32 = arith.constant 0 : i32
    %c0_i32_0 = arith.constant 0 : i32
    return %arg0, %arg1, %c0_i32 : i32, i32, i32
  }
  func.func @transform_1(%arg0: i32, %arg1: i32) -> (i32, i32, i32) {
    %c0_i32 = arith.constant 0 : i32
    %c0_i32_0 = arith.constant 0 : i32
    %c0_i32_1 = arith.constant 0 : i32
    return %arg0, %c0_i32, %c0_i32_0 : i32, i32, i32
  }
  func.func @transform_2(%arg0: i32, %arg1: i32) -> (i32, i32) {
    %c0_i32 = arith.constant 0 : i32
    %c0_i32_0 = arith.constant 0 : i32
    %c0_i32_1 = arith.constant 0 : i32
    return %c0_i32, %c0_i32_0 : i32, i32
  }
  func.func @transform_3(%arg0: i32, %arg1: i32) -> (i32, i32) {
    %c0_i32 = arith.constant 0 : i32
    %c0_i32_0 = arith.constant 0 : i32
    %c0_i32_1 = arith.constant 0 : i32
    return %c0_i32, %c0_i32_0 : i32, i32
  }
  func.func @transform_4(%arg0: i32, %arg1: i32) -> (i32, i32) {
    %c0_i32 = arith.constant 0 : i32
    %c0_i32_0 = arith.constant 0 : i32
    %c0_i32_1 = arith.constant 0 : i32
    return %c0_i32, %c0_i32_0 : i32, i32
  }
  func.func @transform_5(%arg0: i32, %arg1: i32) -> (i32, i32, i32) {
    %c0_i32 = arith.constant 0 : i32
    %c0_i32_0 = arith.constant 0 : i32
    return %arg0, %arg1, %c0_i32 : i32, i32, i32
  }
}

</mosaic_0001>

<llo_original>
// kernel: _attention_forward_impl.1
$region0: #{_attention_forward_impl.1}
  #allocation0 [shape = 'u32[]', space=smem, size = 0x4, offset = 0x4, fixed_abs, tag = 'smem constant byte address 0x4 - core index']
  #allocation1 [shape = 'u32[144,128]{1,0:T(1,128)}', space=vmem, size = 0x12000, scoped, tag = 'internal scratch']
  %s0 = inlined_call_operand.vmem [shape: f32[4,16,128], index: 0, kind: input, shape index: {}]
  %s1 = inlined_call_operand.vmem [shape: f32[4,8,128], index: 1, kind: input, shape index: {}]
  %s2 = inlined_call_operand.vmem [shape: bf16[128,128], index: 2, kind: input, shape index: {}]
  %s3 = inlined_call_operand.vmem [shape: bf16[128,128], index: 3, kind: input, shape index: {}]
  %s4 = inlined_call_operand.vmem [shape: f32[1,128], index: 4, kind: input, shape index: {}]
  %s5 = inlined_call_operand.hbm [shape: f32[4,16,128], index: 5, kind: output, shape index: {}]
  %s6 = sld [smem:[#allocation0]]
  $region30: #{_attention_forward_impl.1} parent=0
    _
  %s8 = ssub.s32 1, %s6
  %s9 = scalar_select 0, %s8, %s6
  $region1: #{_attention_forward_impl.1} parent=0
    #allocation2 [shape = 'u8[32768]{0}', space=vmem, size = 0x8000, scoped, tag = 'output window, operand 0, single buffered']
    #allocation3 [shape = 's32[1]{0}', space=sflag, size = 0x4, scoped, tag = 'scoped memory for _attention_forward_impl.1']
    %10 = vsyncpa [#allocation3], 0
    // Predicated region
    $region2: #{_attention_forward_impl.1} parent=1 // pred_check
      _
    $region3: #{_attention_forward_impl.1} parent=1 // pred_check_branch
      %12 = sbr.rel (0) target = $region5
    $region4: #{_attention_forward_impl.1} parent=1 // pred_region
      _
    $region5: #{_attention_forward_impl.1} parent=1 // pred_fallthru
      _
    // Predicated region
    $region6: #{_attention_forward_impl.1} parent=1 // pred_check
      _
    $region7: #{_attention_forward_impl.1} parent=1 // pred_check_branch
      %14 = sbr.rel (0) target = $region9
    $region8: #{_attention_forward_impl.1} parent=1 // pred_region
      _
    $region9: #{_attention_forward_impl.1} parent=1 // pred_fallthru
      _
    // Predicated region
    $region10: #{_attention_forward_impl.1} parent=1 // pred_check
      _
    $region11: #{_attention_forward_impl.1} parent=1 // pred_check_branch
      %16 = sbr.rel (0) target = $region13
    $region12: #{_attention_forward_impl.1} parent=1 // pred_region
      _
    $region13: #{_attention_forward_impl.1} parent=1 // pred_fallthru
      _
    // Predicated region
    $region14: #{_attention_forward_impl.1} parent=1 // pred_check
      _
    $region15: #{_attention_forward_impl.1} parent=1 // pred_check_branch
      %18 = sbr.rel (0) target = $region17
    $region16: #{_attention_forward_impl.1} parent=1 // pred_region
      _
    $region17: #{_attention_forward_impl.1} parent=1 // pred_fallthru
      _
    // Predicated region
    $region18: #{_attention_forward_impl.1} parent=1 // pred_check
      _
    $region19: #{_attention_forward_impl.1} parent=1 // pred_check_branch
      %20 = sbr.rel (0) target = $region21
    $region20: #{_attention_forward_impl.1} parent=1 // pred_region
      _
    $region21: #{_attention_forward_impl.1} parent=1 // pred_fallthru
      _
    %v22 = vld [vmem:[%s0] sm:$0xff]
    %v23 = vld [vmem:[%s0 + $0x8] sm:$0xff]
    %v24 = vld [vmem:[%s0 + $0x10] sm:$0xff]
    %v25 = vld [vmem:[%s0 + $0x18] sm:$0xff]
    %v26 = vld [vmem:[%s0 + $0x20] sm:$0xff]
    %v27 = vld [vmem:[%s0 + $0x28] sm:$0xff]
    %v28 = vld [vmem:[%s0 + $0x30] sm:$0xff]
    %v29 = vld [vmem:[%s0 + $0x38] sm:$0xff]
    %v30 = vpack.c.bf16 %v23, %v22
    %v31 = vpack.c.bf16 %v25, %v24
    %v32 = vpack.c.bf16 %v27, %v26
    %v33 = vpack.c.bf16 %v29, %v28
    %v34 = vld [vmem:[%s1] sm:$0xff]
    %v35 = vld [vmem:[%s1 + $0x8] sm:$0xff]
    %v36 = vld [vmem:[%s1 + $0x10] sm:$0xff]
    %v37 = vld [vmem:[%s1 + $0x18] sm:$0xff]
    %v38 = vpack.c.bf16 %v34, %v34
    %v39 = vpack.c.bf16 %v35, %v35
    %v40 = vpack.c.bf16 %v36, %v36
    %v41 = vpack.c.bf16 %v37, %v37
    %v42 = vld [vmem:[%s2] sm:$0xf]
    %v43 = vld [vmem:[%s2 + $0x4] sm:$0xf]
    %v44 = vld [vmem:[%s2 + $0x8] sm:$0xf]
    %v45 = vld [vmem:[%s2 + $0xc] sm:$0xf]
    %v46 = vld [vmem:[%s2 + $0x10] sm:$0xf]
    %v47 = vld [vmem:[%s2 + $0x14] sm:$0xf]
    %v48 = vld [vmem:[%s2 + $0x18] sm:$0xf]
    %v49 = vld [vmem:[%s2 + $0x1c] sm:$0xf]
    %v50 = vld [vmem:[%s2 + $0x20] sm:$0xf]
    %v51 = vld [vmem:[%s2 + $0x24] sm:$0xf]
    %v52 = vld [vmem:[%s2 + $0x28] sm:$0xf]
    %v53 = vld [vmem:[%s2 + $0x2c] sm:$0xf]
    %v54 = vld [vmem:[%s2 + $0x30] sm:$0xf]
    %v55 = vld [vmem:[%s2 + $0x34] sm:$0xf]
    %v56 = vld [vmem:[%s2 + $0x38] sm:$0xf]
    %v57 = vld [vmem:[%s2 + $0x3c] sm:$0xf]
    %v74 = vunpack.c.l.b16 %v42
    %v75 = vunpack.c.l.b16 %v43
    %v76 = vunpack.c.l.b16 %v44
    %v77 = vunpack.c.l.b16 %v45
    %v78 = vunpack.c.l.b16 %v46
    %v79 = vunpack.c.l.b16 %v47
    %v80 = vunpack.c.l.b16 %v48
    %v81 = vunpack.c.l.b16 %v49
    %v82 = vunpack.c.l.b16 %v50
    %v83 = vunpack.c.l.b16 %v51
    %v84 = vunpack.c.l.b16 %v52
    %v85 = vunpack.c.l.b16 %v53
    %v86 = vunpack.c.l.b16 %v54
    %v87 = vunpack.c.l.b16 %v55
    %v88 = vunpack.c.l.b16 %v56
    %v89 = vunpack.c.l.b16 %v57
    %v90 = vpack.c.b16 %v75, %v74
    %v91 = vpack.c.b16 %v77, %v76
    %v92 = vpack.c.b16 %v79, %v78
    %v93 = vpack.c.b16 %v81, %v80
    %v94 = vpack.c.b16 %v83, %v82
    %v95 = vpack.c.b16 %v85, %v84
    %v96 = vpack.c.b16 %v87, %v86
    %v97 = vpack.c.b16 %v89, %v88
    %106 = vmatprep.subr.bf16.mxu0 0
    %107 = vmatpush1.bf16.msra.mxu0 %v90
    %108 = vmatprep.subr.bf16.mxu0 0
    %109 = vmatpush1.bf16.msra.mxu0 %v91
    %110 = vmatprep.subr.bf16.mxu0 0
    %111 = vmatpush1.bf16.msra.mxu0 %v92
    %112 = vmatprep.subr.bf16.mxu0 0
    %113 = vmatpush1.bf16.msra.mxu0 %v93
    %114 = vmatprep.subr.bf16.mxu0 0
    %115 = vmatpush1.bf16.msra.mxu0 %v94
    %116 = vmatprep.subr.bf16.mxu0 0
    %117 = vmatpush1.bf16.msra.mxu0 %v95
    %118 = vmatprep.subr.bf16.mxu0 0
    %119 = vmatpush1.bf16.msra.mxu0 %v96
    %120 = vmatprep.subr.bf16.mxu0 0
    %121 = vmatpush1.bf16.msra.mxu0 %v97
    %122 = vmatprep.subr.bf16.mxu0 0
    %123 = vmatpush1.bf16.msra.mxu0 0
    %124 = vmatprep.subr.bf16.mxu0 0
    %125 = vmatpush1.bf16.msra.mxu0 0
    %126 = vmatprep.subr.bf16.mxu0 0
    %127 = vmatpush1.bf16.msra.mxu0 0
    %128 = vmatprep.subr.bf16.mxu0 0
    %129 = vmatpush1.bf16.msra.mxu0 0
    %130 = vmatprep.subr.bf16.mxu0 0
    %131 = vmatpush1.bf16.msra.mxu0 0
    %132 = vmatprep.subr.bf16.mxu0 0
    %133 = vmatpush1.bf16.msra.mxu0 0
    %134 = vmatprep.subr.bf16.mxu0 0
    %135 = vmatpush1.bf16.msra.mxu0 0
    %136 = vmatprep.subr.bf16.mxu0 0
    %137 = vmatpush1.bf16.msra.mxu0 0
    %138 = vmatprep.mubr.bf16.mxu0 0
    %139 = vmatmul.mubr.bf16.gmra.mrb[0].mxu0 %v30
    %v140 = vpop.f32.mrb[0].mxu0
    %v141 = vadd.f32 0.0, %v140
    %v142 = vpop.f32.mrb[0].mxu0
    %v143 = vpop.f32.mrb[0].mxu0
    %v144 = vadd.f32 0.0, %v143
    %v145 = vpop.f32.mrb[0].mxu0
    %146 = vmatprep.mubr.bf16.mxu0 0
    %147 = vmatmul.mubr.bf16.gmra.mrb[0].mxu0 %v31
    %v148 = vpop.f32.mrb[0].mxu0
    %v149 = vadd.f32 0.0, %v148
    %v150 = vpop.f32.mrb[0].mxu0
    %v151 = vpop.f32.mrb[0].mxu0
    %v152 = vadd.f32 0.0, %v151
    %v153 = vpop.f32.mrb[0].mxu0
    %154 = vmatprep.mubr.bf16.mxu0 0
    %155 = vmatmul.mubr.bf16.gmra.mrb[0].mxu0 %v32
    %v156 = vpop.f32.mrb[0].mxu0
    %v157 = vadd.f32 0.0, %v156
    %v158 = vpop.f32.mrb[0].mxu0
    %v159 = vpop.f32.mrb[0].mxu0
    %v160 = vadd.f32 0.0, %v159
    %v161 = vpop.f32.mrb[0].mxu0
    %162 = vmatprep.mubr.bf16.mxu0 0
    %163 = vmatmul.mubr.bf16.gmra.mrb[0].mxu0 %v33
    %v164 = vpop.f32.mrb[0].mxu0
    %v165 = vadd.f32 0.0, %v164
    %v166 = vpop.f32.mrb[0].mxu0
    %v167 = vpop.f32.mrb[0].mxu0
    %v168 = vadd.f32 0.0, %v167
    %v169 = vpop.f32.mrb[0].mxu0
    %170 = vdwg.mxu0
    %v171 = vld [vmem:[%s3] sm:$0xf]
    %v172 = vld [vmem:[%s3 + $0x4] sm:$0xf]
    %v173 = vld [vmem:[%s3 + $0x8] sm:$0xf]
    %v174 = vld [vmem:[%s3 + $0xc] sm:$0xf]
    %v175 = vld [vmem:[%s3 + $0x10] sm:$0xf]
    %v176 = vld [vmem:[%s3 + $0x14] sm:$0xf]
    %v177 = vld [vmem:[%s3 + $0x18] sm:$0xf]
    %v178 = vld [vmem:[%s3 + $0x1c] sm:$0xf]
    %v179 = vld [vmem:[%s3 + $0x20] sm:$0xf]
    %v180 = vld [vmem:[%s3 + $0x24] sm:$0xf]
    %v181 = vld [vmem:[%s3 + $0x28] sm:$0xf]
    %v182 = vld [vmem:[%s3 + $0x2c] sm:$0xf]
    %v183 = vld [vmem:[%s3 + $0x30] sm:$0xf]
    %v184 = vld [vmem:[%s3 + $0x34] sm:$0xf]
    %v185 = vld [vmem:[%s3 + $0x38] sm:$0xf]
    %v186 = vld [vmem:[%s3 + $0x3c] sm:$0xf]
    %v191 = vunpack.c.l.b16 %v38
    %v192 = vunpack.c.l.b16 %v39
    %v193 = vunpack.c.l.b16 %v40
    %v194 = vunpack.c.l.b16 %v41
    %v195 = vpack.c.b16 %v192, %v191
    %v196 = vpack.c.b16 %v194, %v193
    %v215 = vunpack.c.l.b16 %v171
    %v216 = vunpack.c.l.b16 %v172
    %v217 = vunpack.c.l.b16 %v173
    %v218 = vunpack.c.l.b16 %v174
    %v219 = vunpack.c.l.b16 %v175
    %v220 = vunpack.c.l.b16 %v176
    %v221 = vunpack.c.l.b16 %v177
    %v222 = vunpack.c.l.b16 %v178
    %v223 = vunpack.c.l.b16 %v179
    %v224 = vunpack.c.l.b16 %v180
    %v225 = vunpack.c.l.b16 %v181
    %v226 = vunpack.c.l.b16 %v182
    %v227 = vunpack.c.l.b16 %v183
    %v228 = vunpack.c.l.b16 %v184
    %v229 = vunpack.c.l.b16 %v185
    %v230 = vunpack.c.l.b16 %v186
    %v231 = vpack.c.b16 %v216, %v215
    %v232 = vpack.c.b16 %v218, %v217
    %v233 = vpack.c.b16 %v220, %v219
    %v234 = vpack.c.b16 %v222, %v221
    %v235 = vpack.c.b16 %v224, %v223
    %v236 = vpack.c.b16 %v226, %v225
    %v237 = vpack.c.b16 %v228, %v227
    %v238 = vpack.c.b16 %v230, %v229
    %247 = vmatprep.subr.bf16.mxu0 0
    %248 = vmatpush1.bf16.msra.mxu0 %v231
    %249 = vmatprep.subr.bf16.mxu0 0
    %250 = vmatpush1.bf16.msra.mxu0 %v232
    %251 = vmatprep.subr.bf16.mxu0 0
    %252 = vmatpush1.bf16.msra.mxu0 %v233
    %253 = vmatprep.subr.bf16.mxu0 0
    %254 = vmatpush1.bf16.msra.mxu0 %v234
    %255 = vmatprep.subr.bf16.mxu0 0
    %256 = vmatpush1.bf16.msra.mxu0 %v235
    %257 = vmatprep.subr.bf16.mxu0 0
    %258 = vmatpush1.bf16.msra.mxu0 %v236
    %259 = vmatprep.subr.bf16.mxu0 0
    %260 = vmatpush1.bf16.msra.mxu0 %v237
    %261 = vmatprep.subr.bf16.mxu0 0
    %262 = vmatpush1.bf16.msra.mxu0 %v238
    %263 = vmatprep.subr.bf16.mxu0 0
    %264 = vmatpush1.bf16.msra.mxu0 0
    %265 = vmatprep.subr.bf16.mxu0 0
    %266 = vmatpush1.bf16.msra.mxu0 0
    %267 = vmatprep.subr.bf16.mxu0 0
    %268 = vmatpush1.bf16.msra.mxu0 0
    %269 = vmatprep.subr.bf16.mxu0 0
    %270 = vmatpush1.bf16.msra.mxu0 0
    %271 = vmatprep.subr.bf16.mxu0 0
    %272 = vmatpush1.bf16.msra.mxu0 0
    %273 = vmatprep.subr.bf16.mxu0 0
    %274 = vmatpush1.bf16.msra.mxu0 0
    %275 = vmatprep.subr.bf16.mxu0 0
    %276 = vmatpush1.bf16.msra.mxu0 0
    %277 = vmatprep.subr.bf16.mxu0 0
    %278 = vmatpush1.bf16.msra.mxu0 0
    %279 = vmatprep.mubr.bf16.mxu0 0
    %280 = vmatmul.mubr.bf16.gmra.mrb[0].mxu0 %v195
    %v281 = vpop.f32.mrb[0].mxu0
    %v282 = vadd.f32 0.0, %v281
    %v283 = vpop.f32.mrb[0].mxu0
    %v284 = vpop.f32.mrb[0].mxu0
    %v285 = vadd.f32 0.0, %v284
    %v286 = vpop.f32.mrb[0].mxu0
    %287 = vmatprep.mubr.bf16.mxu0 0
    %288 = vmatmul.mubr.bf16.gmra.mrb[0].mxu0 %v196
    %v289 = vpop.f32.mrb[0].mxu0
    %v290 = vadd.f32 0.0, %v289
    %v291 = vpop.f32.mrb[0].mxu0
    %v292 = vpop.f32.mrb[0].mxu0
    %v293 = vadd.f32 0.0, %v292
    %v294 = vpop.f32.mrb[0].mxu0
    %295 = vdwg.mxu0
    %v296 = vld [vmem:[%s4] sm:$0x1]
    %v297 = vpack.c.bf16 %v296, %v296
    %v298 = vpack.c.bf16 %v144, %v141
    %v299 = vpack.c.bf16 %v152, %v149
    %v300 = vpack.c.bf16 %v160, %v157
    %v301 = vpack.c.bf16 %v168, %v165
    %v306 = vcombine.high %v298, %v298
    %v308 = vunpack.c.l.s4 1966171168
    %v309 = vunpack.c.0.s8 %v308
    %v310 = vlaneseq
    %v311 = vshrl.u32 %v310, 7
    %v312 = vsub.s32 %v309, %v311
    %v313 = vrot.slane %v298, %v312
    %v315 = vunpack.c.l.s4 1966171168
    %v316 = vunpack.c.0.s8 %v315
    %v317 = vlaneseq
    %v318 = vshrl.u32 %v317, 7
    %v319 = vsub.s32 %v316, %v318
    %v320 = vrot.slane %v306, %v319
    %v321 = vcombine.high %v313, %v313
    %v322 = vcombine.high %v320, %v320
    %v324 = vunpack.c.l.s4 1966171168
    %v325 = vunpack.c.0.s8 %v324
    %v326 = vlaneseq
    %v327 = vshrl.u32 %v326, 7
    %v328 = vsub.s32 %v325, %v327
    %v329 = vrot.slane %v313, %v328
    %v331 = vunpack.c.l.s4 1966171168
    %v332 = vunpack.c.0.s8 %v331
    %v333 = vlaneseq
    %v334 = vshrl.u32 %v333, 7
    %v335 = vsub.s32 %v332, %v334
    %v336 = vrot.slane %v320, %v335
    %v338 = vunpack.c.l.s4 1966171168
    %v339 = vunpack.c.0.s8 %v338
    %v340 = vlaneseq
    %v341 = vshrl.u32 %v340, 7
    %v342 = vsub.s32 %v339, %v341
    %v343 = vrot.slane %v321, %v342
    %v345 = vunpack.c.l.s4 1966171168
    %v346 = vunpack.c.0.s8 %v345
    %v347 = vlaneseq
    %v348 = vshrl.u32 %v347, 7
    %v349 = vsub.s32 %v346, %v348
    %v350 = vrot.slane %v322, %v349
    %v351 = vcombine.high %v329, %v329
    %v352 = vcombine.high %v336, %v336
    %v353 = vcombine.high %v343, %v343
    %v354 = vcombine.high %v350, %v350
    %v355 = vcombine.high %v299, %v299
    %v357 = vunpack.c.l.s4 1966171168
    %v358 = vunpack.c.0.s8 %v357
    %v359 = vlaneseq
    %v360 = vshrl.u32 %v359, 7
    %v361 = vsub.s32 %v358, %v360
    %v362 = vrot.slane %v299, %v361
    %v364 = vunpack.c.l.s4 1966171168
    %v365 = vunpack.c.0.s8 %v364
    %v366 = vlaneseq
    %v367 = vshrl.u32 %v366, 7
    %v368 = vsub.s32 %v365, %v367
    %v369 = vrot.slane %v355, %v368
    %v370 = vcombine.high %v362, %v362
    %v371 = vcombine.high %v369, %v369
    %v373 = vunpack.c.l.s4 1966171168
    %v374 = vunpack.c.0.s8 %v373
    %v375 = vlaneseq
    %v376 = vshrl.u32 %v375, 7
    %v377 = vsub.s32 %v374, %v376
    %v378 = vrot.slane %v362, %v377
    %v380 = vunpack.c.l.s4 1966171168
    %v381 = vunpack.c.0.s8 %v380
    %v382 = vlaneseq
    %v383 = vshrl.u32 %v382, 7
    %v384 = vsub.s32 %v381, %v383
    %v385 = vrot.slane %v369, %v384
    %v387 = vunpack.c.l.s4 1966171168
    %v388 = vunpack.c.0.s8 %v387
    %v389 = vlaneseq
    %v390 = vshrl.u32 %v389, 7
    %v391 = vsub.s32 %v388, %v390
    %v392 = vrot.slane %v370, %v391
    %v394 = vunpack.c.l.s4 1966171168
    %v395 = vunpack.c.0.s8 %v394
    %v396 = vlaneseq
    %v397 = vshrl.u32 %v396, 7
    %v398 = vsub.s32 %v395, %v397
    %v399 = vrot.slane %v371, %v398
    %v400 = vcombine.high %v378, %v378
    %v401 = vcombine.high %v385, %v385
    %v402 = vcombine.high %v392, %v392
    %v403 = vcombine.high %v399, %v399
    %v404 = vcombine.high %v300, %v300
    %v406 = vunpack.c.l.s4 1966171168
    %v407 = vunpack.c.0.s8 %v406
    %v408 = vlaneseq
    %v409 = vshrl.u32 %v408, 7
    %v410 = vsub.s32 %v407, %v409
    %v411 = vrot.slane %v300, %v410
    %v413 = vunpack.c.l.s4 1966171168
    %v414 = vunpack.c.0.s8 %v413
    %v415 = vlaneseq
    %v416 = vshrl.u32 %v415, 7
    %v417 = vsub.s32 %v414, %v416
    %v418 = vrot.slane %v404, %v417
    %v419 = vcombine.high %v411, %v411
    %v420 = vcombine.high %v418, %v418
    %v422 = vunpack.c.l.s4 1966171168
    %v423 = vunpack.c.0.s8 %v422
    %v424 = vlaneseq
    %v425 = vshrl.u32 %v424, 7
    %v426 = vsub.s32 %v423, %v425
    %v427 = vrot.slane %v411, %v426
    %v429 = vunpack.c.l.s4 1966171168
    %v430 = vunpack.c.0.s8 %v429
    %v431 = vlaneseq
    %v432 = vshrl.u32 %v431, 7
    %v433 = vsub.s32 %v430, %v432
    %v434 = vrot.slane %v418, %v433
    %v436 = vunpack.c.l.s4 1966171168
    %v437 = vunpack.c.0.s8 %v436
    %v438 = vlaneseq
    %v439 = vshrl.u32 %v438, 7
    %v440 = vsub.s32 %v437, %v439
    %v441 = vrot.slane %v419, %v440
    %v443 = vunpack.c.l.s4 1966171168
    %v444 = vunpack.c.0.s8 %v443
    %v445 = vlaneseq
    %v446 = vshrl.u32 %v445, 7
    %v447 = vsub.s32 %v444, %v446
    %v448 = vrot.slane %v420, %v447
    %v449 = vcombine.high %v427, %v427
    %v450 = vcombine.high %v434, %v434
    %v451 = vcombine.high %v441, %v441
    %v452 = vcombine.high %v448, %v448
    %v453 = vcombine.high %v301, %v301
    %v455 = vunpack.c.l.s4 1966171168
    %v456 = vunpack.c.0.s8 %v455
    %v457 = vlaneseq
    %v458 = vshrl.u32 %v457, 7
    %v459 = vsub.s32 %v456, %v458
    %v460 = vrot.slane %v301, %v459
    %v462 = vunpack.c.l.s4 1966171168
    %v463 = vunpack.c.0.s8 %v462
    %v464 = vlaneseq
    %v465 = vshrl.u32 %v464, 7
    %v466 = vsub.s32 %v463, %v465
    %v467 = vrot.slane %v453, %v466
    %v468 = vcombine.high %v460, %v460
    %v469 = vcombine.high %v467, %v467
    %v471 = vunpack.c.l.s4 1966171168
    %v472 = vunpack.c.0.s8 %v471
    %v473 = vlaneseq
    %v474 = vshrl.u32 %v473, 7
    %v475 = vsub.s32 %v472, %v474
    %v476 = vrot.slane %v460, %v475
    %v478 = vunpack.c.l.s4 1966171168
    %v479 = vunpack.c.0.s8 %v478
    %v480 = vlaneseq
    %v481 = vshrl.u32 %v480, 7
    %v482 = vsub.s32 %v479, %v481
    %v483 = vrot.slane %v467, %v482
    %v485 = vunpack.c.l.s4 1966171168
    %v486 = vunpack.c.0.s8 %v485
    %v487 = vlaneseq
    %v488 = vshrl.u32 %v487, 7
    %v489 = vsub.s32 %v486, %v488
    %v490 = vrot.slane %v468, %v489
    %v492 = vunpack.c.l.s4 1966171168
    %v493 = vunpack.c.0.s8 %v492
    %v494 = vlaneseq
    %v495 = vshrl.u32 %v494, 7
    %v496 = vsub.s32 %v493, %v495
    %v497 = vrot.slane %v469, %v496
    %v498 = vcombine.high %v476, %v476
    %v499 = vcombine.high %v483, %v483
    %v500 = vcombine.high %v490, %v490
    %v501 = vcombine.high %v497, %v497
    %v502 = vunpack.i.l.s16 %v329
    %v503 = vunpack.i.h.s16 %v329
    %v504 = vunpack.i.l.s16 %v343
    %v505 = vunpack.i.h.s16 %v343
    %v506 = vunpack.i.l.s16 %v351
    %v507 = vunpack.i.h.s16 %v351
    %v508 = vunpack.i.l.s16 %v353
    %v509 = vunpack.i.h.s16 %v353
    %v510 = vunpack.i.l.s16 %v336
    %v511 = vunpack.i.h.s16 %v336
    %v512 = vunpack.i.l.s16 %v350
    %v513 = vunpack.i.h.s16 %v350
    %v514 = vunpack.i.l.s16 %v352
    %v515 = vunpack.i.h.s16 %v352
    %v516 = vunpack.i.l.s16 %v354
    %v517 = vunpack.i.h.s16 %v354
    %v518 = vunpack.i.l.s16 %v378
    %v519 = vunpack.i.h.s16 %v378
    %v520 = vunpack.i.l.s16 %v392
    %v521 = vunpack.i.h.s16 %v392
    %v522 = vunpack.i.l.s16 %v400
    %v523 = vunpack.i.h.s16 %v400
    %v524 = vunpack.i.l.s16 %v402
    %v525 = vunpack.i.h.s16 %v402
    %v526 = vunpack.i.l.s16 %v385
    %v527 = vunpack.i.h.s16 %v385
    %v528 = vunpack.i.l.s16 %v399
    %v529 = vunpack.i.h.s16 %v399
    %v530 = vunpack.i.l.s16 %v401
    %v531 = vunpack.i.h.s16 %v401
    %v532 = vunpack.i.l.s16 %v403
    %v533 = vunpack.i.h.s16 %v403
    %v534 = vunpack.i.l.s16 %v427
    %v535 = vunpack.i.h.s16 %v427
    %v536 = vunpack.i.l.s16 %v441
    %v537 = vunpack.i.h.s16 %v441
    %v538 = vunpack.i.l.s16 %v449
    %v539 = vunpack.i.h.s16 %v449
    %v540 = vunpack.i.l.s16 %v451
    %v541 = vunpack.i.h.s16 %v451
    %v542 = vunpack.i.l.s16 %v434
    %v543 = vunpack.i.h.s16 %v434
    %v544 = vunpack.i.l.s16 %v448
    %v545 = vunpack.i.h.s16 %v448
    %v546 = vunpack.i.l.s16 %v450
    %v547 = vunpack.i.h.s16 %v450
    %v548 = vunpack.i.l.s16 %v452
    %v549 = vunpack.i.h.s16 %v452
    %v550 = vunpack.i.l.s16 %v476
    %v551 = vunpack.i.h.s16 %v476
    %v552 = vunpack.i.l.s16 %v490
    %v553 = vunpack.i.h.s16 %v490
    %v554 = vunpack.i.l.s16 %v498
    %v555 = vunpack.i.h.s16 %v498
    %v556 = vunpack.i.l.s16 %v500
    %v557 = vunpack.i.h.s16 %v500
    %v558 = vunpack.i.l.s16 %v483
    %v559 = vunpack.i.h.s16 %v483
    %v560 = vunpack.i.l.s16 %v497
    %v561 = vunpack.i.h.s16 %v497
    %v562 = vunpack.i.l.s16 %v499
    %v563 = vunpack.i.h.s16 %v499
    %v564 = vunpack.i.l.s16 %v501
    %v565 = vunpack.i.h.s16 %v501
    %v566 = vpack.c.bf16 %v282, %v282
    %v567 = vpack.c.bf16 %v285, %v285
    %v568 = vpack.c.bf16 %v290, %v290
    %v569 = vpack.c.bf16 %v293, %v293
    %v570 = vpack.i.b16 %v502, %v502
    %v571 = vpack.i.b16 %v503, %v503
    %v572 = vpack.i.b16 %v504, %v504
    %v573 = vpack.i.b16 %v505, %v505
    %v574 = vpack.i.b16 %v506, %v506
    %v575 = vpack.i.b16 %v507, %v507
    %v576 = vpack.i.b16 %v508, %v508
    %v577 = vpack.i.b16 %v509, %v509
    %v578 = vpack.i.b16 %v510, %v510
    %v579 = vpack.i.b16 %v511, %v511
    %v580 = vpack.i.b16 %v512, %v512
    %v581 = vpack.i.b16 %v513, %v513
    %v582 = vpack.i.b16 %v514, %v514
    %v583 = vpack.i.b16 %v515, %v515
    %v584 = vpack.i.b16 %v516, %v516
    %v585 = vpack.i.b16 %v517, %v517
    %v586 = vpack.i.b16 %v518, %v518
    %v587 = vpack.i.b16 %v519, %v519
    %v588 = vpack.i.b16 %v520, %v520
    %v589 = vpack.i.b16 %v521, %v521
    %v590 = vpack.i.b16 %v522, %v522
    %v591 = vpack.i.b16 %v523, %v523
    %v592 = vpack.i.b16 %v524, %v524
    %v593 = vpack.i.b16 %v525, %v525
    %v594 = vpack.i.b16 %v526, %v526
    %v595 = vpack.i.b16 %v527, %v527
    %v596 = vpack.i.b16 %v528, %v528
    %v597 = vpack.i.b16 %v529, %v529
    %v598 = vpack.i.b16 %v530, %v530
    %v599 = vpack.i.b16 %v531, %v531
    %v600 = vpack.i.b16 %v532, %v532
    %v601 = vpack.i.b16 %v533, %v533
    %v602 = vpack.i.b16 %v534, %v534
    %v603 = vpack.i.b16 %v535, %v535
    %v604 = vpack.i.b16 %v536, %v536
    %v605 = vpack.i.b16 %v537, %v537
    %v606 = vpack.i.b16 %v538, %v538
    %v607 = vpack.i.b16 %v539, %v539
    %v608 = vpack.i.b16 %v540, %v540
    %v609 = vpack.i.b16 %v541, %v541
    %v610 = vpack.i.b16 %v542, %v542
    %v611 = vpack.i.b16 %v543, %v543
    %v612 = vpack.i.b16 %v544, %v544
    %v613 = vpack.i.b16 %v545, %v545
    %v614 = vpack.i.b16 %v546, %v546
    %v615 = vpack.i.b16 %v547, %v547
    %v616 = vpack.i.b16 %v548, %v548
    %v617 = vpack.i.b16 %v549, %v549
    %v618 = vpack.i.b16 %v550, %v550
    %v619 = vpack.i.b16 %v551, %v551
    %v620 = vpack.i.b16 %v552, %v552
    %v621 = vpack.i.b16 %v553, %v553
    %v622 = vpack.i.b16 %v554, %v554
    %v623 = vpack.i.b16 %v555, %v555
    %v624 = vpack.i.b16 %v556, %v556
    %v625 = vpack.i.b16 %v557, %v557
    %v626 = vpack.i.b16 %v558, %v558
    %v627 = vpack.i.b16 %v559, %v559
    %v628 = vpack.i.b16 %v560, %v560
    %v629 = vpack.i.b16 %v561, %v561
    %v630 = vpack.i.b16 %v562, %v562
    %v631 = vpack.i.b16 %v563, %v563
    %v632 = vpack.i.b16 %v564, %v564
    %v633 = vpack.i.b16 %v565, %v565
    %v634 = vlaneseq
    %v635 = vshrl.u32 %v634, 7
    %v636 = vsub.s32 0, %v635
    %v637 = vrot.slane %v570, %v636
    %v638 = vlaneseq
    %v639 = vshrl.u32 %v638, 7
    %v640 = vsub.s32 0, %v639
    %v641 = vrot.slane %v571, %v640
    %v642 = vlaneseq
    %v643 = vshrl.u32 %v642, 7
    %v644 = vsub.s32 0, %v643
    %v645 = vrot.slane %v572, %v644
    %v646 = vlaneseq
    %v647 = vshrl.u32 %v646, 7
    %v648 = vsub.s32 0, %v647
    %v649 = vrot.slane %v573, %v648
    %v650 = vlaneseq
    %v651 = vshrl.u32 %v650, 7
    %v652 = vsub.s32 0, %v651
    %v653 = vrot.slane %v574, %v652
    %v654 = vlaneseq
    %v655 = vshrl.u32 %v654, 7
    %v656 = vsub.s32 0, %v655
    %v657 = vrot.slane %v575, %v656
    %v658 = vlaneseq
    %v659 = vshrl.u32 %v658, 7
    %v660 = vsub.s32 0, %v659
    %v661 = vrot.slane %v576, %v660
    %v662 = vlaneseq
    %v663 = vshrl.u32 %v662, 7
    %v664 = vsub.s32 0, %v663
    %v665 = vrot.slane %v577, %v664
    %v666 = vlaneseq
    %v667 = vshrl.u32 %v666, 7
    %v668 = vsub.s32 0, %v667
    %v669 = vrot.slane %v578, %v668
    %v670 = vlaneseq
    %v671 = vshrl.u32 %v670, 7
    %v672 = vsub.s32 0, %v671
    %v673 = vrot.slane %v579, %v672
    %v674 = vlaneseq
    %v675 = vshrl.u32 %v674, 7
    %v676 = vsub.s32 0, %v675
    %v677 = vrot.slane %v580, %v676
    %v678 = vlaneseq
    %v679 = vshrl.u32 %v678, 7
    %v680 = vsub.s32 0, %v679
    %v681 = vrot.slane %v581, %v680
    %v682 = vlaneseq
    %v683 = vshrl.u32 %v682, 7
    %v684 = vsub.s32 0, %v683
    %v685 = vrot.slane %v582, %v684
    %v686 = vlaneseq
    %v687 = vshrl.u32 %v686, 7
    %v688 = vsub.s32 0, %v687
    %v689 = vrot.slane %v583, %v688
    %v690 = vlaneseq
    %v691 = vshrl.u32 %v690, 7
    %v692 = vsub.s32 0, %v691
    %v693 = vrot.slane %v584, %v692
    %v694 = vlaneseq
    %v695 = vshrl.u32 %v694, 7
    %v696 = vsub.s32 0, %v695
    %v697 = vrot.slane %v585, %v696
    %v698 = vlaneseq
    %v699 = vshrl.u32 %v698, 7
    %v700 = vsub.s32 0, %v699
    %v701 = vrot.slane %v586, %v700
    %v702 = vlaneseq
    %v703 = vshrl.u32 %v702, 7
    %v704 = vsub.s32 0, %v703
    %v705 = vrot.slane %v587, %v704
    %v706 = vlaneseq
    %v707 = vshrl.u32 %v706, 7
    %v708 = vsub.s32 0, %v707
    %v709 = vrot.slane %v588, %v708
    %v710 = vlaneseq
    %v711 = vshrl.u32 %v710, 7
    %v712 = vsub.s32 0, %v711
    %v713 = vrot.slane %v589, %v712
    %v714 = vlaneseq
    %v715 = vshrl.u32 %v714, 7
    %v716 = vsub.s32 0, %v715
    %v717 = vrot.slane %v590, %v716
    %v718 = vlaneseq
    %v719 = vshrl.u32 %v718, 7
    %v720 = vsub.s32 0, %v719
    %v721 = vrot.slane %v591, %v720
    %v722 = vlaneseq
    %v723 = vshrl.u32 %v722, 7
    %v724 = vsub.s32 0, %v723
    %v725 = vrot.slane %v592, %v724
    %v726 = vlaneseq
    %v727 = vshrl.u32 %v726, 7
    %v728 = vsub.s32 0, %v727
    %v729 = vrot.slane %v593, %v728
    %v730 = vlaneseq
    %v731 = vshrl.u32 %v730, 7
    %v732 = vsub.s32 0, %v731
    %v733 = vrot.slane %v594, %v732
    %v734 = vlaneseq
    %v735 = vshrl.u32 %v734, 7
    %v736 = vsub.s32 0, %v735
    %v737 = vrot.slane %v595, %v736
    %v738 = vlaneseq
    %v739 = vshrl.u32 %v738, 7
    %v740 = vsub.s32 0, %v739
    %v741 = vrot.slane %v596, %v740
    %v742 = vlaneseq
    %v743 = vshrl.u32 %v742, 7
    %v744 = vsub.s32 0, %v743
    %v745 = vrot.slane %v597, %v744
    %v746 = vlaneseq
    %v747 = vshrl.u32 %v746, 7
    %v748 = vsub.s32 0, %v747
    %v749 = vrot.slane %v598, %v748
    %v750 = vlaneseq
    %v751 = vshrl.u32 %v750, 7
    %v752 = vsub.s32 0, %v751
    %v753 = vrot.slane %v599, %v752
    %v754 = vlaneseq
    %v755 = vshrl.u32 %v754, 7
    %v756 = vsub.s32 0, %v755
    %v757 = vrot.slane %v600, %v756
    %v758 = vlaneseq
    %v759 = vshrl.u32 %v758, 7
    %v760 = vsub.s32 0, %v759
    %v761 = vrot.slane %v601, %v760
    %v762 = vlaneseq
    %v763 = vshrl.u32 %v762, 7
    %v764 = vsub.s32 0, %v763
    %v765 = vrot.slane %v602, %v764
    %v766 = vlaneseq
    %v767 = vshrl.u32 %v766, 7
    %v768 = vsub.s32 0, %v767
    %v769 = vrot.slane %v603, %v768
    %v770 = vlaneseq
    %v771 = vshrl.u32 %v770, 7
    %v772 = vsub.s32 0, %v771
    %v773 = vrot.slane %v604, %v772
    %v774 = vlaneseq
    %v775 = vshrl.u32 %v774, 7
    %v776 = vsub.s32 0, %v775
    %v777 = vrot.slane %v605, %v776
    %v778 = vlaneseq
    %v779 = vshrl.u32 %v778, 7
    %v780 = vsub.s32 0, %v779
    %v781 = vrot.slane %v606, %v780
    %v782 = vlaneseq
    %v783 = vshrl.u32 %v782, 7
    %v784 = vsub.s32 0, %v783
    %v785 = vrot.slane %v607, %v784
    %v786 = vlaneseq
    %v787 = vshrl.u32 %v786, 7
    %v788 = vsub.s32 0, %v787
    %v789 = vrot.slane %v608, %v788
    %v790 = vlaneseq
    %v791 = vshrl.u32 %v790, 7
    %v792 = vsub.s32 0, %v791
    %v793 = vrot.slane %v609, %v792
    %v794 = vlaneseq
    %v795 = vshrl.u32 %v794, 7
    %v796 = vsub.s32 0, %v795
    %v797 = vrot.slane %v610, %v796
    %v798 = vlaneseq
    %v799 = vshrl.u32 %v798, 7
    %v800 = vsub.s32 0, %v799
    %v801 = vrot.slane %v611, %v800
    %v802 = vlaneseq
    %v803 = vshrl.u32 %v802, 7
    %v804 = vsub.s32 0, %v803
    %v805 = vrot.slane %v612, %v804
    %v806 = vlaneseq
    %v807 = vshrl.u32 %v806, 7
    %v808 = vsub.s32 0, %v807
    %v809 = vrot.slane %v613, %v808
    %v810 = vlaneseq
    %v811 = vshrl.u32 %v810, 7
    %v812 = vsub.s32 0, %v811
    %v813 = vrot.slane %v614, %v812
    %v814 = vlaneseq
    %v815 = vshrl.u32 %v814, 7
    %v816 = vsub.s32 0, %v815
    %v817 = vrot.slane %v615, %v816
    %v818 = vlaneseq
    %v819 = vshrl.u32 %v818, 7
    %v820 = vsub.s32 0, %v819
    %v821 = vrot.slane %v616, %v820
    %v822 = vlaneseq
    %v823 = vshrl.u32 %v822, 7
    %v824 = vsub.s32 0, %v823
    %v825 = vrot.slane %v617, %v824
    %v826 = vlaneseq
    %v827 = vshrl.u32 %v826, 7
    %v828 = vsub.s32 0, %v827
    %v829 = vrot.slane %v618, %v828
    %v830 = vlaneseq
    %v831 = vshrl.u32 %v830, 7
    %v832 = vsub.s32 0, %v831
    %v833 = vrot.slane %v619, %v832
    %v834 = vlaneseq
    %v835 = vshrl.u32 %v834, 7
    %v836 = vsub.s32 0, %v835
    %v837 = vrot.slane %v620, %v836
    %v838 = vlaneseq
    %v839 = vshrl.u32 %v838, 7
    %v840 = vsub.s32 0, %v839
    %v841 = vrot.slane %v621, %v840
    %v842 = vlaneseq
    %v843 = vshrl.u32 %v842, 7
    %v844 = vsub.s32 0, %v843
    %v845 = vrot.slane %v622, %v844
    %v846 = vlaneseq
    %v847 = vshrl.u32 %v846, 7
    %v848 = vsub.s32 0, %v847
    %v849 = vrot.slane %v623, %v848
    %v850 = vlaneseq
    %v851 = vshrl.u32 %v850, 7
    %v852 = vsub.s32 0, %v851
    %v853 = vrot.slane %v624, %v852
    %v854 = vlaneseq
    %v855 = vshrl.u32 %v854, 7
    %v856 = vsub.s32 0, %v855
    %v857 = vrot.slane %v625, %v856
    %v858 = vlaneseq
    %v859 = vshrl.u32 %v858, 7
    %v860 = vsub.s32 0, %v859
    %v861 = vrot.slane %v626, %v860
    %v862 = vlaneseq
    %v863 = vshrl.u32 %v862, 7
    %v864 = vsub.s32 0, %v863
    %v865 = vrot.slane %v627, %v864
    %v866 = vlaneseq
    %v867 = vshrl.u32 %v866, 7
    %v868 = vsub.s32 0, %v867
    %v869 = vrot.slane %v628, %v868
    %v870 = vlaneseq
    %v871 = vshrl.u32 %v870, 7
    %v872 = vsub.s32 0, %v871
    %v873 = vrot.slane %v629, %v872
    %v874 = vlaneseq
    %v875 = vshrl.u32 %v874, 7
    %v876 = vsub.s32 0, %v875
    %v877 = vrot.slane %v630, %v876
    %v878 = vlaneseq
    %v879 = vshrl.u32 %v878, 7
    %v880 = vsub.s32 0, %v879
    %v881 = vrot.slane %v631, %v880
    %v882 = vlaneseq
    %v883 = vshrl.u32 %v882, 7
    %v884 = vsub.s32 0, %v883
    %v885 = vrot.slane %v632, %v884
    %v886 = vlaneseq
    %v887 = vshrl.u32 %v886, 7
    %v888 = vsub.s32 0, %v887
    %v889 = vrot.slane %v633, %v888
    %v891 = vpack.i.b16 %v637, %v637
    %v893 = vlaneseq
    %v894 = vshrl.u32 %v893, 7
    %v895 = vsub.s32 0, %v894
    %v896 = vrot.slane %v891, %v895
    %v898 = vpack.i.b16 %v641, %v641
    %v900 = vlaneseq
    %v901 = vshrl.u32 %v900, 7
    %v902 = vsub.s32 0, %v901
    %v903 = vrot.slane %v898, %v902
    %v905 = vpack.i.b16 %v645, %v645
    %v907 = vlaneseq
    %v908 = vshrl.u32 %v907, 7
    %v909 = vsub.s32 0, %v908
    %v910 = vrot.slane %v905, %v909
    %v912 = vpack.i.b16 %v649, %v649
    %v914 = vlaneseq
    %v915 = vshrl.u32 %v914, 7
    %v916 = vsub.s32 0, %v915
    %v917 = vrot.slane %v912, %v916
    %v919 = vpack.i.b16 %v653, %v653
    %v921 = vlaneseq
    %v922 = vshrl.u32 %v921, 7
    %v923 = vsub.s32 0, %v922
    %v924 = vrot.slane %v919, %v923
    %v926 = vpack.i.b16 %v657, %v657
    %v928 = vlaneseq
    %v929 = vshrl.u32 %v928, 7
    %v930 = vsub.s32 0, %v929
    %v931 = vrot.slane %v926, %v930
    %v933 = vpack.i.b16 %v661, %v661
    %v935 = vlaneseq
    %v936 = vshrl.u32 %v935, 7
    %v937 = vsub.s32 0, %v936
    %v938 = vrot.slane %v933, %v937
    %v940 = vpack.i.b16 %v665, %v665
    %v942 = vlaneseq
    %v943 = vshrl.u32 %v942, 7
    %v944 = vsub.s32 0, %v943
    %v945 = vrot.slane %v940, %v944
    %v947 = vpack.i.b16 %v669, %v669
    %v949 = vlaneseq
    %v950 = vshrl.u32 %v949, 7
    %v951 = vsub.s32 0, %v950
    %v952 = vrot.slane %v947, %v951
    %v954 = vpack.i.b16 %v673, %v673
    %v956 = vlaneseq
    %v957 = vshrl.u32 %v956, 7
    %v958 = vsub.s32 0, %v957
    %v959 = vrot.slane %v954, %v958
    %v961 = vpack.i.b16 %v677, %v677
    %v963 = vlaneseq
    %v964 = vshrl.u32 %v963, 7
    %v965 = vsub.s32 0, %v964
    %v966 = vrot.slane %v961, %v965
    %v968 = vpack.i.b16 %v681, %v681
    %v970 = vlaneseq
    %v971 = vshrl.u32 %v970, 7
    %v972 = vsub.s32 0, %v971
    %v973 = vrot.slane %v968, %v972
    %v975 = vpack.i.b16 %v685, %v685
    %v977 = vlaneseq
    %v978 = vshrl.u32 %v977, 7
    %v979 = vsub.s32 0, %v978
    %v980 = vrot.slane %v975, %v979
    %v982 = vpack.i.b16 %v689, %v689
    %v984 = vlaneseq
    %v985 = vshrl.u32 %v984, 7
    %v986 = vsub.s32 0, %v985
    %v987 = vrot.slane %v982, %v986
    %v989 = vpack.i.b16 %v693, %v693
    %v991 = vlaneseq
    %v992 = vshrl.u32 %v991, 7
    %v993 = vsub.s32 0, %v992
    %v994 = vrot.slane %v989, %v993
    %v996 = vpack.i.b16 %v697, %v697
    %v998 = vlaneseq
    %v999 = vshrl.u32 %v998, 7
    %v1000 = vsub.s32 0, %v999
    %v1001 = vrot.slane %v996, %v1000
    %v1003 = vpack.i.b16 %v701, %v701
    %v1005 = vlaneseq
    %v1006 = vshrl.u32 %v1005, 7
    %v1007 = vsub.s32 0, %v1006
    %v1008 = vrot.slane %v1003, %v1007
    %v1010 = vpack.i.b16 %v705, %v705
    %v1012 = vlaneseq
    %v1013 = vshrl.u32 %v1012, 7
    %v1014 = vsub.s32 0, %v1013
    %v1015 = vrot.slane %v1010, %v1014
    %v1017 = vpack.i.b16 %v709, %v709
    %v1019 = vlaneseq
    %v1020 = vshrl.u32 %v1019, 7
    %v1021 = vsub.s32 0, %v1020
    %v1022 = vrot.slane %v1017, %v1021
    %v1024 = vpack.i.b16 %v713, %v713
    %v1026 = vlaneseq
    %v1027 = vshrl.u32 %v1026, 7
    %v1028 = vsub.s32 0, %v1027
    %v1029 = vrot.slane %v1024, %v1028
    %v1031 = vpack.i.b16 %v717, %v717
    %v1033 = vlaneseq
    %v1034 = vshrl.u32 %v1033, 7
    %v1035 = vsub.s32 0, %v1034
    %v1036 = vrot.slane %v1031, %v1035
    %v1038 = vpack.i.b16 %v721, %v721
    %v1040 = vlaneseq
    %v1041 = vshrl.u32 %v1040, 7
    %v1042 = vsub.s32 0, %v1041
    %v1043 = vrot.slane %v1038, %v1042
    %v1045 = vpack.i.b16 %v725, %v725
    %v1047 = vlaneseq
    %v1048 = vshrl.u32 %v1047, 7
    %v1049 = vsub.s32 0, %v1048
    %v1050 = vrot.slane %v1045, %v1049
    %v1052 = vpack.i.b16 %v729, %v729
    %v1054 = vlaneseq
    %v1055 = vshrl.u32 %v1054, 7
    %v1056 = vsub.s32 0, %v1055
    %v1057 = vrot.slane %v1052, %v1056
    %v1059 = vpack.i.b16 %v733, %v733
    %v1061 = vlaneseq
    %v1062 = vshrl.u32 %v1061, 7
    %v1063 = vsub.s32 0, %v1062
    %v1064 = vrot.slane %v1059, %v1063
    %v1066 = vpack.i.b16 %v737, %v737
    %v1068 = vlaneseq
    %v1069 = vshrl.u32 %v1068, 7
    %v1070 = vsub.s32 0, %v1069
    %v1071 = vrot.slane %v1066, %v1070
    %v1073 = vpack.i.b16 %v741, %v741
    %v1075 = vlaneseq
    %v1076 = vshrl.u32 %v1075, 7
    %v1077 = vsub.s32 0, %v1076
    %v1078 = vrot.slane %v1073, %v1077
    %v1080 = vpack.i.b16 %v745, %v745
    %v1082 = vlaneseq
    %v1083 = vshrl.u32 %v1082, 7
    %v1084 = vsub.s32 0, %v1083
    %v1085 = vrot.slane %v1080, %v1084
    %v1087 = vpack.i.b16 %v749, %v749
    %v1089 = vlaneseq
    %v1090 = vshrl.u32 %v1089, 7
    %v1091 = vsub.s32 0, %v1090
    %v1092 = vrot.slane %v1087, %v1091
    %v1094 = vpack.i.b16 %v753, %v753
    %v1096 = vlaneseq
    %v1097 = vshrl.u32 %v1096, 7
    %v1098 = vsub.s32 0, %v1097
    %v1099 = vrot.slane %v1094, %v1098
    %v1101 = vpack.i.b16 %v757, %v757
    %v1103 = vlaneseq
    %v1104 = vshrl.u32 %v1103, 7
    %v1105 = vsub.s32 0, %v1104
    %v1106 = vrot.slane %v1101, %v1105
    %v1108 = vpack.i.b16 %v761, %v761
    %v1110 = vlaneseq
    %v1111 = vshrl.u32 %v1110, 7
    %v1112 = vsub.s32 0, %v1111
    %v1113 = vrot.slane %v1108, %v1112
    %v1115 = vpack.i.b16 %v765, %v765
    %v1117 = vlaneseq
    %v1118 = vshrl.u32 %v1117, 7
    %v1119 = vsub.s32 0, %v1118
    %v1120 = vrot.slane %v1115, %v1119
    %v1122 = vpack.i.b16 %v769, %v769
    %v1124 = vlaneseq
    %v1125 = vshrl.u32 %v1124, 7
    %v1126 = vsub.s32 0, %v1125
    %v1127 = vrot.slane %v1122, %v1126
    %v1129 = vpack.i.b16 %v773, %v773
    %v1131 = vlaneseq
    %v1132 = vshrl.u32 %v1131, 7
    %v1133 = vsub.s32 0, %v1132
    %v1134 = vrot.slane %v1129, %v1133
    %v1136 = vpack.i.b16 %v777, %v777
    %v1138 = vlaneseq
    %v1139 = vshrl.u32 %v1138, 7
    %v1140 = vsub.s32 0, %v1139
    %v1141 = vrot.slane %v1136, %v1140
    %v1143 = vpack.i.b16 %v781, %v781
    %v1145 = vlaneseq
    %v1146 = vshrl.u32 %v1145, 7
    %v1147 = vsub.s32 0, %v1146
    %v1148 = vrot.slane %v1143, %v1147
    %v1150 = vpack.i.b16 %v785, %v785
    %v1152 = vlaneseq
    %v1153 = vshrl.u32 %v1152, 7
    %v1154 = vsub.s32 0, %v1153
    %v1155 = vrot.slane %v1150, %v1154
    %v1157 = vpack.i.b16 %v789, %v789
    %v1159 = vlaneseq
    %v1160 = vshrl.u32 %v1159, 7
    %v1161 = vsub.s32 0, %v1160
    %v1162 = vrot.slane %v1157, %v1161
    %v1164 = vpack.i.b16 %v793, %v793
    %v1166 = vlaneseq
    %v1167 = vshrl.u32 %v1166, 7
    %v1168 = vsub.s32 0, %v1167
    %v1169 = vrot.slane %v1164, %v1168
    %v1171 = vpack.i.b16 %v797, %v797
    %v1173 = vlaneseq
    %v1174 = vshrl.u32 %v1173, 7
    %v1175 = vsub.s32 0, %v1174
    %v1176 = vrot.slane %v1171, %v1175
    %v1178 = vpack.i.b16 %v801, %v801
    %v1180 = vlaneseq
    %v1181 = vshrl.u32 %v1180, 7
    %v1182 = vsub.s32 0, %v1181
    %v1183 = vrot.slane %v1178, %v1182
    %v1185 = vpack.i.b16 %v805, %v805
    %v1187 = vlaneseq
    %v1188 = vshrl.u32 %v1187, 7
    %v1189 = vsub.s32 0, %v1188
    %v1190 = vrot.slane %v1185, %v1189
    %v1192 = vpack.i.b16 %v809, %v809
    %v1194 = vlaneseq
    %v1195 = vshrl.u32 %v1194, 7
    %v1196 = vsub.s32 0, %v1195
    %v1197 = vrot.slane %v1192, %v1196
    %v1199 = vpack.i.b16 %v813, %v813
    %v1201 = vlaneseq
    %v1202 = vshrl.u32 %v1201, 7
    %v1203 = vsub.s32 0, %v1202
    %v1204 = vrot.slane %v1199, %v1203
    %v1206 = vpack.i.b16 %v817, %v817
    %v1208 = vlaneseq
    %v1209 = vshrl.u32 %v1208, 7
    %v1210 = vsub.s32 0, %v1209
    %v1211 = vrot.slane %v1206, %v1210
    %v1213 = vpack.i.b16 %v821, %v821
    %v1215 = vlaneseq
    %v1216 = vshrl.u32 %v1215, 7
    %v1217 = vsub.s32 0, %v1216
    %v1218 = vrot.slane %v1213, %v1217
    %v1220 = vpack.i.b16 %v825, %v825
    %v1222 = vlaneseq
    %v1223 = vshrl.u32 %v1222, 7
    %v1224 = vsub.s32 0, %v1223
    %v1225 = vrot.slane %v1220, %v1224
    %v1227 = vpack.i.b16 %v829, %v829
    %v1229 = vlaneseq
    %v1230 = vshrl.u32 %v1229, 7
    %v1231 = vsub.s32 0, %v1230
    %v1232 = vrot.slane %v1227, %v1231
    %v1234 = vpack.i.b16 %v833, %v833
    %v1236 = vlaneseq
    %v1237 = vshrl.u32 %v1236, 7
    %v1238 = vsub.s32 0, %v1237
    %v1239 = vrot.slane %v1234, %v1238
    %v1241 = vpack.i.b16 %v837, %v837
    %v1243 = vlaneseq
    %v1244 = vshrl.u32 %v1243, 7
    %v1245 = vsub.s32 0, %v1244
    %v1246 = vrot.slane %v1241, %v1245
    %v1248 = vpack.i.b16 %v841, %v841
    %v1250 = vlaneseq
    %v1251 = vshrl.u32 %v1250, 7
    %v1252 = vsub.s32 0, %v1251
    %v1253 = vrot.slane %v1248, %v1252
    %v1255 = vpack.i.b16 %v845, %v845
    %v1257 = vlaneseq
    %v1258 = vshrl.u32 %v1257, 7
    %v1259 = vsub.s32 0, %v1258
    %v1260 = vrot.slane %v1255, %v1259
    %v1262 = vpack.i.b16 %v849, %v849
    %v1264 = vlaneseq
    %v1265 = vshrl.u32 %v1264, 7
    %v1266 = vsub.s32 0, %v1265
    %v1267 = vrot.slane %v1262, %v1266
    %v1269 = vpack.i.b16 %v853, %v853
    %v1271 = vlaneseq
    %v1272 = vshrl.u32 %v1271, 7
    %v1273 = vsub.s32 0, %v1272
    %v1274 = vrot.slane %v1269, %v1273
    %v1276 = vpack.i.b16 %v857, %v857
    %v1278 = vlaneseq
    %v1279 = vshrl.u32 %v1278, 7
    %v1280 = vsub.s32 0, %v1279
    %v1281 = vrot.slane %v1276, %v1280
    %v1283 = vpack.i.b16 %v861, %v861
    %v1285 = vlaneseq
    %v1286 = vshrl.u32 %v1285, 7
    %v1287 = vsub.s32 0, %v1286
    %v1288 = vrot.slane %v1283, %v1287
    %v1290 = vpack.i.b16 %v865, %v865
    %v1292 = vlaneseq
    %v1293 = vshrl.u32 %v1292, 7
    %v1294 = vsub.s32 0, %v1293
    %v1295 = vrot.slane %v1290, %v1294
    %v1297 = vpack.i.b16 %v869, %v869
    %v1299 = vlaneseq
    %v1300 = vshrl.u32 %v1299, 7
    %v1301 = vsub.s32 0, %v1300
    %v1302 = vrot.slane %v1297, %v1301
    %v1304 = vpack.i.b16 %v873, %v873
    %v1306 = vlaneseq
    %v1307 = vshrl.u32 %v1306, 7
    %v1308 = vsub.s32 0, %v1307
    %v1309 = vrot.slane %v1304, %v1308
    %v1311 = vpack.i.b16 %v877, %v877
    %v1313 = vlaneseq
    %v1314 = vshrl.u32 %v1313, 7
    %v1315 = vsub.s32 0, %v1314
    %v1316 = vrot.slane %v1311, %v1315
    %v1318 = vpack.i.b16 %v881, %v881
    %v1320 = vlaneseq
    %v1321 = vshrl.u32 %v1320, 7
    %v1322 = vsub.s32 0, %v1321
    %v1323 = vrot.slane %v1318, %v1322
    %v1325 = vpack.i.b16 %v885, %v885
    %v1327 = vlaneseq
    %v1328 = vshrl.u32 %v1327, 7
    %v1329 = vsub.s32 0, %v1328
    %v1330 = vrot.slane %v1325, %v1329
    %v1332 = vpack.i.b16 %v889, %v889
    %v1334 = vlaneseq
    %v1335 = vshrl.u32 %v1334, 7
    %v1336 = vsub.s32 0, %v1335
    %v1337 = vrot.slane %v1332, %v1336
    %v1338 = vadd.bf16 %v896, %v566
    %v1339 = vadd.bf16 %v903, %v566
    %v1340 = vadd.bf16 %v910, %v566
    %v1341 = vadd.bf16 %v917, %v566
    %v1342 = vadd.bf16 %v924, %v566
    %v1343 = vadd.bf16 %v931, %v566
    %v1344 = vadd.bf16 %v938, %v566
    %v1345 = vadd.bf16 %v945, %v566
    %v1346 = vadd.bf16 %v952, %v566
    %v1347 = vadd.bf16 %v959, %v566
    %v1348 = vadd.bf16 %v966, %v566
    %v1349 = vadd.bf16 %v973, %v566
    %v1350 = vadd.bf16 %v980, %v566
    %v1351 = vadd.bf16 %v987, %v566
    %v1352 = vadd.bf16 %v994, %v566
    %v1353 = vadd.bf16 %v1001, %v566
    %v1354 = vadd.bf16 %v1008, %v567
    %v1355 = vadd.bf16 %v1015, %v567
    %v1356 = vadd.bf16 %v1022, %v567
    %v1357 = vadd.bf16 %v1029, %v567
    %v1358 = vadd.bf16 %v1036, %v567
    %v1359 = vadd.bf16 %v1043, %v567
    %v1360 = vadd.bf16 %v1050, %v567
    %v1361 = vadd.bf16 %v1057, %v567
    %v1362 = vadd.bf16 %v1064, %v567
    %v1363 = vadd.bf16 %v1071, %v567
    %v1364 = vadd.bf16 %v1078, %v567
    %v1365 = vadd.bf16 %v1085, %v567
    %v1366 = vadd.bf16 %v1092, %v567
    %v1367 = vadd.bf16 %v1099, %v567
    %v1368 = vadd.bf16 %v1106, %v567
    %v1369 = vadd.bf16 %v1113, %v567
    %v1370 = vadd.bf16 %v1120, %v568
    %v1371 = vadd.bf16 %v1127, %v568
    %v1372 = vadd.bf16 %v1134, %v568
    %v1373 = vadd.bf16 %v1141, %v568
    %v1374 = vadd.bf16 %v1148, %v568
    %v1375 = vadd.bf16 %v1155, %v568
    %v1376 = vadd.bf16 %v1162, %v568
    %v1377 = vadd.bf16 %v1169, %v568
    %v1378 = vadd.bf16 %v1176, %v568
    %v1379 = vadd.bf16 %v1183, %v568
    %v1380 = vadd.bf16 %v1190, %v568
    %v1381 = vadd.bf16 %v1197, %v568
    %v1382 = vadd.bf16 %v1204, %v568
    %v1383 = vadd.bf16 %v1211, %v568
    %v1384 = vadd.bf16 %v1218, %v568
    %v1385 = vadd.bf16 %v1225, %v568
    %v1386 = vadd.bf16 %v1232, %v569
    %v1387 = vadd.bf16 %v1239, %v569
    %v1388 = vadd.bf16 %v1246, %v569
    %v1389 = vadd.bf16 %v1253, %v569
    %v1390 = vadd.bf16 %v1260, %v569
    %v1391 = vadd.bf16 %v1267, %v569
    %v1392 = vadd.bf16 %v1274, %v569
    %v1393 = vadd.bf16 %v1281, %v569
    %v1394 = vadd.bf16 %v1288, %v569
    %v1395 = vadd.bf16 %v1295, %v569
    %v1396 = vadd.bf16 %v1302, %v569
    %v1397 = vadd.bf16 %v1309, %v569
    %v1398 = vadd.bf16 %v1316, %v569
    %v1399 = vadd.bf16 %v1323, %v569
    %v1400 = vadd.bf16 %v1330, %v569
    %v1401 = vadd.bf16 %v1337, %v569
    %v1402 = vtanh.bf16.pop %v1338
    %v1403 = vtanh.bf16.pop %v1339
    %v1404 = vtanh.bf16.pop %v1340
    %v1405 = vtanh.bf16.pop %v1341
    %v1406 = vtanh.bf16.pop %v1342
    %v1407 = vtanh.bf16.pop %v1343
    %v1408 = vtanh.bf16.pop %v1344
    %v1409 = vtanh.bf16.pop %v1345
    %v1410 = vtanh.bf16.pop %v1346
    %v1411 = vtanh.bf16.pop %v1347
    %v1412 = vtanh.bf16.pop %v1348
    %v1413 = vtanh.bf16.pop %v1349
    %v1414 = vtanh.bf16.pop %v1350
    %v1415 = vtanh.bf16.pop %v1351
    %v1416 = vtanh.bf16.pop %v1352
    %v1417 = vtanh.bf16.pop %v1353
    %v1418 = vtanh.bf16.pop %v1354
    %v1419 = vtanh.bf16.pop %v1355
    %v1420 = vtanh.bf16.pop %v1356
    %v1421 = vtanh.bf16.pop %v1357
    %v1422 = vtanh.bf16.pop %v1358
    %v1423 = vtanh.bf16.pop %v1359
    %v1424 = vtanh.bf16.pop %v1360
    %v1425 = vtanh.bf16.pop %v1361
    %v1426 = vtanh.bf16.pop %v1362
    %v1427 = vtanh.bf16.pop %v1363
    %v1428 = vtanh.bf16.pop %v1364
    %v1429 = vtanh.bf16.pop %v1365
    %v1430 = vtanh.bf16.pop %v1366
    %v1431 = vtanh.bf16.pop %v1367
    %v1432 = vtanh.bf16.pop %v1368
    %v1433 = vtanh.bf16.pop %v1369
    %v1434 = vtanh.bf16.pop %v1370
    %v1435 = vtanh.bf16.pop %v1371
    %v1436 = vtanh.bf16.pop %v1372
    %v1437 = vtanh.bf16.pop %v1373
    %v1438 = vtanh.bf16.pop %v1374
    %v1439 = vtanh.bf16.pop %v1375
    %v1440 = vtanh.bf16.pop %v1376
    %v1441 = vtanh.bf16.pop %v1377
    %v1442 = vtanh.bf16.pop %v1378
    %v1443 = vtanh.bf16.pop %v1379
    %v1444 = vtanh.bf16.pop %v1380
    %v1445 = vtanh.bf16.pop %v1381
    %v1446 = vtanh.bf16.pop %v1382
    %v1447 = vtanh.bf16.pop %v1383
    %v1448 = vtanh.bf16.pop %v1384
    %v1449 = vtanh.bf16.pop %v1385
    %v1450 = vtanh.bf16.pop %v1386
    %v1451 = vtanh.bf16.pop %v1387
    %v1452 = vtanh.bf16.pop %v1388
    %v1453 = vtanh.bf16.pop %v1389
    %v1454 = vtanh.bf16.pop %v1390
    %v1455 = vtanh.bf16.pop %v1391
    %v1456 = vtanh.bf16.pop %v1392
    %v1457 = vtanh.bf16.pop %v1393
    %v1458 = vtanh.bf16.pop %v1394
    %v1459 = vtanh.bf16.pop %v1395
    %v1460 = vtanh.bf16.pop %v1396
    %v1461 = vtanh.bf16.pop %v1397
    %v1462 = vtanh.bf16.pop %v1398
    %v1463 = vtanh.bf16.pop %v1399
    %v1464 = vtanh.bf16.pop %v1400
    %v1465 = vtanh.bf16.pop %v1401
    %v1467 = vpack.i.b16 %v297, %v297
    %v1469 = vlaneseq
    %v1470 = vshrl.u32 %v1469, 7
    %v1471 = vsub.s32 0, %v1470
    %v1472 = vrot.slane %v1467, %v1471
    %v1473 = vmul.bf16 %v1402, %v1472
    %v1474 = vmul.bf16 %v1403, %v1472
    %v1475 = vmul.bf16 %v1404, %v1472
    %v1476 = vmul.bf16 %v1405, %v1472
    %v1477 = vmul.bf16 %v1406, %v1472
    %v1478 = vmul.bf16 %v1407, %v1472
    %v1479 = vmul.bf16 %v1408, %v1472
    %v1480 = vmul.bf16 %v1409, %v1472
    %v1481 = vmul.bf16 %v1410, %v1472
    %v1482 = vmul.bf16 %v1411, %v1472
    %v1483 = vmul.bf16 %v1412, %v1472
    %v1484 = vmul.bf16 %v1413, %v1472
    %v1485 = vmul.bf16 %v1414, %v1472
    %v1486 = vmul.bf16 %v1415, %v1472
    %v1487 = vmul.bf16 %v1416, %v1472
    %v1488 = vmul.bf16 %v1417, %v1472
    %v1489 = vmul.bf16 %v1418, %v1472
    %v1490 = vmul.bf16 %v1419, %v1472
    %v1491 = vmul.bf16 %v1420, %v1472
    %v1492 = vmul.bf16 %v1421, %v1472
    %v1493 = vmul.bf16 %v1422, %v1472
    %v1494 = vmul.bf16 %v1423, %v1472
    %v1495 = vmul.bf16 %v1424, %v1472
    %v1496 = vmul.bf16 %v1425, %v1472
    %v1497 = vmul.bf16 %v1426, %v1472
    %v1498 = vmul.bf16 %v1427, %v1472
    %v1499 = vmul.bf16 %v1428, %v1472
    %v1500 = vmul.bf16 %v1429, %v1472
    %v1501 = vmul.bf16 %v1430, %v1472
    %v1502 = vmul.bf16 %v1431, %v1472
    %v1503 = vmul.bf16 %v1432, %v1472
    %v1504 = vmul.bf16 %v1433, %v1472
    %v1505 = vmul.bf16 %v1434, %v1472
    %v1506 = vmul.bf16 %v1435, %v1472
    %v1507 = vmul.bf16 %v1436, %v1472
    %v1508 = vmul.bf16 %v1437, %v1472
    %v1509 = vmul.bf16 %v1438, %v1472
    %v1510 = vmul.bf16 %v1439, %v1472
    %v1511 = vmul.bf16 %v1440, %v1472
    %v1512 = vmul.bf16 %v1441, %v1472
    %v1513 = vmul.bf16 %v1442, %v1472
    %v1514 = vmul.bf16 %v1443, %v1472
    %v1515 = vmul.bf16 %v1444, %v1472
    %v1516 = vmul.bf16 %v1445, %v1472
    %v1517 = vmul.bf16 %v1446, %v1472
    %v1518 = vmul.bf16 %v1447, %v1472
    %v1519 = vmul.bf16 %v1448, %v1472
    %v1520 = vmul.bf16 %v1449, %v1472
    %v1521 = vmul.bf16 %v1450, %v1472
    %v1522 = vmul.bf16 %v1451, %v1472
    %v1523 = vmul.bf16 %v1452, %v1472
    %v1524 = vmul.bf16 %v1453, %v1472
    %v1525 = vmul.bf16 %v1454, %v1472
    %v1526 = vmul.bf16 %v1455, %v1472
    %v1527 = vmul.bf16 %v1456, %v1472
    %v1528 = vmul.bf16 %v1457, %v1472
    %v1529 = vmul.bf16 %v1458, %v1472
    %v1530 = vmul.bf16 %v1459, %v1472
    %v1531 = vmul.bf16 %v1460, %v1472
    %v1532 = vmul.bf16 %v1461, %v1472
    %v1533 = vmul.bf16 %v1462, %v1472
    %v1534 = vmul.bf16 %v1463, %v1472
    %v1535 = vmul.bf16 %v1464, %v1472
    %v1536 = vmul.bf16 %v1465, %v1472
    %v1537 = vunpack.c.l.bf16 %v1473
    %v1538 = vunpack.c.l.bf16 %v1474
    %v1539 = vunpack.c.l.bf16 %v1475
    %v1540 = vunpack.c.l.bf16 %v1476
    %v1541 = vunpack.c.l.bf16 %v1477
    %v1542 = vunpack.c.l.bf16 %v1478
    %v1543 = vunpack.c.l.bf16 %v1479
    %v1544 = vunpack.c.l.bf16 %v1480
    %v1545 = vunpack.c.l.bf16 %v1481
    %v1546 = vunpack.c.l.bf16 %v1482
    %v1547 = vunpack.c.l.bf16 %v1483
    %v1548 = vunpack.c.l.bf16 %v1484
    %v1549 = vunpack.c.l.bf16 %v1485
    %v1550 = vunpack.c.l.bf16 %v1486
    %v1551 = vunpack.c.l.bf16 %v1487
    %v1552 = vunpack.c.l.bf16 %v1488
    %v1553 = vunpack.c.l.bf16 %v1489
    %v1554 = vunpack.c.l.bf16 %v1490
    %v1555 = vunpack.c.l.bf16 %v1491
    %v1556 = vunpack.c.l.bf16 %v1492
    %v1557 = vunpack.c.l.bf16 %v1493
    %v1558 = vunpack.c.l.bf16 %v1494
    %v1559 = vunpack.c.l.bf16 %v1495
    %v1560 = vunpack.c.l.bf16 %v1496
    %v1561 = vunpack.c.l.bf16 %v1497
    %v1562 = vunpack.c.l.bf16 %v1498
    %v1563 = vunpack.c.l.bf16 %v1499
    %v1564 = vunpack.c.l.bf16 %v1500
    %v1565 = vunpack.c.l.bf16 %v1501
    %v1566 = vunpack.c.l.bf16 %v1502
    %v1567 = vunpack.c.l.bf16 %v1503
    %v1568 = vunpack.c.l.bf16 %v1504
    %v1569 = vunpack.c.l.bf16 %v1505
    %v1570 = vunpack.c.l.bf16 %v1506
    %v1571 = vunpack.c.l.bf16 %v1507
    %v1572 = vunpack.c.l.bf16 %v1508
    %v1573 = vunpack.c.l.bf16 %v1509
    %v1574 = vunpack.c.l.bf16 %v1510
    %v1575 = vunpack.c.l.bf16 %v1511
    %v1576 = vunpack.c.l.bf16 %v1512
    %v1577 = vunpack.c.l.bf16 %v1513
    %v1578 = vunpack.c.l.bf16 %v1514
    %v1579 = vunpack.c.l.bf16 %v1515
    %v1580 = vunpack.c.l.bf16 %v1516
    %v1581 = vunpack.c.l.bf16 %v1517
    %v1582 = vunpack.c.l.bf16 %v1518
    %v1583 = vunpack.c.l.bf16 %v1519
    %v1584 = vunpack.c.l.bf16 %v1520
    %v1585 = vunpack.c.l.bf16 %v1521
    %v1586 = vunpack.c.l.bf16 %v1522
    %v1587 = vunpack.c.l.bf16 %v1523
    %v1588 = vunpack.c.l.bf16 %v1524
    %v1589 = vunpack.c.l.bf16 %v1525
    %v1590 = vunpack.c.l.bf16 %v1526
    %v1591 = vunpack.c.l.bf16 %v1527
    %v1592 = vunpack.c.l.bf16 %v1528
    %v1593 = vunpack.c.l.bf16 %v1529
    %v1594 = vunpack.c.l.bf16 %v1530
    %v1595 = vunpack.c.l.bf16 %v1531
    %v1596 = vunpack.c.l.bf16 %v1532
    %v1597 = vunpack.c.l.bf16 %v1533
    %v1598 = vunpack.c.l.bf16 %v1534
    %v1599 = vunpack.c.l.bf16 %v1535
    %v1600 = vunpack.c.l.bf16 %v1536
    %1601 = vadd.xlane.f32.xlu0 %v1537
    %v1602 = vpop.xlane.xlu0 %1601
    %1603 = vadd.xlane.f32.xlu0 %v1538
    %v1604 = vpop.xlane.xlu0 %1603
    %1605 = vadd.xlane.f32.xlu0 %v1539
    %v1606 = vpop.xlane.xlu0 %1605
    %1607 = vadd.xlane.f32.xlu0 %v1540
    %v1608 = vpop.xlane.xlu0 %1607
    %1609 = vadd.xlane.f32.xlu0 %v1541
    %v1610 = vpop.xlane.xlu0 %1609
    %1611 = vadd.xlane.f32.xlu0 %v1542
    %v1612 = vpop.xlane.xlu0 %1611
    %1613 = vadd.xlane.f32.xlu0 %v1543
    %v1614 = vpop.xlane.xlu0 %1613
    %1615 = vadd.xlane.f32.xlu0 %v1544
    %v1616 = vpop.xlane.xlu0 %1615
    %1617 = vadd.xlane.f32.xlu0 %v1545
    %v1618 = vpop.xlane.xlu0 %1617
    %1619 = vadd.xlane.f32.xlu0 %v1546
    %v1620 = vpop.xlane.xlu0 %1619
    %1621 = vadd.xlane.f32.xlu0 %v1547
    %v1622 = vpop.xlane.xlu0 %1621
    %1623 = vadd.xlane.f32.xlu0 %v1548
    %v1624 = vpop.xlane.xlu0 %1623
    %1625 = vadd.xlane.f32.xlu0 %v1549
    %v1626 = vpop.xlane.xlu0 %1625
    %1627 = vadd.xlane.f32.xlu0 %v1550
    %v1628 = vpop.xlane.xlu0 %1627
    %1629 = vadd.xlane.f32.xlu0 %v1551
    %v1630 = vpop.xlane.xlu0 %1629
    %1631 = vadd.xlane.f32.xlu0 %v1552
    %v1632 = vpop.xlane.xlu0 %1631
    %1633 = vadd.xlane.f32.xlu0 %v1553
    %v1634 = vpop.xlane.xlu0 %1633
    %1635 = vadd.xlane.f32.xlu0 %v1554
    %v1636 = vpop.xlane.xlu0 %1635
    %1637 = vadd.xlane.f32.xlu0 %v1555
    %v1638 = vpop.xlane.xlu0 %1637
    %1639 = vadd.xlane.f32.xlu0 %v1556
    %v1640 = vpop.xlane.xlu0 %1639
    %1641 = vadd.xlane.f32.xlu0 %v1557
    %v1642 = vpop.xlane.xlu0 %1641
    %1643 = vadd.xlane.f32.xlu0 %v1558
    %v1644 = vpop.xlane.xlu0 %1643
    %1645 = vadd.xlane.f32.xlu0 %v1559
    %v1646 = vpop.xlane.xlu0 %1645
    %1647 = vadd.xlane.f32.xlu0 %v1560
    %v1648 = vpop.xlane.xlu0 %1647
    %1649 = vadd.xlane.f32.xlu0 %v1561
    %v1650 = vpop.xlane.xlu0 %1649
    %1651 = vadd.xlane.f32.xlu0 %v1562
    %v1652 = vpop.xlane.xlu0 %1651
    %1653 = vadd.xlane.f32.xlu0 %v1563
    %v1654 = vpop.xlane.xlu0 %1653
    %1655 = vadd.xlane.f32.xlu0 %v1564
    %v1656 = vpop.xlane.xlu0 %1655
    %1657 = vadd.xlane.f32.xlu0 %v1565
    %v1658 = vpop.xlane.xlu0 %1657
    %1659 = vadd.xlane.f32.xlu0 %v1566
    %v1660 = vpop.xlane.xlu0 %1659
    %1661 = vadd.xlane.f32.xlu0 %v1567
    %v1662 = vpop.xlane.xlu0 %1661
    %1663 = vadd.xlane.f32.xlu0 %v1568
    %v1664 = vpop.xlane.xlu0 %1663
    %1665 = vadd.xlane.f32.xlu0 %v1569
    %v1666 = vpop.xlane.xlu0 %1665
    %1667 = vadd.xlane.f32.xlu0 %v1570
    %v1668 = vpop.xlane.xlu0 %1667
    %1669 = vadd.xlane.f32.xlu0 %v1571
    %v1670 = vpop.xlane.xlu0 %1669
    %1671 = vadd.xlane.f32.xlu0 %v1572
    %v1672 = vpop.xlane.xlu0 %1671
    %1673 = vadd.xlane.f32.xlu0 %v1573
    %v1674 = vpop.xlane.xlu0 %1673
    %1675 = vadd.xlane.f32.xlu0 %v1574
    %v1676 = vpop.xlane.xlu0 %1675
    %1677 = vadd.xlane.f32.xlu0 %v1575
    %v1678 = vpop.xlane.xlu0 %1677
    %1679 = vadd.xlane.f32.xlu0 %v1576
    %v1680 = vpop.xlane.xlu0 %1679
    %1681 = vadd.xlane.f32.xlu0 %v1577
    %v1682 = vpop.xlane.xlu0 %1681
    %1683 = vadd.xlane.f32.xlu0 %v1578
    %v1684 = vpop.xlane.xlu0 %1683
    %1685 = vadd.xlane.f32.xlu0 %v1579
    %v1686 = vpop.xlane.xlu0 %1685
    %1687 = vadd.xlane.f32.xlu0 %v1580
    %v1688 = vpop.xlane.xlu0 %1687
    %1689 = vadd.xlane.f32.xlu0 %v1581
    %v1690 = vpop.xlane.xlu0 %1689
    %1691 = vadd.xlane.f32.xlu0 %v1582
    %v1692 = vpop.xlane.xlu0 %1691
    %1693 = vadd.xlane.f32.xlu0 %v1583
    %v1694 = vpop.xlane.xlu0 %1693
    %1695 = vadd.xlane.f32.xlu0 %v1584
    %v1696 = vpop.xlane.xlu0 %1695
    %1697 = vadd.xlane.f32.xlu0 %v1585
    %v1698 = vpop.xlane.xlu0 %1697
    %1699 = vadd.xlane.f32.xlu0 %v1586
    %v1700 = vpop.xlane.xlu0 %1699
    %1701 = vadd.xlane.f32.xlu0 %v1587
    %v1702 = vpop.xlane.xlu0 %1701
    %1703 = vadd.xlane.f32.xlu0 %v1588
    %v1704 = vpop.xlane.xlu0 %1703
    %1705 = vadd.xlane.f32.xlu0 %v1589
    %v1706 = vpop.xlane.xlu0 %1705
    %1707 = vadd.xlane.f32.xlu0 %v1590
    %v1708 = vpop.xlane.xlu0 %1707
    %1709 = vadd.xlane.f32.xlu0 %v1591
    %v1710 = vpop.xlane.xlu0 %1709
    %1711 = vadd.xlane.f32.xlu0 %v1592
    %v1712 = vpop.xlane.xlu0 %1711
    %1713 = vadd.xlane.f32.xlu0 %v1593
    %v1714 = vpop.xlane.xlu0 %1713
    %1715 = vadd.xlane.f32.xlu0 %v1594
    %v1716 = vpop.xlane.xlu0 %1715
    %1717 = vadd.xlane.f32.xlu0 %v1595
    %v1718 = vpop.xlane.xlu0 %1717
    %1719 = vadd.xlane.f32.xlu0 %v1596
    %v1720 = vpop.xlane.xlu0 %1719
    %1721 = vadd.xlane.f32.xlu0 %v1597
    %v1722 = vpop.xlane.xlu0 %1721
    %1723 = vadd.xlane.f32.xlu0 %v1598
    %v1724 = vpop.xlane.xlu0 %1723
    %1725 = vadd.xlane.f32.xlu0 %v1599
    %v1726 = vpop.xlane.xlu0 %1725
    %1727 = vadd.xlane.f32.xlu0 %v1600
    %v1728 = vpop.xlane.xlu0 %1727
    %v1793 = vlaneseq
    %v1794 = vand.u32 %v1793, 127
    %v1795 = vlaneseq
    %v1796 = vshrl.u32 %v1795, 7
    %v1797 = vsub.s32 %v1794, %v1796
    %v1798 = vrot.slane %v1602, %v1797
    %v1799 = vlaneseq
    %v1800 = vshrl.u32 %v1799, 7
    %v1801 = vsub.s32 %v1794, %v1800
    %v1802 = vrot.slane %v1604, %v1801
    %v1803 = vlaneseq
    %v1804 = vshrl.u32 %v1803, 7
    %v1805 = vsub.s32 %v1794, %v1804
    %v1806 = vrot.slane %v1606, %v1805
    %v1807 = vlaneseq
    %v1808 = vshrl.u32 %v1807, 7
    %v1809 = vsub.s32 %v1794, %v1808
    %v1810 = vrot.slane %v1608, %v1809
    %v1811 = vlaneseq
    %v1812 = vshrl.u32 %v1811, 7
    %v1813 = vsub.s32 %v1794, %v1812
    %v1814 = vrot.slane %v1610, %v1813
    %v1815 = vlaneseq
    %v1816 = vshrl.u32 %v1815, 7
    %v1817 = vsub.s32 %v1794, %v1816
    %v1818 = vrot.slane %v1612, %v1817
    %v1819 = vlaneseq
    %v1820 = vshrl.u32 %v1819, 7
    %v1821 = vsub.s32 %v1794, %v1820
    %v1822 = vrot.slane %v1614, %v1821
    %v1823 = vlaneseq
    %v1824 = vshrl.u32 %v1823, 7
    %v1825 = vsub.s32 %v1794, %v1824
    %v1826 = vrot.slane %v1616, %v1825
    %v1827 = vlaneseq
    %v1828 = vshrl.u32 %v1827, 7
    %v1829 = vsub.s32 %v1794, %v1828
    %v1830 = vrot.slane %v1618, %v1829
    %v1831 = vlaneseq
    %v1832 = vshrl.u32 %v1831, 7
    %v1833 = vsub.s32 %v1794, %v1832
    %v1834 = vrot.slane %v1620, %v1833
    %v1835 = vlaneseq
    %v1836 = vshrl.u32 %v1835, 7
    %v1837 = vsub.s32 %v1794, %v1836
    %v1838 = vrot.slane %v1622, %v1837
    %v1839 = vlaneseq
    %v1840 = vshrl.u32 %v1839, 7
    %v1841 = vsub.s32 %v1794, %v1840
    %v1842 = vrot.slane %v1624, %v1841
    %v1843 = vlaneseq
    %v1844 = vshrl.u32 %v1843, 7
    %v1845 = vsub.s32 %v1794, %v1844
    %v1846 = vrot.slane %v1626, %v1845
    %v1847 = vlaneseq
    %v1848 = vshrl.u32 %v1847, 7
    %v1849 = vsub.s32 %v1794, %v1848
    %v1850 = vrot.slane %v1628, %v1849
    %v1851 = vlaneseq
    %v1852 = vshrl.u32 %v1851, 7
    %v1853 = vsub.s32 %v1794, %v1852
    %v1854 = vrot.slane %v1630, %v1853
    %v1855 = vlaneseq
    %v1856 = vshrl.u32 %v1855, 7
    %v1857 = vsub.s32 %v1794, %v1856
    %v1858 = vrot.slane %v1632, %v1857
    %v1859 = vlaneseq
    %v1860 = vshrl.u32 %v1859, 7
    %v1861 = vsub.s32 %v1794, %v1860
    %v1862 = vrot.slane %v1634, %v1861
    %v1863 = vlaneseq
    %v1864 = vshrl.u32 %v1863, 7
    %v1865 = vsub.s32 %v1794, %v1864
    %v1866 = vrot.slane %v1636, %v1865
    %v1867 = vlaneseq
    %v1868 = vshrl.u32 %v1867, 7
    %v1869 = vsub.s32 %v1794, %v1868
    %v1870 = vrot.slane %v1638, %v1869
    %v1871 = vlaneseq
    %v1872 = vshrl.u32 %v1871, 7
    %v1873 = vsub.s32 %v1794, %v1872
    %v1874 = vrot.slane %v1640, %v1873
    %v1875 = vlaneseq
    %v1876 = vshrl.u32 %v1875, 7
    %v1877 = vsub.s32 %v1794, %v1876
    %v1878 = vrot.slane %v1642, %v1877
    %v1879 = vlaneseq
    %v1880 = vshrl.u32 %v1879, 7
    %v1881 = vsub.s32 %v1794, %v1880
    %v1882 = vrot.slane %v1644, %v1881
    %v1883 = vlaneseq
    %v1884 = vshrl.u32 %v1883, 7
    %v1885 = vsub.s32 %v1794, %v1884
    %v1886 = vrot.slane %v1646, %v1885
    %v1887 = vlaneseq
    %v1888 = vshrl.u32 %v1887, 7
    %v1889 = vsub.s32 %v1794, %v1888
    %v1890 = vrot.slane %v1648, %v1889
    %v1891 = vlaneseq
    %v1892 = vshrl.u32 %v1891, 7
    %v1893 = vsub.s32 %v1794, %v1892
    %v1894 = vrot.slane %v1650, %v1893
    %v1895 = vlaneseq
    %v1896 = vshrl.u32 %v1895, 7
    %v1897 = vsub.s32 %v1794, %v1896
    %v1898 = vrot.slane %v1652, %v1897
    %v1899 = vlaneseq
    %v1900 = vshrl.u32 %v1899, 7
    %v1901 = vsub.s32 %v1794, %v1900
    %v1902 = vrot.slane %v1654, %v1901
    %v1903 = vlaneseq
    %v1904 = vshrl.u32 %v1903, 7
    %v1905 = vsub.s32 %v1794, %v1904
    %v1906 = vrot.slane %v1656, %v1905
    %v1907 = vlaneseq
    %v1908 = vshrl.u32 %v1907, 7
    %v1909 = vsub.s32 %v1794, %v1908
    %v1910 = vrot.slane %v1658, %v1909
    %v1911 = vlaneseq
    %v1912 = vshrl.u32 %v1911, 7
    %v1913 = vsub.s32 %v1794, %v1912
    %v1914 = vrot.slane %v1660, %v1913
    %v1915 = vlaneseq
    %v1916 = vshrl.u32 %v1915, 7
    %v1917 = vsub.s32 %v1794, %v1916
    %v1918 = vrot.slane %v1662, %v1917
    %v1919 = vlaneseq
    %v1920 = vshrl.u32 %v1919, 7
    %v1921 = vsub.s32 %v1794, %v1920
    %v1922 = vrot.slane %v1664, %v1921
    %v1923 = vlaneseq
    %v1924 = vshrl.u32 %v1923, 7
    %v1925 = vsub.s32 %v1794, %v1924
    %v1926 = vrot.slane %v1666, %v1925
    %v1927 = vlaneseq
    %v1928 = vshrl.u32 %v1927, 7
    %v1929 = vsub.s32 %v1794, %v1928
    %v1930 = vrot.slane %v1668, %v1929
    %v1931 = vlaneseq
    %v1932 = vshrl.u32 %v1931, 7
    %v1933 = vsub.s32 %v1794, %v1932
    %v1934 = vrot.slane %v1670, %v1933
    %v1935 = vlaneseq
    %v1936 = vshrl.u32 %v1935, 7
    %v1937 = vsub.s32 %v1794, %v1936
    %v1938 = vrot.slane %v1672, %v1937
    %v1939 = vlaneseq
    %v1940 = vshrl.u32 %v1939, 7
    %v1941 = vsub.s32 %v1794, %v1940
    %v1942 = vrot.slane %v1674, %v1941
    %v1943 = vlaneseq
    %v1944 = vshrl.u32 %v1943, 7
    %v1945 = vsub.s32 %v1794, %v1944
    %v1946 = vrot.slane %v1676, %v1945
    %v1947 = vlaneseq
    %v1948 = vshrl.u32 %v1947, 7
    %v1949 = vsub.s32 %v1794, %v1948
    %v1950 = vrot.slane %v1678, %v1949
    %v1951 = vlaneseq
    %v1952 = vshrl.u32 %v1951, 7
    %v1953 = vsub.s32 %v1794, %v1952
    %v1954 = vrot.slane %v1680, %v1953
    %v1955 = vlaneseq
    %v1956 = vshrl.u32 %v1955, 7
    %v1957 = vsub.s32 %v1794, %v1956
    %v1958 = vrot.slane %v1682, %v1957
    %v1959 = vlaneseq
    %v1960 = vshrl.u32 %v1959, 7
    %v1961 = vsub.s32 %v1794, %v1960
    %v1962 = vrot.slane %v1684, %v1961
    %v1963 = vlaneseq
    %v1964 = vshrl.u32 %v1963, 7
    %v1965 = vsub.s32 %v1794, %v1964
    %v1966 = vrot.slane %v1686, %v1965
    %v1967 = vlaneseq
    %v1968 = vshrl.u32 %v1967, 7
    %v1969 = vsub.s32 %v1794, %v1968
    %v1970 = vrot.slane %v1688, %v1969
    %v1971 = vlaneseq
    %v1972 = vshrl.u32 %v1971, 7
    %v1973 = vsub.s32 %v1794, %v1972
    %v1974 = vrot.slane %v1690, %v1973
    %v1975 = vlaneseq
    %v1976 = vshrl.u32 %v1975, 7
    %v1977 = vsub.s32 %v1794, %v1976
    %v1978 = vrot.slane %v1692, %v1977
    %v1979 = vlaneseq
    %v1980 = vshrl.u32 %v1979, 7
    %v1981 = vsub.s32 %v1794, %v1980
    %v1982 = vrot.slane %v1694, %v1981
    %v1983 = vlaneseq
    %v1984 = vshrl.u32 %v1983, 7
    %v1985 = vsub.s32 %v1794, %v1984
    %v1986 = vrot.slane %v1696, %v1985
    %v1987 = vlaneseq
    %v1988 = vshrl.u32 %v1987, 7
    %v1989 = vsub.s32 %v1794, %v1988
    %v1990 = vrot.slane %v1698, %v1989
    %v1991 = vlaneseq
    %v1992 = vshrl.u32 %v1991, 7
    %v1993 = vsub.s32 %v1794, %v1992
    %v1994 = vrot.slane %v1700, %v1993
    %v1995 = vlaneseq
    %v1996 = vshrl.u32 %v1995, 7
    %v1997 = vsub.s32 %v1794, %v1996
    %v1998 = vrot.slane %v1702, %v1997
    %v1999 = vlaneseq
    %v2000 = vshrl.u32 %v1999, 7
    %v2001 = vsub.s32 %v1794, %v2000
    %v2002 = vrot.slane %v1704, %v2001
    %v2003 = vlaneseq
    %v2004 = vshrl.u32 %v2003, 7
    %v2005 = vsub.s32 %v1794, %v2004
    %v2006 = vrot.slane %v1706, %v2005
    %v2007 = vlaneseq
    %v2008 = vshrl.u32 %v2007, 7
    %v2009 = vsub.s32 %v1794, %v2008
    %v2010 = vrot.slane %v1708, %v2009
    %v2011 = vlaneseq
    %v2012 = vshrl.u32 %v2011, 7
    %v2013 = vsub.s32 %v1794, %v2012
    %v2014 = vrot.slane %v1710, %v2013
    %v2015 = vlaneseq
    %v2016 = vshrl.u32 %v2015, 7
    %v2017 = vsub.s32 %v1794, %v2016
    %v2018 = vrot.slane %v1712, %v2017
    %v2019 = vlaneseq
    %v2020 = vshrl.u32 %v2019, 7
    %v2021 = vsub.s32 %v1794, %v2020
    %v2022 = vrot.slane %v1714, %v2021
    %v2023 = vlaneseq
    %v2024 = vshrl.u32 %v2023, 7
    %v2025 = vsub.s32 %v1794, %v2024
    %v2026 = vrot.slane %v1716, %v2025
    %v2027 = vlaneseq
    %v2028 = vshrl.u32 %v2027, 7
    %v2029 = vsub.s32 %v1794, %v2028
    %v2030 = vrot.slane %v1718, %v2029
    %v2031 = vlaneseq
    %v2032 = vshrl.u32 %v2031, 7
    %v2033 = vsub.s32 %v1794, %v2032
    %v2034 = vrot.slane %v1720, %v2033
    %v2035 = vlaneseq
    %v2036 = vshrl.u32 %v2035, 7
    %v2037 = vsub.s32 %v1794, %v2036
    %v2038 = vrot.slane %v1722, %v2037
    %v2039 = vlaneseq
    %v2040 = vshrl.u32 %v2039, 7
    %v2041 = vsub.s32 %v1794, %v2040
    %v2042 = vrot.slane %v1724, %v2041
    %v2043 = vlaneseq
    %v2044 = vshrl.u32 %v2043, 7
    %v2045 = vsub.s32 %v1794, %v2044
    %v2046 = vrot.slane %v1726, %v2045
    %v2047 = vlaneseq
    %v2048 = vshrl.u32 %v2047, 7
    %v2049 = vsub.s32 %v1794, %v2048
    %v2050 = vrot.slane %v1728, %v2049
    %vm2051 = vcmask 1041409
    %v2052 = vsel %vm2051, %v1802, %v1798
    %vm2053 = vcmask 1042434
    %v2054 = vsel %vm2053, %v1806, %v2052
    %vm2055 = vcmask 1043459
    %v2056 = vsel %vm2055, %v1810, %v2054
    %vm2057 = vcmask 1044484
    %v2058 = vsel %vm2057, %v1814, %v2056
    %vm2059 = vcmask 1045509
    %v2060 = vsel %vm2059, %v1818, %v2058
    %vm2061 = vcmask 1046534
    %v2062 = vsel %vm2061, %v1822, %v2060
    %vm2063 = vcmask 1047559
    %v2064 = vsel %vm2063, %v1826, %v2062
    %v2065 = vsel %vm2051, %v1834, %v1830
    %v2066 = vsel %vm2053, %v1838, %v2065
    %v2067 = vsel %vm2055, %v1842, %v2066
    %v2068 = vsel %vm2057, %v1846, %v2067
    %v2069 = vsel %vm2059, %v1850, %v2068
    %v2070 = vsel %vm2061, %v1854, %v2069
    %v2071 = vsel %vm2063, %v1858, %v2070
    %v2072 = vsel %vm2051, %v1866, %v1862
    %v2073 = vsel %vm2053, %v1870, %v2072
    %v2074 = vsel %vm2055, %v1874, %v2073
    %v2075 = vsel %vm2057, %v1878, %v2074
    %v2076 = vsel %vm2059, %v1882, %v2075
    %v2077 = vsel %vm2061, %v1886, %v2076
    %v2078 = vsel %vm2063, %v1890, %v2077
    %v2079 = vsel %vm2051, %v1898, %v1894
    %v2080 = vsel %vm2053, %v1902, %v2079
    %v2081 = vsel %vm2055, %v1906, %v2080
    %v2082 = vsel %vm2057, %v1910, %v2081
    %v2083 = vsel %vm2059, %v1914, %v2082
    %v2084 = vsel %vm2061, %v1918, %v2083
    %v2085 = vsel %vm2063, %v1922, %v2084
    %v2086 = vsel %vm2051, %v1930, %v1926
    %v2087 = vsel %vm2053, %v1934, %v2086
    %v2088 = vsel %vm2055, %v1938, %v2087
    %v2089 = vsel %vm2057, %v1942, %v2088
    %v2090 = vsel %vm2059, %v1946, %v2089
    %v2091 = vsel %vm2061, %v1950, %v2090
    %v2092 = vsel %vm2063, %v1954, %v2091
    %v2093 = vsel %vm2051, %v1962, %v1958
    %v2094 = vsel %vm2053, %v1966, %v2093
    %v2095 = vsel %vm2055, %v1970, %v2094
    %v2096 = vsel %vm2057, %v1974, %v2095
    %v2097 = vsel %vm2059, %v1978, %v2096
    %v2098 = vsel %vm2061, %v1982, %v2097
    %v2099 = vsel %vm2063, %v1986, %v2098
    %v2100 = vsel %vm2051, %v1994, %v1990
    %v2101 = vsel %vm2053, %v1998, %v2100
    %v2102 = vsel %vm2055, %v2002, %v2101
    %v2103 = vsel %vm2057, %v2006, %v2102
    %v2104 = vsel %vm2059, %v2010, %v2103
    %v2105 = vsel %vm2061, %v2014, %v2104
    %v2106 = vsel %vm2063, %v2018, %v2105
    %v2107 = vsel %vm2051, %v2026, %v2022
    %v2108 = vsel %vm2053, %v2030, %v2107
    %v2109 = vsel %vm2055, %v2034, %v2108
    %v2110 = vsel %vm2057, %v2038, %v2109
    %v2111 = vsel %vm2059, %v2042, %v2110
    %v2112 = vsel %vm2061, %v2046, %v2111
    %v2113 = vsel %vm2063, %v2050, %v2112
    %vm2122 = vcmask 64512
    %v2123 = vsel %vm2122, %v2064, -inf
    %2124 = vmax.xlane.f32.xlu0 %v2123
    %v2125 = vpop.xlane.xlu0 %2124
    %v2126 = vsel %vm2122, %v2071, -inf
    %2127 = vmax.xlane.f32.xlu0 %v2126
    %v2128 = vpop.xlane.xlu0 %2127
    %v2129 = vsel %vm2122, %v2078, -inf
    %2130 = vmax.xlane.f32.xlu0 %v2129
    %v2131 = vpop.xlane.xlu0 %2130
    %v2132 = vsel %vm2122, %v2085, -inf
    %2133 = vmax.xlane.f32.xlu0 %v2132
    %v2134 = vpop.xlane.xlu0 %2133
    %v2135 = vsel %vm2122, %v2092, -inf
    %2136 = vmax.xlane.f32.xlu0 %v2135
    %v2137 = vpop.xlane.xlu0 %2136
    %v2138 = vsel %vm2122, %v2099, -inf
    %2139 = vmax.xlane.f32.xlu0 %v2138
    %v2140 = vpop.xlane.xlu0 %2139
    %v2141 = vsel %vm2122, %v2106, -inf
    %2142 = vmax.xlane.f32.xlu0 %v2141
    %v2143 = vpop.xlane.xlu0 %2142
    %v2144 = vsel %vm2122, %v2113, -inf
    %2145 = vmax.xlane.f32.xlu0 %v2144
    %v2146 = vpop.xlane.xlu0 %2145
    %v2155 = vlaneseq
    %v2156 = vshrl.u32 %v2155, 7
    %v2157 = vsub.s32 0, %v2156
    %v2158 = vrot.slane %v2125, %v2157
    %v2159 = vlaneseq
    %v2160 = vshrl.u32 %v2159, 7
    %v2161 = vsub.s32 1, %v2160
    %v2162 = vrot.slane %v2125, %v2161
    %v2163 = vlaneseq
    %v2164 = vshrl.u32 %v2163, 7
    %v2165 = vsub.s32 2, %v2164
    %v2166 = vrot.slane %v2125, %v2165
    %v2167 = vlaneseq
    %v2168 = vshrl.u32 %v2167, 7
    %v2169 = vsub.s32 3, %v2168
    %v2170 = vrot.slane %v2125, %v2169
    %v2171 = vlaneseq
    %v2172 = vshrl.u32 %v2171, 7
    %v2173 = vsub.s32 4, %v2172
    %v2174 = vrot.slane %v2125, %v2173
    %v2175 = vlaneseq
    %v2176 = vshrl.u32 %v2175, 7
    %v2177 = vsub.s32 5, %v2176
    %v2178 = vrot.slane %v2125, %v2177
    %v2179 = vlaneseq
    %v2180 = vshrl.u32 %v2179, 7
    %v2181 = vsub.s32 6, %v2180
    %v2182 = vrot.slane %v2125, %v2181
    %v2183 = vlaneseq
    %v2184 = vshrl.u32 %v2183, 7
    %v2185 = vsub.s32 7, %v2184
    %v2186 = vrot.slane %v2125, %v2185
    %v2187 = vlaneseq
    %v2188 = vshrl.u32 %v2187, 7
    %v2189 = vsub.s32 0, %v2188
    %v2190 = vrot.slane %v2128, %v2189
    %v2191 = vlaneseq
    %v2192 = vshrl.u32 %v2191, 7
    %v2193 = vsub.s32 1, %v2192
    %v2194 = vrot.slane %v2128, %v2193
    %v2195 = vlaneseq
    %v2196 = vshrl.u32 %v2195, 7
    %v2197 = vsub.s32 2, %v2196
    %v2198 = vrot.slane %v2128, %v2197
    %v2199 = vlaneseq
    %v2200 = vshrl.u32 %v2199, 7
    %v2201 = vsub.s32 3, %v2200
    %v2202 = vrot.slane %v2128, %v2201
    %v2203 = vlaneseq
    %v2204 = vshrl.u32 %v2203, 7
    %v2205 = vsub.s32 4, %v2204
    %v2206 = vrot.slane %v2128, %v2205
    %v2207 = vlaneseq
    %v2208 = vshrl.u32 %v2207, 7
    %v2209 = vsub.s32 5, %v2208
    %v2210 = vrot.slane %v2128, %v2209
    %v2211 = vlaneseq
    %v2212 = vshrl.u32 %v2211, 7
    %v2213 = vsub.s32 6, %v2212
    %v2214 = vrot.slane %v2128, %v2213
    %v2215 = vlaneseq
    %v2216 = vshrl.u32 %v2215, 7
    %v2217 = vsub.s32 7, %v2216
    %v2218 = vrot.slane %v2128, %v2217
    %v2219 = vlaneseq
    %v2220 = vshrl.u32 %v2219, 7
    %v2221 = vsub.s32 0, %v2220
    %v2222 = vrot.slane %v2131, %v2221
    %v2223 = vlaneseq
    %v2224 = vshrl.u32 %v2223, 7
    %v2225 = vsub.s32 1, %v2224
    %v2226 = vrot.slane %v2131, %v2225
    %v2227 = vlaneseq
    %v2228 = vshrl.u32 %v2227, 7
    %v2229 = vsub.s32 2, %v2228
    %v2230 = vrot.slane %v2131, %v2229
    %v2231 = vlaneseq
    %v2232 = vshrl.u32 %v2231, 7
    %v2233 = vsub.s32 3, %v2232
    %v2234 = vrot.slane %v2131, %v2233
    %v2235 = vlaneseq
    %v2236 = vshrl.u32 %v2235, 7
    %v2237 = vsub.s32 4, %v2236
    %v2238 = vrot.slane %v2131, %v2237
    %v2239 = vlaneseq
    %v2240 = vshrl.u32 %v2239, 7
    %v2241 = vsub.s32 5, %v2240
    %v2242 = vrot.slane %v2131, %v2241
    %v2243 = vlaneseq
    %v2244 = vshrl.u32 %v2243, 7
    %v2245 = vsub.s32 6, %v2244
    %v2246 = vrot.slane %v2131, %v2245
    %v2247 = vlaneseq
    %v2248 = vshrl.u32 %v2247, 7
    %v2249 = vsub.s32 7, %v2248
    %v2250 = vrot.slane %v2131, %v2249
    %v2251 = vlaneseq
    %v2252 = vshrl.u32 %v2251, 7
    %v2253 = vsub.s32 0, %v2252
    %v2254 = vrot.slane %v2134, %v2253
    %v2255 = vlaneseq
    %v2256 = vshrl.u32 %v2255, 7
    %v2257 = vsub.s32 1, %v2256
    %v2258 = vrot.slane %v2134, %v2257
    %v2259 = vlaneseq
    %v2260 = vshrl.u32 %v2259, 7
    %v2261 = vsub.s32 2, %v2260
    %v2262 = vrot.slane %v2134, %v2261
    %v2263 = vlaneseq
    %v2264 = vshrl.u32 %v2263, 7
    %v2265 = vsub.s32 3, %v2264
    %v2266 = vrot.slane %v2134, %v2265
    %v2267 = vlaneseq
    %v2268 = vshrl.u32 %v2267, 7
    %v2269 = vsub.s32 4, %v2268
    %v2270 = vrot.slane %v2134, %v2269
    %v2271 = vlaneseq
    %v2272 = vshrl.u32 %v2271, 7
    %v2273 = vsub.s32 5, %v2272
    %v2274 = vrot.slane %v2134, %v2273
    %v2275 = vlaneseq
    %v2276 = vshrl.u32 %v2275, 7
    %v2277 = vsub.s32 6, %v2276
    %v2278 = vrot.slane %v2134, %v2277
    %v2279 = vlaneseq
    %v2280 = vshrl.u32 %v2279, 7
    %v2281 = vsub.s32 7, %v2280
    %v2282 = vrot.slane %v2134, %v2281
    %v2283 = vlaneseq
    %v2284 = vshrl.u32 %v2283, 7
    %v2285 = vsub.s32 0, %v2284
    %v2286 = vrot.slane %v2137, %v2285
    %v2287 = vlaneseq
    %v2288 = vshrl.u32 %v2287, 7
    %v2289 = vsub.s32 1, %v2288
    %v2290 = vrot.slane %v2137, %v2289
    %v2291 = vlaneseq
    %v2292 = vshrl.u32 %v2291, 7
    %v2293 = vsub.s32 2, %v2292
    %v2294 = vrot.slane %v2137, %v2293
    %v2295 = vlaneseq
    %v2296 = vshrl.u32 %v2295, 7
    %v2297 = vsub.s32 3, %v2296
    %v2298 = vrot.slane %v2137, %v2297
    %v2299 = vlaneseq
    %v2300 = vshrl.u32 %v2299, 7
    %v2301 = vsub.s32 4, %v2300
    %v2302 = vrot.slane %v2137, %v2301
    %v2303 = vlaneseq
    %v2304 = vshrl.u32 %v2303, 7
    %v2305 = vsub.s32 5, %v2304
    %v2306 = vrot.slane %v2137, %v2305
    %v2307 = vlaneseq
    %v2308 = vshrl.u32 %v2307, 7
    %v2309 = vsub.s32 6, %v2308
    %v2310 = vrot.slane %v2137, %v2309
    %v2311 = vlaneseq
    %v2312 = vshrl.u32 %v2311, 7
    %v2313 = vsub.s32 7, %v2312
    %v2314 = vrot.slane %v2137, %v2313
    %v2315 = vlaneseq
    %v2316 = vshrl.u32 %v2315, 7
    %v2317 = vsub.s32 0, %v2316
    %v2318 = vrot.slane %v2140, %v2317
    %v2319 = vlaneseq
    %v2320 = vshrl.u32 %v2319, 7
    %v2321 = vsub.s32 1, %v2320
    %v2322 = vrot.slane %v2140, %v2321
    %v2323 = vlaneseq
    %v2324 = vshrl.u32 %v2323, 7
    %v2325 = vsub.s32 2, %v2324
    %v2326 = vrot.slane %v2140, %v2325
    %v2327 = vlaneseq
    %v2328 = vshrl.u32 %v2327, 7
    %v2329 = vsub.s32 3, %v2328
    %v2330 = vrot.slane %v2140, %v2329
    %v2331 = vlaneseq
    %v2332 = vshrl.u32 %v2331, 7
    %v2333 = vsub.s32 4, %v2332
    %v2334 = vrot.slane %v2140, %v2333
    %v2335 = vlaneseq
    %v2336 = vshrl.u32 %v2335, 7
    %v2337 = vsub.s32 5, %v2336
    %v2338 = vrot.slane %v2140, %v2337
    %v2339 = vlaneseq
    %v2340 = vshrl.u32 %v2339, 7
    %v2341 = vsub.s32 6, %v2340
    %v2342 = vrot.slane %v2140, %v2341
    %v2343 = vlaneseq
    %v2344 = vshrl.u32 %v2343, 7
    %v2345 = vsub.s32 7, %v2344
    %v2346 = vrot.slane %v2140, %v2345
    %v2347 = vlaneseq
    %v2348 = vshrl.u32 %v2347, 7
    %v2349 = vsub.s32 0, %v2348
    %v2350 = vrot.slane %v2143, %v2349
    %v2351 = vlaneseq
    %v2352 = vshrl.u32 %v2351, 7
    %v2353 = vsub.s32 1, %v2352
    %v2354 = vrot.slane %v2143, %v2353
    %v2355 = vlaneseq
    %v2356 = vshrl.u32 %v2355, 7
    %v2357 = vsub.s32 2, %v2356
    %v2358 = vrot.slane %v2143, %v2357
    %v2359 = vlaneseq
    %v2360 = vshrl.u32 %v2359, 7
    %v2361 = vsub.s32 3, %v2360
    %v2362 = vrot.slane %v2143, %v2361
    %v2363 = vlaneseq
    %v2364 = vshrl.u32 %v2363, 7
    %v2365 = vsub.s32 4, %v2364
    %v2366 = vrot.slane %v2143, %v2365
    %v2367 = vlaneseq
    %v2368 = vshrl.u32 %v2367, 7
    %v2369 = vsub.s32 5, %v2368
    %v2370 = vrot.slane %v2143, %v2369
    %v2371 = vlaneseq
    %v2372 = vshrl.u32 %v2371, 7
    %v2373 = vsub.s32 6, %v2372
    %v2374 = vrot.slane %v2143, %v2373
    %v2375 = vlaneseq
    %v2376 = vshrl.u32 %v2375, 7
    %v2377 = vsub.s32 7, %v2376
    %v2378 = vrot.slane %v2143, %v2377
    %v2379 = vlaneseq
    %v2380 = vshrl.u32 %v2379, 7
    %v2381 = vsub.s32 0, %v2380
    %v2382 = vrot.slane %v2146, %v2381
    %v2383 = vlaneseq
    %v2384 = vshrl.u32 %v2383, 7
    %v2385 = vsub.s32 1, %v2384
    %v2386 = vrot.slane %v2146, %v2385
    %v2387 = vlaneseq
    %v2388 = vshrl.u32 %v2387, 7
    %v2389 = vsub.s32 2, %v2388
    %v2390 = vrot.slane %v2146, %v2389
    %v2391 = vlaneseq
    %v2392 = vshrl.u32 %v2391, 7
    %v2393 = vsub.s32 3, %v2392
    %v2394 = vrot.slane %v2146, %v2393
    %v2395 = vlaneseq
    %v2396 = vshrl.u32 %v2395, 7
    %v2397 = vsub.s32 4, %v2396
    %v2398 = vrot.slane %v2146, %v2397
    %v2399 = vlaneseq
    %v2400 = vshrl.u32 %v2399, 7
    %v2401 = vsub.s32 5, %v2400
    %v2402 = vrot.slane %v2146, %v2401
    %v2403 = vlaneseq
    %v2404 = vshrl.u32 %v2403, 7
    %v2405 = vsub.s32 6, %v2404
    %v2406 = vrot.slane %v2146, %v2405
    %v2407 = vlaneseq
    %v2408 = vshrl.u32 %v2407, 7
    %v2409 = vsub.s32 7, %v2408
    %v2410 = vrot.slane %v2146, %v2409
    %v2475 = vsub.f32 %v1602, %v2158
    %v2476 = vsub.f32 %v1604, %v2162
    %v2477 = vsub.f32 %v1606, %v2166
    %v2478 = vsub.f32 %v1608, %v2170
    %v2479 = vsub.f32 %v1610, %v2174
    %v2480 = vsub.f32 %v1612, %v2178
    %v2481 = vsub.f32 %v1614, %v2182
    %v2482 = vsub.f32 %v1616, %v2186
    %v2483 = vsub.f32 %v1618, %v2190
    %v2484 = vsub.f32 %v1620, %v2194
    %v2485 = vsub.f32 %v1622, %v2198
    %v2486 = vsub.f32 %v1624, %v2202
    %v2487 = vsub.f32 %v1626, %v2206
    %v2488 = vsub.f32 %v1628, %v2210
    %v2489 = vsub.f32 %v1630, %v2214
    %v2490 = vsub.f32 %v1632, %v2218
    %v2491 = vsub.f32 %v1634, %v2222
    %v2492 = vsub.f32 %v1636, %v2226
    %v2493 = vsub.f32 %v1638, %v2230
    %v2494 = vsub.f32 %v1640, %v2234
    %v2495 = vsub.f32 %v1642, %v2238
    %v2496 = vsub.f32 %v1644, %v2242
    %v2497 = vsub.f32 %v1646, %v2246
    %v2498 = vsub.f32 %v1648, %v2250
    %v2499 = vsub.f32 %v1650, %v2254
    %v2500 = vsub.f32 %v1652, %v2258
    %v2501 = vsub.f32 %v1654, %v2262
    %v2502 = vsub.f32 %v1656, %v2266
    %v2503 = vsub.f32 %v1658, %v2270
    %v2504 = vsub.f32 %v1660, %v2274
    %v2505 = vsub.f32 %v1662, %v2278
    %v2506 = vsub.f32 %v1664, %v2282
    %v2507 = vsub.f32 %v1666, %v2286
    %v2508 = vsub.f32 %v1668, %v2290
    %v2509 = vsub.f32 %v1670, %v2294
    %v2510 = vsub.f32 %v1672, %v2298
    %v2511 = vsub.f32 %v1674, %v2302
    %v2512 = vsub.f32 %v1676, %v2306
    %v2513 = vsub.f32 %v1678, %v2310
    %v2514 = vsub.f32 %v1680, %v2314
    %v2515 = vsub.f32 %v1682, %v2318
    %v2516 = vsub.f32 %v1684, %v2322
    %v2517 = vsub.f32 %v1686, %v2326
    %v2518 = vsub.f32 %v1688, %v2330
    %v2519 = vsub.f32 %v1690, %v2334
    %v2520 = vsub.f32 %v1692, %v2338
    %v2521 = vsub.f32 %v1694, %v2342
    %v2522 = vsub.f32 %v1696, %v2346
    %v2523 = vsub.f32 %v1698, %v2350
    %v2524 = vsub.f32 %v1700, %v2354
    %v2525 = vsub.f32 %v1702, %v2358
    %v2526 = vsub.f32 %v1704, %v2362
    %v2527 = vsub.f32 %v1706, %v2366
    %v2528 = vsub.f32 %v1708, %v2370
    %v2529 = vsub.f32 %v1710, %v2374
    %v2530 = vsub.f32 %v1712, %v2378
    %v2531 = vsub.f32 %v1714, %v2382
    %v2532 = vsub.f32 %v1716, %v2386
    %v2533 = vsub.f32 %v1718, %v2390
    %v2534 = vsub.f32 %v1720, %v2394
    %v2535 = vsub.f32 %v1722, %v2398
    %v2536 = vsub.f32 %v1724, %v2402
    %v2537 = vsub.f32 %v1726, %v2406
    %v2538 = vsub.f32 %v1728, %v2410
    %v2539 = vmul.f32 %v2475, 1.442695
    %v2540 = vpow.pop %v2539
    %v2541 = vmul.f32 %v2476, 1.442695
    %v2542 = vpow.pop %v2541
    %v2543 = vmul.f32 %v2477, 1.442695
    %v2544 = vpow.pop %v2543
    %v2545 = vmul.f32 %v2478, 1.442695
    %v2546 = vpow.pop %v2545
    %v2547 = vmul.f32 %v2479, 1.442695
    %v2548 = vpow.pop %v2547
    %v2549 = vmul.f32 %v2480, 1.442695
    %v2550 = vpow.pop %v2549
    %v2551 = vmul.f32 %v2481, 1.442695
    %v2552 = vpow.pop %v2551
    %v2553 = vmul.f32 %v2482, 1.442695
    %v2554 = vpow.pop %v2553
    %v2555 = vmul.f32 %v2483, 1.442695
    %v2556 = vpow.pop %v2555
    %v2557 = vmul.f32 %v2484, 1.442695
    %v2558 = vpow.pop %v2557
    %v2559 = vmul.f32 %v2485, 1.442695
    %v2560 = vpow.pop %v2559
    %v2561 = vmul.f32 %v2486, 1.442695
    %v2562 = vpow.pop %v2561
    %v2563 = vmul.f32 %v2487, 1.442695
    %v2564 = vpow.pop %v2563
    %v2565 = vmul.f32 %v2488, 1.442695
    %v2566 = vpow.pop %v2565
    %v2567 = vmul.f32 %v2489, 1.442695
    %v2568 = vpow.pop %v2567
    %v2569 = vmul.f32 %v2490, 1.442695
    %v2570 = vpow.pop %v2569
    %v2571 = vmul.f32 %v2491, 1.442695
    %v2572 = vpow.pop %v2571
    %v2573 = vmul.f32 %v2492, 1.442695
    %v2574 = vpow.pop %v2573
    %v2575 = vmul.f32 %v2493, 1.442695
    %v2576 = vpow.pop %v2575
    %v2577 = vmul.f32 %v2494, 1.442695
    %v2578 = vpow.pop %v2577
    %v2579 = vmul.f32 %v2495, 1.442695
    %v2580 = vpow.pop %v2579
    %v2581 = vmul.f32 %v2496, 1.442695
    %v2582 = vpow.pop %v2581
    %v2583 = vmul.f32 %v2497, 1.442695
    %v2584 = vpow.pop %v2583
    %v2585 = vmul.f32 %v2498, 1.442695
    %v2586 = vpow.pop %v2585
    %v2587 = vmul.f32 %v2499, 1.442695
    %v2588 = vpow.pop %v2587
    %v2589 = vmul.f32 %v2500, 1.442695
    %v2590 = vpow.pop %v2589
    %v2591 = vmul.f32 %v2501, 1.442695
    %v2592 = vpow.pop %v2591
    %v2593 = vmul.f32 %v2502, 1.442695
    %v2594 = vpow.pop %v2593
    %v2595 = vmul.f32 %v2503, 1.442695
    %v2596 = vpow.pop %v2595
    %v2597 = vmul.f32 %v2504, 1.442695
    %v2598 = vpow.pop %v2597
    %v2599 = vmul.f32 %v2505, 1.442695
    %v2600 = vpow.pop %v2599
    %v2601 = vmul.f32 %v2506, 1.442695
    %v2602 = vpow.pop %v2601
    %v2603 = vmul.f32 %v2507, 1.442695
    %v2604 = vpow.pop %v2603
    %v2605 = vmul.f32 %v2508, 1.442695
    %v2606 = vpow.pop %v2605
    %v2607 = vmul.f32 %v2509, 1.442695
    %v2608 = vpow.pop %v2607
    %v2609 = vmul.f32 %v2510, 1.442695
    %v2610 = vpow.pop %v2609
    %v2611 = vmul.f32 %v2511, 1.442695
    %v2612 = vpow.pop %v2611
    %v2613 = vmul.f32 %v2512, 1.442695
    %v2614 = vpow.pop %v2613
    %v2615 = vmul.f32 %v2513, 1.442695
    %v2616 = vpow.pop %v2615
    %v2617 = vmul.f32 %v2514, 1.442695
    %v2618 = vpow.pop %v2617
    %v2619 = vmul.f32 %v2515, 1.442695
    %v2620 = vpow.pop %v2619
    %v2621 = vmul.f32 %v2516, 1.442695
    %v2622 = vpow.pop %v2621
    %v2623 = vmul.f32 %v2517, 1.442695
    %v2624 = vpow.pop %v2623
    %v2625 = vmul.f32 %v2518, 1.442695
    %v2626 = vpow.pop %v2625
    %v2627 = vmul.f32 %v2519, 1.442695
    %v2628 = vpow.pop %v2627
    %v2629 = vmul.f32 %v2520, 1.442695
    %v2630 = vpow.pop %v2629
    %v2631 = vmul.f32 %v2521, 1.442695
    %v2632 = vpow.pop %v2631
    %v2633 = vmul.f32 %v2522, 1.442695
    %v2634 = vpow.pop %v2633
    %v2635 = vmul.f32 %v2523, 1.442695
    %v2636 = vpow.pop %v2635
    %v2637 = vmul.f32 %v2524, 1.442695
    %v2638 = vpow.pop %v2637
    %v2639 = vmul.f32 %v2525, 1.442695
    %v2640 = vpow.pop %v2639
    %v2641 = vmul.f32 %v2526, 1.442695
    %v2642 = vpow.pop %v2641
    %v2643 = vmul.f32 %v2527, 1.442695
    %v2644 = vpow.pop %v2643
    %v2645 = vmul.f32 %v2528, 1.442695
    %v2646 = vpow.pop %v2645
    %v2647 = vmul.f32 %v2529, 1.442695
    %v2648 = vpow.pop %v2647
    %v2649 = vmul.f32 %v2530, 1.442695
    %v2650 = vpow.pop %v2649
    %v2651 = vmul.f32 %v2531, 1.442695
    %v2652 = vpow.pop %v2651
    %v2653 = vmul.f32 %v2532, 1.442695
    %v2654 = vpow.pop %v2653
    %v2655 = vmul.f32 %v2533, 1.442695
    %v2656 = vpow.pop %v2655
    %v2657 = vmul.f32 %v2534, 1.442695
    %v2658 = vpow.pop %v2657
    %v2659 = vmul.f32 %v2535, 1.442695
    %v2660 = vpow.pop %v2659
    %v2661 = vmul.f32 %v2536, 1.442695
    %v2662 = vpow.pop %v2661
    %v2663 = vmul.f32 %v2537, 1.442695
    %v2664 = vpow.pop %v2663
    %v2665 = vmul.f32 %v2538, 1.442695
    %v2666 = vpow.pop %v2665
    %2731 = vset.pattern.permute.xlu0 0
    %2732 = vperm.xlu0 %2731, %v2540
    %v2733 = vpop.permute.xlu0 %2732
    %2734 = vset.pattern.permute.xlu0 0
    %2735 = vperm.xlu0 %2734, %v2542
    %v2736 = vpop.permute.xlu0 %2735
    %2737 = vset.pattern.permute.xlu0 0
    %2738 = vperm.xlu0 %2737, %v2544
    %v2739 = vpop.permute.xlu0 %2738
    %2740 = vset.pattern.permute.xlu0 0
    %2741 = vperm.xlu0 %2740, %v2546
    %v2742 = vpop.permute.xlu0 %2741
    %2743 = vset.pattern.permute.xlu0 0
    %2744 = vperm.xlu0 %2743, %v2548
    %v2745 = vpop.permute.xlu0 %2744
    %2746 = vset.pattern.permute.xlu0 0
    %2747 = vperm.xlu0 %2746, %v2550
    %v2748 = vpop.permute.xlu0 %2747
    %2749 = vset.pattern.permute.xlu0 0
    %2750 = vperm.xlu0 %2749, %v2552
    %v2751 = vpop.permute.xlu0 %2750
    %2752 = vset.pattern.permute.xlu0 0
    %2753 = vperm.xlu0 %2752, %v2554
    %v2754 = vpop.permute.xlu0 %2753
    %2755 = vset.pattern.permute.xlu0 0
    %2756 = vperm.xlu0 %2755, %v2556
    %v2757 = vpop.permute.xlu0 %2756
    %2758 = vset.pattern.permute.xlu0 0
    %2759 = vperm.xlu0 %2758, %v2558
    %v2760 = vpop.permute.xlu0 %2759
    %2761 = vset.pattern.permute.xlu0 0
    %2762 = vperm.xlu0 %2761, %v2560
    %v2763 = vpop.permute.xlu0 %2762
    %2764 = vset.pattern.permute.xlu0 0
    %2765 = vperm.xlu0 %2764, %v2562
    %v2766 = vpop.permute.xlu0 %2765
    %2767 = vset.pattern.permute.xlu0 0
    %2768 = vperm.xlu0 %2767, %v2564
    %v2769 = vpop.permute.xlu0 %2768
    %2770 = vset.pattern.permute.xlu0 0
    %2771 = vperm.xlu0 %2770, %v2566
    %v2772 = vpop.permute.xlu0 %2771
    %2773 = vset.pattern.permute.xlu0 0
    %2774 = vperm.xlu0 %2773, %v2568
    %v2775 = vpop.permute.xlu0 %2774
    %2776 = vset.pattern.permute.xlu0 0
    %2777 = vperm.xlu0 %2776, %v2570
    %v2778 = vpop.permute.xlu0 %2777
    %2779 = vset.pattern.permute.xlu0 0
    %2780 = vperm.xlu0 %2779, %v2572
    %v2781 = vpop.permute.xlu0 %2780
    %2782 = vset.pattern.permute.xlu0 0
    %2783 = vperm.xlu0 %2782, %v2574
    %v2784 = vpop.permute.xlu0 %2783
    %2785 = vset.pattern.permute.xlu0 0
    %2786 = vperm.xlu0 %2785, %v2576
    %v2787 = vpop.permute.xlu0 %2786
    %2788 = vset.pattern.permute.xlu0 0
    %2789 = vperm.xlu0 %2788, %v2578
    %v2790 = vpop.permute.xlu0 %2789
    %2791 = vset.pattern.permute.xlu0 0
    %2792 = vperm.xlu0 %2791, %v2580
    %v2793 = vpop.permute.xlu0 %2792
    %2794 = vset.pattern.permute.xlu0 0
    %2795 = vperm.xlu0 %2794, %v2582
    %v2796 = vpop.permute.xlu0 %2795
    %2797 = vset.pattern.permute.xlu0 0
    %2798 = vperm.xlu0 %2797, %v2584
    %v2799 = vpop.permute.xlu0 %2798
    %2800 = vset.pattern.permute.xlu0 0
    %2801 = vperm.xlu0 %2800, %v2586
    %v2802 = vpop.permute.xlu0 %2801
    %2803 = vset.pattern.permute.xlu0 0
    %2804 = vperm.xlu0 %2803, %v2588
    %v2805 = vpop.permute.xlu0 %2804
    %2806 = vset.pattern.permute.xlu0 0
    %2807 = vperm.xlu0 %2806, %v2590
    %v2808 = vpop.permute.xlu0 %2807
    %2809 = vset.pattern.permute.xlu0 0
    %2810 = vperm.xlu0 %2809, %v2592
    %v2811 = vpop.permute.xlu0 %2810
    %2812 = vset.pattern.permute.xlu0 0
    %2813 = vperm.xlu0 %2812, %v2594
    %v2814 = vpop.permute.xlu0 %2813
    %2815 = vset.pattern.permute.xlu0 0
    %2816 = vperm.xlu0 %2815, %v2596
    %v2817 = vpop.permute.xlu0 %2816
    %2818 = vset.pattern.permute.xlu0 0
    %2819 = vperm.xlu0 %2818, %v2598
    %v2820 = vpop.permute.xlu0 %2819
    %2821 = vset.pattern.permute.xlu0 0
    %2822 = vperm.xlu0 %2821, %v2600
    %v2823 = vpop.permute.xlu0 %2822
    %2824 = vset.pattern.permute.xlu0 0
    %2825 = vperm.xlu0 %2824, %v2602
    %v2826 = vpop.permute.xlu0 %2825
    %2827 = vset.pattern.permute.xlu0 0
    %2828 = vperm.xlu0 %2827, %v2604
    %v2829 = vpop.permute.xlu0 %2828
    %2830 = vset.pattern.permute.xlu0 0
    %2831 = vperm.xlu0 %2830, %v2606
    %v2832 = vpop.permute.xlu0 %2831
    %2833 = vset.pattern.permute.xlu0 0
    %2834 = vperm.xlu0 %2833, %v2608
    %v2835 = vpop.permute.xlu0 %2834
    %2836 = vset.pattern.permute.xlu0 0
    %2837 = vperm.xlu0 %2836, %v2610
    %v2838 = vpop.permute.xlu0 %2837
    %2839 = vset.pattern.permute.xlu0 0
    %2840 = vperm.xlu0 %2839, %v2612
    %v2841 = vpop.permute.xlu0 %2840
    %2842 = vset.pattern.permute.xlu0 0
    %2843 = vperm.xlu0 %2842, %v2614
    %v2844 = vpop.permute.xlu0 %2843
    %2845 = vset.pattern.permute.xlu0 0
    %2846 = vperm.xlu0 %2845, %v2616
    %v2847 = vpop.permute.xlu0 %2846
    %2848 = vset.pattern.permute.xlu0 0
    %2849 = vperm.xlu0 %2848, %v2618
    %v2850 = vpop.permute.xlu0 %2849
    %2851 = vset.pattern.permute.xlu0 0
    %2852 = vperm.xlu0 %2851, %v2620
    %v2853 = vpop.permute.xlu0 %2852
    %2854 = vset.pattern.permute.xlu0 0
    %2855 = vperm.xlu0 %2854, %v2622
    %v2856 = vpop.permute.xlu0 %2855
    %2857 = vset.pattern.permute.xlu0 0
    %2858 = vperm.xlu0 %2857, %v2624
    %v2859 = vpop.permute.xlu0 %2858
    %2860 = vset.pattern.permute.xlu0 0
    %2861 = vperm.xlu0 %2860, %v2626
    %v2862 = vpop.permute.xlu0 %2861
    %2863 = vset.pattern.permute.xlu0 0
    %2864 = vperm.xlu0 %2863, %v2628
    %v2865 = vpop.permute.xlu0 %2864
    %2866 = vset.pattern.permute.xlu0 0
    %2867 = vperm.xlu0 %2866, %v2630
    %v2868 = vpop.permute.xlu0 %2867
    %2869 = vset.pattern.permute.xlu0 0
    %2870 = vperm.xlu0 %2869, %v2632
    %v2871 = vpop.permute.xlu0 %2870
    %2872 = vset.pattern.permute.xlu0 0
    %2873 = vperm.xlu0 %2872, %v2634
    %v2874 = vpop.permute.xlu0 %2873
    %2875 = vset.pattern.permute.xlu0 0
    %2876 = vperm.xlu0 %2875, %v2636
    %v2877 = vpop.permute.xlu0 %2876
    %2878 = vset.pattern.permute.xlu0 0
    %2879 = vperm.xlu0 %2878, %v2638
    %v2880 = vpop.permute.xlu0 %2879
    %2881 = vset.pattern.permute.xlu0 0
    %2882 = vperm.xlu0 %2881, %v2640
    %v2883 = vpop.permute.xlu0 %2882
    %2884 = vset.pattern.permute.xlu0 0
    %2885 = vperm.xlu0 %2884, %v2642
    %v2886 = vpop.permute.xlu0 %2885
    %2887 = vset.pattern.permute.xlu0 0
    %2888 = vperm.xlu0 %2887, %v2644
    %v2889 = vpop.permute.xlu0 %2888
    %2890 = vset.pattern.permute.xlu0 0
    %2891 = vperm.xlu0 %2890, %v2646
    %v2892 = vpop.permute.xlu0 %2891
    %2893 = vset.pattern.permute.xlu0 0
    %2894 = vperm.xlu0 %2893, %v2648
    %v2895 = vpop.permute.xlu0 %2894
    %2896 = vset.pattern.permute.xlu0 0
    %2897 = vperm.xlu0 %2896, %v2650
    %v2898 = vpop.permute.xlu0 %2897
    %2899 = vset.pattern.permute.xlu0 0
    %2900 = vperm.xlu0 %2899, %v2652
    %v2901 = vpop.permute.xlu0 %2900
    %2902 = vset.pattern.permute.xlu0 0
    %2903 = vperm.xlu0 %2902, %v2654
    %v2904 = vpop.permute.xlu0 %2903
    %2905 = vset.pattern.permute.xlu0 0
    %2906 = vperm.xlu0 %2905, %v2656
    %v2907 = vpop.permute.xlu0 %2906
    %2908 = vset.pattern.permute.xlu0 0
    %2909 = vperm.xlu0 %2908, %v2658
    %v2910 = vpop.permute.xlu0 %2909
    %2911 = vset.pattern.permute.xlu0 0
    %2912 = vperm.xlu0 %2911, %v2660
    %v2913 = vpop.permute.xlu0 %2912
    %2914 = vset.pattern.permute.xlu0 0
    %2915 = vperm.xlu0 %2914, %v2662
    %v2916 = vpop.permute.xlu0 %2915
    %2917 = vset.pattern.permute.xlu0 0
    %2918 = vperm.xlu0 %2917, %v2664
    %v2919 = vpop.permute.xlu0 %2918
    %2920 = vset.pattern.permute.xlu0 0
    %2921 = vperm.xlu0 %2920, %v2666
    %v2922 = vpop.permute.xlu0 %2921
    %v2923 = vlaneseq
    %v2924 = vshrl.u32 %v2923, 7
    %v2925 = vsub.s32 %v1794, %v2924
    %v2926 = vrot.slane %v2733, %v2925
    %v2927 = vlaneseq
    %v2928 = vshrl.u32 %v2927, 7
    %v2929 = vsub.s32 %v1794, %v2928
    %v2930 = vrot.slane %v2736, %v2929
    %v2931 = vlaneseq
    %v2932 = vshrl.u32 %v2931, 7
    %v2933 = vsub.s32 %v1794, %v2932
    %v2934 = vrot.slane %v2739, %v2933
    %v2935 = vlaneseq
    %v2936 = vshrl.u32 %v2935, 7
    %v2937 = vsub.s32 %v1794, %v2936
    %v2938 = vrot.slane %v2742, %v2937
    %v2939 = vlaneseq
    %v2940 = vshrl.u32 %v2939, 7
    %v2941 = vsub.s32 %v1794, %v2940
    %v2942 = vrot.slane %v2745, %v2941
    %v2943 = vlaneseq
    %v2944 = vshrl.u32 %v2943, 7
    %v2945 = vsub.s32 %v1794, %v2944
    %v2946 = vrot.slane %v2748, %v2945
    %v2947 = vlaneseq
    %v2948 = vshrl.u32 %v2947, 7
    %v2949 = vsub.s32 %v1794, %v2948
    %v2950 = vrot.slane %v2751, %v2949
    %v2951 = vlaneseq
    %v2952 = vshrl.u32 %v2951, 7
    %v2953 = vsub.s32 %v1794, %v2952
    %v2954 = vrot.slane %v2754, %v2953
    %v2955 = vlaneseq
    %v2956 = vshrl.u32 %v2955, 7
    %v2957 = vsub.s32 %v1794, %v2956
    %v2958 = vrot.slane %v2757, %v2957
    %v2959 = vlaneseq
    %v2960 = vshrl.u32 %v2959, 7
    %v2961 = vsub.s32 %v1794, %v2960
    %v2962 = vrot.slane %v2760, %v2961
    %v2963 = vlaneseq
    %v2964 = vshrl.u32 %v2963, 7
    %v2965 = vsub.s32 %v1794, %v2964
    %v2966 = vrot.slane %v2763, %v2965
    %v2967 = vlaneseq
    %v2968 = vshrl.u32 %v2967, 7
    %v2969 = vsub.s32 %v1794, %v2968
    %v2970 = vrot.slane %v2766, %v2969
    %v2971 = vlaneseq
    %v2972 = vshrl.u32 %v2971, 7
    %v2973 = vsub.s32 %v1794, %v2972
    %v2974 = vrot.slane %v2769, %v2973
    %v2975 = vlaneseq
    %v2976 = vshrl.u32 %v2975, 7
    %v2977 = vsub.s32 %v1794, %v2976
    %v2978 = vrot.slane %v2772, %v2977
    %v2979 = vlaneseq
    %v2980 = vshrl.u32 %v2979, 7
    %v2981 = vsub.s32 %v1794, %v2980
    %v2982 = vrot.slane %v2775, %v2981
    %v2983 = vlaneseq
    %v2984 = vshrl.u32 %v2983, 7
    %v2985 = vsub.s32 %v1794, %v2984
    %v2986 = vrot.slane %v2778, %v2985
    %v2987 = vlaneseq
    %v2988 = vshrl.u32 %v2987, 7
    %v2989 = vsub.s32 %v1794, %v2988
    %v2990 = vrot.slane %v2781, %v2989
    %v2991 = vlaneseq
    %v2992 = vshrl.u32 %v2991, 7
    %v2993 = vsub.s32 %v1794, %v2992
    %v2994 = vrot.slane %v2784, %v2993
    %v2995 = vlaneseq
    %v2996 = vshrl.u32 %v2995, 7
    %v2997 = vsub.s32 %v1794, %v2996
    %v2998 = vrot.slane %v2787, %v2997
    %v2999 = vlaneseq
    %v3000 = vshrl.u32 %v2999, 7
    %v3001 = vsub.s32 %v1794, %v3000
    %v3002 = vrot.slane %v2790, %v3001
    %v3003 = vlaneseq
    %v3004 = vshrl.u32 %v3003, 7
    %v3005 = vsub.s32 %v1794, %v3004
    %v3006 = vrot.slane %v2793, %v3005
    %v3007 = vlaneseq
    %v3008 = vshrl.u32 %v3007, 7
    %v3009 = vsub.s32 %v1794, %v3008
    %v3010 = vrot.slane %v2796, %v3009
    %v3011 = vlaneseq
    %v3012 = vshrl.u32 %v3011, 7
    %v3013 = vsub.s32 %v1794, %v3012
    %v3014 = vrot.slane %v2799, %v3013
    %v3015 = vlaneseq
    %v3016 = vshrl.u32 %v3015, 7
    %v3017 = vsub.s32 %v1794, %v3016
    %v3018 = vrot.slane %v2802, %v3017
    %v3019 = vlaneseq
    %v3020 = vshrl.u32 %v3019, 7
    %v3021 = vsub.s32 %v1794, %v3020
    %v3022 = vrot.slane %v2805, %v3021
    %v3023 = vlaneseq
    %v3024 = vshrl.u32 %v3023, 7
    %v3025 = vsub.s32 %v1794, %v3024
    %v3026 = vrot.slane %v2808, %v3025
    %v3027 = vlaneseq
    %v3028 = vshrl.u32 %v3027, 7
    %v3029 = vsub.s32 %v1794, %v3028
    %v3030 = vrot.slane %v2811, %v3029
    %v3031 = vlaneseq
    %v3032 = vshrl.u32 %v3031, 7
    %v3033 = vsub.s32 %v1794, %v3032
    %v3034 = vrot.slane %v2814, %v3033
    %v3035 = vlaneseq
    %v3036 = vshrl.u32 %v3035, 7
    %v3037 = vsub.s32 %v1794, %v3036
    %v3038 = vrot.slane %v2817, %v3037
    %v3039 = vlaneseq
    %v3040 = vshrl.u32 %v3039, 7
    %v3041 = vsub.s32 %v1794, %v3040
    %v3042 = vrot.slane %v2820, %v3041
    %v3043 = vlaneseq
    %v3044 = vshrl.u32 %v3043, 7
    %v3045 = vsub.s32 %v1794, %v3044
    %v3046 = vrot.slane %v2823, %v3045
    %v3047 = vlaneseq
    %v3048 = vshrl.u32 %v3047, 7
    %v3049 = vsub.s32 %v1794, %v3048
    %v3050 = vrot.slane %v2826, %v3049
    %v3051 = vlaneseq
    %v3052 = vshrl.u32 %v3051, 7
    %v3053 = vsub.s32 %v1794, %v3052
    %v3054 = vrot.slane %v2829, %v3053
    %v3055 = vlaneseq
    %v3056 = vshrl.u32 %v3055, 7
    %v3057 = vsub.s32 %v1794, %v3056
    %v3058 = vrot.slane %v2832, %v3057
    %v3059 = vlaneseq
    %v3060 = vshrl.u32 %v3059, 7
    %v3061 = vsub.s32 %v1794, %v3060
    %v3062 = vrot.slane %v2835, %v3061
    %v3063 = vlaneseq
    %v3064 = vshrl.u32 %v3063, 7
    %v3065 = vsub.s32 %v1794, %v3064
    %v3066 = vrot.slane %v2838, %v3065
    %v3067 = vlaneseq
    %v3068 = vshrl.u32 %v3067, 7
    %v3069 = vsub.s32 %v1794, %v3068
    %v3070 = vrot.slane %v2841, %v3069
    %v3071 = vlaneseq
    %v3072 = vshrl.u32 %v3071, 7
    %v3073 = vsub.s32 %v1794, %v3072
    %v3074 = vrot.slane %v2844, %v3073
    %v3075 = vlaneseq
    %v3076 = vshrl.u32 %v3075, 7
    %v3077 = vsub.s32 %v1794, %v3076
    %v3078 = vrot.slane %v2847, %v3077
    %v3079 = vlaneseq
    %v3080 = vshrl.u32 %v3079, 7
    %v3081 = vsub.s32 %v1794, %v3080
    %v3082 = vrot.slane %v2850, %v3081
    %v3083 = vlaneseq
    %v3084 = vshrl.u32 %v3083, 7
    %v3085 = vsub.s32 %v1794, %v3084
    %v3086 = vrot.slane %v2853, %v3085
    %v3087 = vlaneseq
    %v3088 = vshrl.u32 %v3087, 7
    %v3089 = vsub.s32 %v1794, %v3088
    %v3090 = vrot.slane %v2856, %v3089
    %v3091 = vlaneseq
    %v3092 = vshrl.u32 %v3091, 7
    %v3093 = vsub.s32 %v1794, %v3092
    %v3094 = vrot.slane %v2859, %v3093
    %v3095 = vlaneseq
    %v3096 = vshrl.u32 %v3095, 7
    %v3097 = vsub.s32 %v1794, %v3096
    %v3098 = vrot.slane %v2862, %v3097
    %v3099 = vlaneseq
    %v3100 = vshrl.u32 %v3099, 7
    %v3101 = vsub.s32 %v1794, %v3100
    %v3102 = vrot.slane %v2865, %v3101
    %v3103 = vlaneseq
    %v3104 = vshrl.u32 %v3103, 7
    %v3105 = vsub.s32 %v1794, %v3104
    %v3106 = vrot.slane %v2868, %v3105
    %v3107 = vlaneseq
    %v3108 = vshrl.u32 %v3107, 7
    %v3109 = vsub.s32 %v1794, %v3108
    %v3110 = vrot.slane %v2871, %v3109
    %v3111 = vlaneseq
    %v3112 = vshrl.u32 %v3111, 7
    %v3113 = vsub.s32 %v1794, %v3112
    %v3114 = vrot.slane %v2874, %v3113
    %v3115 = vlaneseq
    %v3116 = vshrl.u32 %v3115, 7
    %v3117 = vsub.s32 %v1794, %v3116
    %v3118 = vrot.slane %v2877, %v3117
    %v3119 = vlaneseq
    %v3120 = vshrl.u32 %v3119, 7
    %v3121 = vsub.s32 %v1794, %v3120
    %v3122 = vrot.slane %v2880, %v3121
    %v3123 = vlaneseq
    %v3124 = vshrl.u32 %v3123, 7
    %v3125 = vsub.s32 %v1794, %v3124
    %v3126 = vrot.slane %v2883, %v3125
    %v3127 = vlaneseq
    %v3128 = vshrl.u32 %v3127, 7
    %v3129 = vsub.s32 %v1794, %v3128
    %v3130 = vrot.slane %v2886, %v3129
    %v3131 = vlaneseq
    %v3132 = vshrl.u32 %v3131, 7
    %v3133 = vsub.s32 %v1794, %v3132
    %v3134 = vrot.slane %v2889, %v3133
    %v3135 = vlaneseq
    %v3136 = vshrl.u32 %v3135, 7
    %v3137 = vsub.s32 %v1794, %v3136
    %v3138 = vrot.slane %v2892, %v3137
    %v3139 = vlaneseq
    %v3140 = vshrl.u32 %v3139, 7
    %v3141 = vsub.s32 %v1794, %v3140
    %v3142 = vrot.slane %v2895, %v3141
    %v3143 = vlaneseq
    %v3144 = vshrl.u32 %v3143, 7
    %v3145 = vsub.s32 %v1794, %v3144
    %v3146 = vrot.slane %v2898, %v3145
    %v3147 = vlaneseq
    %v3148 = vshrl.u32 %v3147, 7
    %v3149 = vsub.s32 %v1794, %v3148
    %v3150 = vrot.slane %v2901, %v3149
    %v3151 = vlaneseq
    %v3152 = vshrl.u32 %v3151, 7
    %v3153 = vsub.s32 %v1794, %v3152
    %v3154 = vrot.slane %v2904, %v3153
    %v3155 = vlaneseq
    %v3156 = vshrl.u32 %v3155, 7
    %v3157 = vsub.s32 %v1794, %v3156
    %v3158 = vrot.slane %v2907, %v3157
    %v3159 = vlaneseq
    %v3160 = vshrl.u32 %v3159, 7
    %v3161 = vsub.s32 %v1794, %v3160
    %v3162 = vrot.slane %v2910, %v3161
    %v3163 = vlaneseq
    %v3164 = vshrl.u32 %v3163, 7
    %v3165 = vsub.s32 %v1794, %v3164
    %v3166 = vrot.slane %v2913, %v3165
    %v3167 = vlaneseq
    %v3168 = vshrl.u32 %v3167, 7
    %v3169 = vsub.s32 %v1794, %v3168
    %v3170 = vrot.slane %v2916, %v3169
    %v3171 = vlaneseq
    %v3172 = vshrl.u32 %v3171, 7
    %v3173 = vsub.s32 %v1794, %v3172
    %v3174 = vrot.slane %v2919, %v3173
    %v3175 = vlaneseq
    %v3176 = vshrl.u32 %v3175, 7
    %v3177 = vsub.s32 %v1794, %v3176
    %v3178 = vrot.slane %v2922, %v3177
    %v3179 = vsel %vm2051, %v2930, %v2926
    %v3180 = vsel %vm2053, %v2934, %v3179
    %v3181 = vsel %vm2055, %v2938, %v3180
    %v3182 = vsel %vm2057, %v2942, %v3181
    %v3183 = vsel %vm2059, %v2946, %v3182
    %v3184 = vsel %vm2061, %v2950, %v3183
    %v3185 = vsel %vm2063, %v2954, %v3184
    %v3186 = vsel %vm2051, %v2962, %v2958
    %v3187 = vsel %vm2053, %v2966, %v3186
    %v3188 = vsel %vm2055, %v2970, %v3187
    %v3189 = vsel %vm2057, %v2974, %v3188
    %v3190 = vsel %vm2059, %v2978, %v3189
    %v3191 = vsel %vm2061, %v2982, %v3190
    %v3192 = vsel %vm2063, %v2986, %v3191
    %v3193 = vsel %vm2051, %v2994, %v2990
    %v3194 = vsel %vm2053, %v2998, %v3193
    %v3195 = vsel %vm2055, %v3002, %v3194
    %v3196 = vsel %vm2057, %v3006, %v3195
    %v3197 = vsel %vm2059, %v3010, %v3196
    %v3198 = vsel %vm2061, %v3014, %v3197
    %v3199 = vsel %vm2063, %v3018, %v3198
    %v3200 = vsel %vm2051, %v3026, %v3022
    %v3201 = vsel %vm2053, %v3030, %v3200
    %v3202 = vsel %vm2055, %v3034, %v3201
    %v3203 = vsel %vm2057, %v3038, %v3202
    %v3204 = vsel %vm2059, %v3042, %v3203
    %v3205 = vsel %vm2061, %v3046, %v3204
    %v3206 = vsel %vm2063, %v3050, %v3205
    %v3207 = vsel %vm2051, %v3058, %v3054
    %v3208 = vsel %vm2053, %v3062, %v3207
    %v3209 = vsel %vm2055, %v3066, %v3208
    %v3210 = vsel %vm2057, %v3070, %v3209
    %v3211 = vsel %vm2059, %v3074, %v3210
    %v3212 = vsel %vm2061, %v3078, %v3211
    %v3213 = vsel %vm2063, %v3082, %v3212
    %v3214 = vsel %vm2051, %v3090, %v3086
    %v3215 = vsel %vm2053, %v3094, %v3214
    %v3216 = vsel %vm2055, %v3098, %v3215
    %v3217 = vsel %vm2057, %v3102, %v3216
    %v3218 = vsel %vm2059, %v3106, %v3217
    %v3219 = vsel %vm2061, %v3110, %v3218
    %v3220 = vsel %vm2063, %v3114, %v3219
    %v3221 = vsel %vm2051, %v3122, %v3118
    %v3222 = vsel %vm2053, %v3126, %v3221
    %v3223 = vsel %vm2055, %v3130, %v3222
    %v3224 = vsel %vm2057, %v3134, %v3223
    %v3225 = vsel %vm2059, %v3138, %v3224
    %v3226 = vsel %vm2061, %v3142, %v3225
    %v3227 = vsel %vm2063, %v3146, %v3226
    %v3228 = vsel %vm2051, %v3154, %v3150
    %v3229 = vsel %vm2053, %v3158, %v3228
    %v3230 = vsel %vm2055, %v3162, %v3229
    %v3231 = vsel %vm2057, %v3166, %v3230
    %v3232 = vsel %vm2059, %v3170, %v3231
    %v3233 = vsel %vm2061, %v3174, %v3232
    %v3234 = vsel %vm2063, %v3178, %v3233
    %v3243 = vsel %vm2122, %v3185, 0.0
    %3244 = vadd.xlane.f32.xlu0 %v3243
    %v3245 = vpop.xlane.xlu0 %3244
    %v3246 = vsel %vm2122, %v3192, 0.0
    %3247 = vadd.xlane.f32.xlu0 %v3246
    %v3248 = vpop.xlane.xlu0 %3247
    %v3249 = vsel %vm2122, %v3199, 0.0
    %3250 = vadd.xlane.f32.xlu0 %v3249
    %v3251 = vpop.xlane.xlu0 %3250
    %v3252 = vsel %vm2122, %v3206, 0.0
    %3253 = vadd.xlane.f32.xlu0 %v3252
    %v3254 = vpop.xlane.xlu0 %3253
    %v3255 = vsel %vm2122, %v3213, 0.0
    %3256 = vadd.xlane.f32.xlu0 %v3255
    %v3257 = vpop.xlane.xlu0 %3256
    %v3258 = vsel %vm2122, %v3220, 0.0
    %3259 = vadd.xlane.f32.xlu0 %v3258
    %v3260 = vpop.xlane.xlu0 %3259
    %v3261 = vsel %vm2122, %v3227, 0.0
    %3262 = vadd.xlane.f32.xlu0 %v3261
    %v3263 = vpop.xlane.xlu0 %3262
    %v3264 = vsel %vm2122, %v3234, 0.0
    %3265 = vadd.xlane.f32.xlu0 %v3264
    %v3266 = vpop.xlane.xlu0 %3265
    %v3267 = vrcp.pop %v3245
    %v3268 = vrcp.pop %v3248
    %v3269 = vrcp.pop %v3251
    %v3270 = vrcp.pop %v3254
    %v3271 = vrcp.pop %v3257
    %v3272 = vrcp.pop %v3260
    %v3273 = vrcp.pop %v3263
    %v3274 = vrcp.pop %v3266
    %v3283 = vlaneseq
    %v3284 = vshrl.u32 %v3283, 7
    %v3285 = vsub.s32 0, %v3284
    %v3286 = vrot.slane %v3267, %v3285
    %v3287 = vlaneseq
    %v3288 = vshrl.u32 %v3287, 7
    %v3289 = vsub.s32 1, %v3288
    %v3290 = vrot.slane %v3267, %v3289
    %v3291 = vlaneseq
    %v3292 = vshrl.u32 %v3291, 7
    %v3293 = vsub.s32 2, %v3292
    %v3294 = vrot.slane %v3267, %v3293
    %v3295 = vlaneseq
    %v3296 = vshrl.u32 %v3295, 7
    %v3297 = vsub.s32 3, %v3296
    %v3298 = vrot.slane %v3267, %v3297
    %v3299 = vlaneseq
    %v3300 = vshrl.u32 %v3299, 7
    %v3301 = vsub.s32 4, %v3300
    %v3302 = vrot.slane %v3267, %v3301
    %v3303 = vlaneseq
    %v3304 = vshrl.u32 %v3303, 7
    %v3305 = vsub.s32 5, %v3304
    %v3306 = vrot.slane %v3267, %v3305
    %v3307 = vlaneseq
    %v3308 = vshrl.u32 %v3307, 7
    %v3309 = vsub.s32 6, %v3308
    %v3310 = vrot.slane %v3267, %v3309
    %v3311 = vlaneseq
    %v3312 = vshrl.u32 %v3311, 7
    %v3313 = vsub.s32 7, %v3312
    %v3314 = vrot.slane %v3267, %v3313
    %v3315 = vlaneseq
    %v3316 = vshrl.u32 %v3315, 7
    %v3317 = vsub.s32 0, %v3316
    %v3318 = vrot.slane %v3268, %v3317
    %v3319 = vlaneseq
    %v3320 = vshrl.u32 %v3319, 7
    %v3321 = vsub.s32 1, %v3320
    %v3322 = vrot.slane %v3268, %v3321
    %v3323 = vlaneseq
    %v3324 = vshrl.u32 %v3323, 7
    %v3325 = vsub.s32 2, %v3324
    %v3326 = vrot.slane %v3268, %v3325
    %v3327 = vlaneseq
    %v3328 = vshrl.u32 %v3327, 7
    %v3329 = vsub.s32 3, %v3328
    %v3330 = vrot.slane %v3268, %v3329
    %v3331 = vlaneseq
    %v3332 = vshrl.u32 %v3331, 7
    %v3333 = vsub.s32 4, %v3332
    %v3334 = vrot.slane %v3268, %v3333
    %v3335 = vlaneseq
    %v3336 = vshrl.u32 %v3335, 7
    %v3337 = vsub.s32 5, %v3336
    %v3338 = vrot.slane %v3268, %v3337
    %v3339 = vlaneseq
    %v3340 = vshrl.u32 %v3339, 7
    %v3341 = vsub.s32 6, %v3340
    %v3342 = vrot.slane %v3268, %v3341
    %v3343 = vlaneseq
    %v3344 = vshrl.u32 %v3343, 7
    %v3345 = vsub.s32 7, %v3344
    %v3346 = vrot.slane %v3268, %v3345
    %v3347 = vlaneseq
    %v3348 = vshrl.u32 %v3347, 7
    %v3349 = vsub.s32 0, %v3348
    %v3350 = vrot.slane %v3269, %v3349
    %v3351 = vlaneseq
    %v3352 = vshrl.u32 %v3351, 7
    %v3353 = vsub.s32 1, %v3352
    %v3354 = vrot.slane %v3269, %v3353
    %v3355 = vlaneseq
    %v3356 = vshrl.u32 %v3355, 7
    %v3357 = vsub.s32 2, %v3356
    %v3358 = vrot.slane %v3269, %v3357
    %v3359 = vlaneseq
    %v3360 = vshrl.u32 %v3359, 7
    %v3361 = vsub.s32 3, %v3360
    %v3362 = vrot.slane %v3269, %v3361
    %v3363 = vlaneseq
    %v3364 = vshrl.u32 %v3363, 7
    %v3365 = vsub.s32 4, %v3364
    %v3366 = vrot.slane %v3269, %v3365
    %v3367 = vlaneseq
    %v3368 = vshrl.u32 %v3367, 7
    %v3369 = vsub.s32 5, %v3368
    %v3370 = vrot.slane %v3269, %v3369
    %v3371 = vlaneseq
    %v3372 = vshrl.u32 %v3371, 7
    %v3373 = vsub.s32 6, %v3372
    %v3374 = vrot.slane %v3269, %v3373
    %v3375 = vlaneseq
    %v3376 = vshrl.u32 %v3375, 7
    %v3377 = vsub.s32 7, %v3376
    %v3378 = vrot.slane %v3269, %v3377
    %v3379 = vlaneseq
    %v3380 = vshrl.u32 %v3379, 7
    %v3381 = vsub.s32 0, %v3380
    %v3382 = vrot.slane %v3270, %v3381
    %v3383 = vlaneseq
    %v3384 = vshrl.u32 %v3383, 7
    %v3385 = vsub.s32 1, %v3384
    %v3386 = vrot.slane %v3270, %v3385
    %v3387 = vlaneseq
    %v3388 = vshrl.u32 %v3387, 7
    %v3389 = vsub.s32 2, %v3388
    %v3390 = vrot.slane %v3270, %v3389
    %v3391 = vlaneseq
    %v3392 = vshrl.u32 %v3391, 7
    %v3393 = vsub.s32 3, %v3392
    %v3394 = vrot.slane %v3270, %v3393
    %v3395 = vlaneseq
    %v3396 = vshrl.u32 %v3395, 7
    %v3397 = vsub.s32 4, %v3396
    %v3398 = vrot.slane %v3270, %v3397
    %v3399 = vlaneseq
    %v3400 = vshrl.u32 %v3399, 7
    %v3401 = vsub.s32 5, %v3400
    %v3402 = vrot.slane %v3270, %v3401
    %v3403 = vlaneseq
    %v3404 = vshrl.u32 %v3403, 7
    %v3405 = vsub.s32 6, %v3404
    %v3406 = vrot.slane %v3270, %v3405
    %v3407 = vlaneseq
    %v3408 = vshrl.u32 %v3407, 7
    %v3409 = vsub.s32 7, %v3408
    %v3410 = vrot.slane %v3270, %v3409
    %v3411 = vlaneseq
    %v3412 = vshrl.u32 %v3411, 7
    %v3413 = vsub.s32 0, %v3412
    %v3414 = vrot.slane %v3271, %v3413
    %v3415 = vlaneseq
    %v3416 = vshrl.u32 %v3415, 7
    %v3417 = vsub.s32 1, %v3416
    %v3418 = vrot.slane %v3271, %v3417
    %v3419 = vlaneseq
    %v3420 = vshrl.u32 %v3419, 7
    %v3421 = vsub.s32 2, %v3420
    %v3422 = vrot.slane %v3271, %v3421
    %v3423 = vlaneseq
    %v3424 = vshrl.u32 %v3423, 7
    %v3425 = vsub.s32 3, %v3424
    %v3426 = vrot.slane %v3271, %v3425
    %v3427 = vlaneseq
    %v3428 = vshrl.u32 %v3427, 7
    %v3429 = vsub.s32 4, %v3428
    %v3430 = vrot.slane %v3271, %v3429
    %v3431 = vlaneseq
    %v3432 = vshrl.u32 %v3431, 7
    %v3433 = vsub.s32 5, %v3432
    %v3434 = vrot.slane %v3271, %v3433
    %v3435 = vlaneseq
    %v3436 = vshrl.u32 %v3435, 7
    %v3437 = vsub.s32 6, %v3436
    %v3438 = vrot.slane %v3271, %v3437
    %v3439 = vlaneseq
    %v3440 = vshrl.u32 %v3439, 7
    %v3441 = vsub.s32 7, %v3440
    %v3442 = vrot.slane %v3271, %v3441
    %v3443 = vlaneseq
    %v3444 = vshrl.u32 %v3443, 7
    %v3445 = vsub.s32 0, %v3444
    %v3446 = vrot.slane %v3272, %v3445
    %v3447 = vlaneseq
    %v3448 = vshrl.u32 %v3447, 7
    %v3449 = vsub.s32 1, %v3448
    %v3450 = vrot.slane %v3272, %v3449
    %v3451 = vlaneseq
    %v3452 = vshrl.u32 %v3451, 7
    %v3453 = vsub.s32 2, %v3452
    %v3454 = vrot.slane %v3272, %v3453
    %v3455 = vlaneseq
    %v3456 = vshrl.u32 %v3455, 7
    %v3457 = vsub.s32 3, %v3456
    %v3458 = vrot.slane %v3272, %v3457
    %v3459 = vlaneseq
    %v3460 = vshrl.u32 %v3459, 7
    %v3461 = vsub.s32 4, %v3460
    %v3462 = vrot.slane %v3272, %v3461
    %v3463 = vlaneseq
    %v3464 = vshrl.u32 %v3463, 7
    %v3465 = vsub.s32 5, %v3464
    %v3466 = vrot.slane %v3272, %v3465
    %v3467 = vlaneseq
    %v3468 = vshrl.u32 %v3467, 7
    %v3469 = vsub.s32 6, %v3468
    %v3470 = vrot.slane %v3272, %v3469
    %v3471 = vlaneseq
    %v3472 = vshrl.u32 %v3471, 7
    %v3473 = vsub.s32 7, %v3472
    %v3474 = vrot.slane %v3272, %v3473
    %v3475 = vlaneseq
    %v3476 = vshrl.u32 %v3475, 7
    %v3477 = vsub.s32 0, %v3476
    %v3478 = vrot.slane %v3273, %v3477
    %v3479 = vlaneseq
    %v3480 = vshrl.u32 %v3479, 7
    %v3481 = vsub.s32 1, %v3480
    %v3482 = vrot.slane %v3273, %v3481
    %v3483 = vlaneseq
    %v3484 = vshrl.u32 %v3483, 7
    %v3485 = vsub.s32 2, %v3484
    %v3486 = vrot.slane %v3273, %v3485
    %v3487 = vlaneseq
    %v3488 = vshrl.u32 %v3487, 7
    %v3489 = vsub.s32 3, %v3488
    %v3490 = vrot.slane %v3273, %v3489
    %v3491 = vlaneseq
    %v3492 = vshrl.u32 %v3491, 7
    %v3493 = vsub.s32 4, %v3492
    %v3494 = vrot.slane %v3273, %v3493
    %v3495 = vlaneseq
    %v3496 = vshrl.u32 %v3495, 7
    %v3497 = vsub.s32 5, %v3496
    %v3498 = vrot.slane %v3273, %v3497
    %v3499 = vlaneseq
    %v3500 = vshrl.u32 %v3499, 7
    %v3501 = vsub.s32 6, %v3500
    %v3502 = vrot.slane %v3273, %v3501
    %v3503 = vlaneseq
    %v3504 = vshrl.u32 %v3503, 7
    %v3505 = vsub.s32 7, %v3504
    %v3506 = vrot.slane %v3273, %v3505
    %v3507 = vlaneseq
    %v3508 = vshrl.u32 %v3507, 7
    %v3509 = vsub.s32 0, %v3508
    %v3510 = vrot.slane %v3274, %v3509
    %v3511 = vlaneseq
    %v3512 = vshrl.u32 %v3511, 7
    %v3513 = vsub.s32 1, %v3512
    %v3514 = vrot.slane %v3274, %v3513
    %v3515 = vlaneseq
    %v3516 = vshrl.u32 %v3515, 7
    %v3517 = vsub.s32 2, %v3516
    %v3518 = vrot.slane %v3274, %v3517
    %v3519 = vlaneseq
    %v3520 = vshrl.u32 %v3519, 7
    %v3521 = vsub.s32 3, %v3520
    %v3522 = vrot.slane %v3274, %v3521
    %v3523 = vlaneseq
    %v3524 = vshrl.u32 %v3523, 7
    %v3525 = vsub.s32 4, %v3524
    %v3526 = vrot.slane %v3274, %v3525
    %v3527 = vlaneseq
    %v3528 = vshrl.u32 %v3527, 7
    %v3529 = vsub.s32 5, %v3528
    %v3530 = vrot.slane %v3274, %v3529
    %v3531 = vlaneseq
    %v3532 = vshrl.u32 %v3531, 7
    %v3533 = vsub.s32 6, %v3532
    %v3534 = vrot.slane %v3274, %v3533
    %v3535 = vlaneseq
    %v3536 = vshrl.u32 %v3535, 7
    %v3537 = vsub.s32 7, %v3536
    %v3538 = vrot.slane %v3274, %v3537
    %v3603 = vmul.f32 %v2540, %v3286
    %v3604 = vmul.f32 %v2542, %v3290
    %v3605 = vmul.f32 %v2544, %v3294
    %v3606 = vmul.f32 %v2546, %v3298
    %v3607 = vmul.f32 %v2548, %v3302
    %v3608 = vmul.f32 %v2550, %v3306
    %v3609 = vmul.f32 %v2552, %v3310
    %v3610 = vmul.f32 %v2554, %v3314
    %v3611 = vmul.f32 %v2556, %v3318
    %v3612 = vmul.f32 %v2558, %v3322
    %v3613 = vmul.f32 %v2560, %v3326
    %v3614 = vmul.f32 %v2562, %v3330
    %v3615 = vmul.f32 %v2564, %v3334
    %v3616 = vmul.f32 %v2566, %v3338
    %v3617 = vmul.f32 %v2568, %v3342
    %v3618 = vmul.f32 %v2570, %v3346
    %v3619 = vmul.f32 %v2572, %v3350
    %v3620 = vmul.f32 %v2574, %v3354
    %v3621 = vmul.f32 %v2576, %v3358
    %v3622 = vmul.f32 %v2578, %v3362
    %v3623 = vmul.f32 %v2580, %v3366
    %v3624 = vmul.f32 %v2582, %v3370
    %v3625 = vmul.f32 %v2584, %v3374
    %v3626 = vmul.f32 %v2586, %v3378
    %v3627 = vmul.f32 %v2588, %v3382
    %v3628 = vmul.f32 %v2590, %v3386
    %v3629 = vmul.f32 %v2592, %v3390
    %v3630 = vmul.f32 %v2594, %v3394
    %v3631 = vmul.f32 %v2596, %v3398
    %v3632 = vmul.f32 %v2598, %v3402
    %v3633 = vmul.f32 %v2600, %v3406
    %v3634 = vmul.f32 %v2602, %v3410
    %v3635 = vmul.f32 %v2604, %v3414
    %v3636 = vmul.f32 %v2606, %v3418
    %v3637 = vmul.f32 %v2608, %v3422
    %v3638 = vmul.f32 %v2610, %v3426
    %v3639 = vmul.f32 %v2612, %v3430
    %v3640 = vmul.f32 %v2614, %v3434
    %v3641 = vmul.f32 %v2616, %v3438
    %v3642 = vmul.f32 %v2618, %v3442
    %v3643 = vmul.f32 %v2620, %v3446
    %v3644 = vmul.f32 %v2622, %v3450
    %v3645 = vmul.f32 %v2624, %v3454
    %v3646 = vmul.f32 %v2626, %v3458
    %v3647 = vmul.f32 %v2628, %v3462
    %v3648 = vmul.f32 %v2630, %v3466
    %v3649 = vmul.f32 %v2632, %v3470
    %v3650 = vmul.f32 %v2634, %v3474
    %v3651 = vmul.f32 %v2636, %v3478
    %v3652 = vmul.f32 %v2638, %v3482
    %v3653 = vmul.f32 %v2640, %v3486
    %v3654 = vmul.f32 %v2642, %v3490
    %v3655 = vmul.f32 %v2644, %v3494
    %v3656 = vmul.f32 %v2646, %v3498
    %v3657 = vmul.f32 %v2648, %v3502
    %v3658 = vmul.f32 %v2650, %v3506
    %v3659 = vmul.f32 %v2652, %v3510
    %v3660 = vmul.f32 %v2654, %v3514
    %v3661 = vmul.f32 %v2656, %v3518
    %v3662 = vmul.f32 %v2658, %v3522
    %v3663 = vmul.f32 %v2660, %v3526
    %v3664 = vmul.f32 %v2662, %v3530
    %v3665 = vmul.f32 %v2664, %v3534
    %v3666 = vmul.f32 %v2666, %v3538
    %v3667 = vpack.c.bf16 %v3603, %v3603
    %v3668 = vpack.c.bf16 %v3604, %v3604
    %v3669 = vpack.c.bf16 %v3605, %v3605
    %v3670 = vpack.c.bf16 %v3606, %v3606
    %v3671 = vpack.c.bf16 %v3607, %v3607
    %v3672 = vpack.c.bf16 %v3608, %v3608
    %v3673 = vpack.c.bf16 %v3609, %v3609
    %v3674 = vpack.c.bf16 %v3610, %v3610
    %v3675 = vpack.c.bf16 %v3611, %v3611
    %v3676 = vpack.c.bf16 %v3612, %v3612
    %v3677 = vpack.c.bf16 %v3613, %v3613
    %v3678 = vpack.c.bf16 %v3614, %v3614
    %v3679 = vpack.c.bf16 %v3615, %v3615
    %v3680 = vpack.c.bf16 %v3616, %v3616
    %v3681 = vpack.c.bf16 %v3617, %v3617
    %v3682 = vpack.c.bf16 %v3618, %v3618
    %v3683 = vpack.c.bf16 %v3619, %v3619
    %v3684 = vpack.c.bf16 %v3620, %v3620
    %v3685 = vpack.c.bf16 %v3621, %v3621
    %v3686 = vpack.c.bf16 %v3622, %v3622
    %v3687 = vpack.c.bf16 %v3623, %v3623
    %v3688 = vpack.c.bf16 %v3624, %v3624
    %v3689 = vpack.c.bf16 %v3625, %v3625
    %v3690 = vpack.c.bf16 %v3626, %v3626
    %v3691 = vpack.c.bf16 %v3627, %v3627
    %v3692 = vpack.c.bf16 %v3628, %v3628
    %v3693 = vpack.c.bf16 %v3629, %v3629
    %v3694 = vpack.c.bf16 %v3630, %v3630
    %v3695 = vpack.c.bf16 %v3631, %v3631
    %v3696 = vpack.c.bf16 %v3632, %v3632
    %v3697 = vpack.c.bf16 %v3633, %v3633
    %v3698 = vpack.c.bf16 %v3634, %v3634
    %v3699 = vpack.c.bf16 %v3635, %v3635
    %v3700 = vpack.c.bf16 %v3636, %v3636
    %v3701 = vpack.c.bf16 %v3637, %v3637
    %v3702 = vpack.c.bf16 %v3638, %v3638
    %v3703 = vpack.c.bf16 %v3639, %v3639
    %v3704 = vpack.c.bf16 %v3640, %v3640
    %v3705 = vpack.c.bf16 %v3641, %v3641
    %v3706 = vpack.c.bf16 %v3642, %v3642
    %v3707 = vpack.c.bf16 %v3643, %v3643
    %v3708 = vpack.c.bf16 %v3644, %v3644
    %v3709 = vpack.c.bf16 %v3645, %v3645
    %v3710 = vpack.c.bf16 %v3646, %v3646
    %v3711 = vpack.c.bf16 %v3647, %v3647
    %v3712 = vpack.c.bf16 %v3648, %v3648
    %v3713 = vpack.c.bf16 %v3649, %v3649
    %v3714 = vpack.c.bf16 %v3650, %v3650
    %v3715 = vpack.c.bf16 %v3651, %v3651
    %v3716 = vpack.c.bf16 %v3652, %v3652
    %v3717 = vpack.c.bf16 %v3653, %v3653
    %v3718 = vpack.c.bf16 %v3654, %v3654
    %v3719 = vpack.c.bf16 %v3655, %v3655
    %v3720 = vpack.c.bf16 %v3656, %v3656
    %v3721 = vpack.c.bf16 %v3657, %v3657
    %v3722 = vpack.c.bf16 %v3658, %v3658
    %v3723 = vpack.c.bf16 %v3659, %v3659
    %v3724 = vpack.c.bf16 %v3660, %v3660
    %v3725 = vpack.c.bf16 %v3661, %v3661
    %v3726 = vpack.c.bf16 %v3662, %v3662
    %v3727 = vpack.c.bf16 %v3663, %v3663
    %v3728 = vpack.c.bf16 %v3664, %v3664
    %v3729 = vpack.c.bf16 %v3665, %v3665
    %v3730 = vpack.c.bf16 %v3666, %v3666
    %v3747 = vunpack.c.l.b16 %v3667
    %v3748 = vunpack.c.l.b16 %v3668
    %v3749 = vunpack.c.l.b16 %v3669
    %v3750 = vunpack.c.l.b16 %v3670
    %v3751 = vunpack.c.l.b16 %v3671
    %v3752 = vunpack.c.l.b16 %v3672
    %v3753 = vunpack.c.l.b16 %v3673
    %v3754 = vunpack.c.l.b16 %v3674
    %v3755 = vunpack.c.l.b16 %v3675
    %v3756 = vunpack.c.l.b16 %v3676
    %v3757 = vunpack.c.l.b16 %v3677
    %v3758 = vunpack.c.l.b16 %v3678
    %v3759 = vunpack.c.l.b16 %v3679
    %v3760 = vunpack.c.l.b16 %v3680
    %v3761 = vunpack.c.l.b16 %v3681
    %v3762 = vunpack.c.l.b16 %v3682
    %3763 = vset.pattern.permute.xlu0 0
    %3764 = vperm.xlu0 %3763, %v3747
    %v3765 = vpop.permute.xlu0 %3764
    %3766 = vset.pattern.permute.xlu0 0
    %3767 = vperm.xlu0 %3766, %v3748
    %v3768 = vpop.permute.xlu0 %3767
    %3769 = vset.pattern.permute.xlu0 0
    %3770 = vperm.xlu0 %3769, %v3749
    %v3771 = vpop.permute.xlu0 %3770
    %3772 = vset.pattern.permute.xlu0 0
    %3773 = vperm.xlu0 %3772, %v3750
    %v3774 = vpop.permute.xlu0 %3773
    %3775 = vset.pattern.permute.xlu0 0
    %3776 = vperm.xlu0 %3775, %v3751
    %v3777 = vpop.permute.xlu0 %3776
    %3778 = vset.pattern.permute.xlu0 0
    %3779 = vperm.xlu0 %3778, %v3752
    %v3780 = vpop.permute.xlu0 %3779
    %3781 = vset.pattern.permute.xlu0 0
    %3782 = vperm.xlu0 %3781, %v3753
    %v3783 = vpop.permute.xlu0 %3782
    %3784 = vset.pattern.permute.xlu0 0
    %3785 = vperm.xlu0 %3784, %v3754
    %v3786 = vpop.permute.xlu0 %3785
    %3787 = vset.pattern.permute.xlu0 0
    %3788 = vperm.xlu0 %3787, %v3755
    %v3789 = vpop.permute.xlu0 %3788
    %3790 = vset.pattern.permute.xlu0 0
    %3791 = vperm.xlu0 %3790, %v3756
    %v3792 = vpop.permute.xlu0 %3791
    %3793 = vset.pattern.permute.xlu0 0
    %3794 = vperm.xlu0 %3793, %v3757
    %v3795 = vpop.permute.xlu0 %3794
    %3796 = vset.pattern.permute.xlu0 0
    %3797 = vperm.xlu0 %3796, %v3758
    %v3798 = vpop.permute.xlu0 %3797
    %3799 = vset.pattern.permute.xlu0 0
    %3800 = vperm.xlu0 %3799, %v3759
    %v3801 = vpop.permute.xlu0 %3800
    %3802 = vset.pattern.permute.xlu0 0
    %3803 = vperm.xlu0 %3802, %v3760
    %v3804 = vpop.permute.xlu0 %3803
    %3805 = vset.pattern.permute.xlu0 0
    %3806 = vperm.xlu0 %3805, %v3761
    %v3807 = vpop.permute.xlu0 %3806
    %3808 = vset.pattern.permute.xlu0 0
    %3809 = vperm.xlu0 %3808, %v3762
    %v3810 = vpop.permute.xlu0 %3809
    %v3811 = vlaneseq
    %v3812 = vshrl.u32 %v3811, 7
    %v3813 = vsub.s32 %v1794, %v3812
    %v3814 = vrot.slane %v3765, %v3813
    %v3815 = vlaneseq
    %v3816 = vshrl.u32 %v3815, 7
    %v3817 = vsub.s32 %v1794, %v3816
    %v3818 = vrot.slane %v3768, %v3817
    %v3819 = vlaneseq
    %v3820 = vshrl.u32 %v3819, 7
    %v3821 = vsub.s32 %v1794, %v3820
    %v3822 = vrot.slane %v3771, %v3821
    %v3823 = vlaneseq
    %v3824 = vshrl.u32 %v3823, 7
    %v3825 = vsub.s32 %v1794, %v3824
    %v3826 = vrot.slane %v3774, %v3825
    %v3827 = vlaneseq
    %v3828 = vshrl.u32 %v3827, 7
    %v3829 = vsub.s32 %v1794, %v3828
    %v3830 = vrot.slane %v3777, %v3829
    %v3831 = vlaneseq
    %v3832 = vshrl.u32 %v3831, 7
    %v3833 = vsub.s32 %v1794, %v3832
    %v3834 = vrot.slane %v3780, %v3833
    %v3835 = vlaneseq
    %v3836 = vshrl.u32 %v3835, 7
    %v3837 = vsub.s32 %v1794, %v3836
    %v3838 = vrot.slane %v3783, %v3837
    %v3839 = vlaneseq
    %v3840 = vshrl.u32 %v3839, 7
    %v3841 = vsub.s32 %v1794, %v3840
    %v3842 = vrot.slane %v3786, %v3841
    %v3843 = vlaneseq
    %v3844 = vshrl.u32 %v3843, 7
    %v3845 = vsub.s32 %v1794, %v3844
    %v3846 = vrot.slane %v3789, %v3845
    %v3847 = vlaneseq
    %v3848 = vshrl.u32 %v3847, 7
    %v3849 = vsub.s32 %v1794, %v3848
    %v3850 = vrot.slane %v3792, %v3849
    %v3851 = vlaneseq
    %v3852 = vshrl.u32 %v3851, 7
    %v3853 = vsub.s32 %v1794, %v3852
    %v3854 = vrot.slane %v3795, %v3853
    %v3855 = vlaneseq
    %v3856 = vshrl.u32 %v3855, 7
    %v3857 = vsub.s32 %v1794, %v3856
    %v3858 = vrot.slane %v3798, %v3857
    %v3859 = vlaneseq
    %v3860 = vshrl.u32 %v3859, 7
    %v3861 = vsub.s32 %v1794, %v3860
    %v3862 = vrot.slane %v3801, %v3861
    %v3863 = vlaneseq
    %v3864 = vshrl.u32 %v3863, 7
    %v3865 = vsub.s32 %v1794, %v3864
    %v3866 = vrot.slane %v3804, %v3865
    %v3867 = vlaneseq
    %v3868 = vshrl.u32 %v3867, 7
    %v3869 = vsub.s32 %v1794, %v3868
    %v3870 = vrot.slane %v3807, %v3869
    %v3871 = vlaneseq
    %v3872 = vshrl.u32 %v3871, 7
    %v3873 = vsub.s32 %v1794, %v3872
    %v3874 = vrot.slane %v3810, %v3873
    %v3875 = vsel %vm2051, %v3818, %v3814
    %v3876 = vsel %vm2053, %v3822, %v3875
    %v3877 = vsel %vm2055, %v3826, %v3876
    %v3878 = vsel %vm2057, %v3830, %v3877
    %v3879 = vsel %vm2059, %v3834, %v3878
    %v3880 = vsel %vm2061, %v3838, %v3879
    %v3881 = vsel %vm2063, %v3842, %v3880
    %v3882 = vsel %vm2051, %v3850, %v3846
    %v3883 = vsel %vm2053, %v3854, %v3882
    %v3884 = vsel %vm2055, %v3858, %v3883
    %v3885 = vsel %vm2057, %v3862, %v3884
    %v3886 = vsel %vm2059, %v3866, %v3885
    %v3887 = vsel %vm2061, %v3870, %v3886
    %v3888 = vsel %vm2063, %v3874, %v3887
    %v3889 = vpack.c.b16 %v3888, %v3881
    %v3891 = vsel %vm2122, %v3889, 0
    %vm3893 = vcmask 1043456
    %v3895 = vsel %vm3893, %v38, 0
    %3897 = vmatprep.subr.bf16.mxu0 0
    %3898 = vmatpush1.bf16.msra.mxu0 %v3895
    %3899 = vmatprep.subr.bf16.mxu0 0
    %3900 = vmatpush1.bf16.msra.mxu0 0
    %3901 = vmatprep.subr.bf16.mxu0 0
    %3902 = vmatpush1.bf16.msra.mxu0 0
    %3903 = vmatprep.subr.bf16.mxu0 0
    %3904 = vmatpush1.bf16.msra.mxu0 0
    %3905 = vmatprep.subr.bf16.mxu0 0
    %3906 = vmatpush1.bf16.msra.mxu0 0
    %3907 = vmatprep.subr.bf16.mxu0 0
    %3908 = vmatpush1.bf16.msra.mxu0 0
    %3909 = vmatprep.subr.bf16.mxu0 0
    %3910 = vmatpush1.bf16.msra.mxu0 0
    %3911 = vmatprep.subr.bf16.mxu0 0
    %3912 = vmatpush1.bf16.msra.mxu0 0
    %3913 = vmatprep.subr.bf16.mxu0 0
    %3914 = vmatpush1.bf16.msra.mxu0 0
    %3915 = vmatprep.subr.bf16.mxu0 0
    %3916 = vmatpush1.bf16.msra.mxu0 0
    %3917 = vmatprep.subr.bf16.mxu0 0
    %3918 = vmatpush1.bf16.msra.mxu0 0
    %3919 = vmatprep.subr.bf16.mxu0 0
    %3920 = vmatpush1.bf16.msra.mxu0 0
    %3921 = vmatprep.subr.bf16.mxu0 0
    %3922 = vmatpush1.bf16.msra.mxu0 0
    %3923 = vmatprep.subr.bf16.mxu0 0
    %3924 = vmatpush1.bf16.msra.mxu0 0
    %3925 = vmatprep.subr.bf16.mxu0 0
    %3926 = vmatpush1.bf16.msra.mxu0 0
    %3927 = vmatprep.subr.bf16.mxu0 0
    %3928 = vmatpush1.bf16.msra.mxu0 0
    %3929 = vmatprep.mubr.bf16.mxu0 0
    %3930 = vmatmul.mubr.bf16.gmra.mrb[0].mxu0 %v3891
    %v3931 = vpop.f32.mrb[0].mxu0
    %v3932 = vadd.f32 0.0, %v3931
    %v3933 = vpop.f32.mrb[0].mxu0
    %v3934 = vpop.f32.mrb[0].mxu0
    %v3935 = vadd.f32 0.0, %v3934
    %v3936 = vpop.f32.mrb[0].mxu0
    %3937 = vdwg.mxu0
    %v3954 = vunpack.c.l.b16 %v3683
    %v3955 = vunpack.c.l.b16 %v3684
    %v3956 = vunpack.c.l.b16 %v3685
    %v3957 = vunpack.c.l.b16 %v3686
    %v3958 = vunpack.c.l.b16 %v3687
    %v3959 = vunpack.c.l.b16 %v3688
    %v3960 = vunpack.c.l.b16 %v3689
    %v3961 = vunpack.c.l.b16 %v3690
    %v3962 = vunpack.c.l.b16 %v3691
    %v3963 = vunpack.c.l.b16 %v3692
    %v3964 = vunpack.c.l.b16 %v3693
    %v3965 = vunpack.c.l.b16 %v3694
    %v3966 = vunpack.c.l.b16 %v3695
    %v3967 = vunpack.c.l.b16 %v3696
    %v3968 = vunpack.c.l.b16 %v3697
    %v3969 = vunpack.c.l.b16 %v3698
    %3970 = vset.pattern.permute.xlu0 0
    %3971 = vperm.xlu0 %3970, %v3954
    %v3972 = vpop.permute.xlu0 %3971
    %3973 = vset.pattern.permute.xlu0 0
    %3974 = vperm.xlu0 %3973, %v3955
    %v3975 = vpop.permute.xlu0 %3974
    %3976 = vset.pattern.permute.xlu0 0
    %3977 = vperm.xlu0 %3976, %v3956
    %v3978 = vpop.permute.xlu0 %3977
    %3979 = vset.pattern.permute.xlu0 0
    %3980 = vperm.xlu0 %3979, %v3957
    %v3981 = vpop.permute.xlu0 %3980
    %3982 = vset.pattern.permute.xlu0 0
    %3983 = vperm.xlu0 %3982, %v3958
    %v3984 = vpop.permute.xlu0 %3983
    %3985 = vset.pattern.permute.xlu0 0
    %3986 = vperm.xlu0 %3985, %v3959
    %v3987 = vpop.permute.xlu0 %3986
    %3988 = vset.pattern.permute.xlu0 0
    %3989 = vperm.xlu0 %3988, %v3960
    %v3990 = vpop.permute.xlu0 %3989
    %3991 = vset.pattern.permute.xlu0 0
    %3992 = vperm.xlu0 %3991, %v3961
    %v3993 = vpop.permute.xlu0 %3992
    %3994 = vset.pattern.permute.xlu0 0
    %3995 = vperm.xlu0 %3994, %v3962
    %v3996 = vpop.permute.xlu0 %3995
    %3997 = vset.pattern.permute.xlu0 0
    %3998 = vperm.xlu0 %3997, %v3963
    %v3999 = vpop.permute.xlu0 %3998
    %4000 = vset.pattern.permute.xlu0 0
    %4001 = vperm.xlu0 %4000, %v3964
    %v4002 = vpop.permute.xlu0 %4001
    %4003 = vset.pattern.permute.xlu0 0
    %4004 = vperm.xlu0 %4003, %v3965
    %v4005 = vpop.permute.xlu0 %4004
    %4006 = vset.pattern.permute.xlu0 0
    %4007 = vperm.xlu0 %4006, %v3966
    %v4008 = vpop.permute.xlu0 %4007
    %4009 = vset.pattern.permute.xlu0 0
    %4010 = vperm.xlu0 %4009, %v3967
    %v4011 = vpop.permute.xlu0 %4010
    %4012 = vset.pattern.permute.xlu0 0
    %4013 = vperm.xlu0 %4012, %v3968
    %v4014 = vpop.permute.xlu0 %4013
    %4015 = vset.pattern.permute.xlu0 0
    %4016 = vperm.xlu0 %4015, %v3969
    %v4017 = vpop.permute.xlu0 %4016
    %v4018 = vlaneseq
    %v4019 = vshrl.u32 %v4018, 7
    %v4020 = vsub.s32 %v1794, %v4019
    %v4021 = vrot.slane %v3972, %v4020
    %v4022 = vlaneseq
    %v4023 = vshrl.u32 %v4022, 7
    %v4024 = vsub.s32 %v1794, %v4023
    %v4025 = vrot.slane %v3975, %v4024
    %v4026 = vlaneseq
    %v4027 = vshrl.u32 %v4026, 7
    %v4028 = vsub.s32 %v1794, %v4027
    %v4029 = vrot.slane %v3978, %v4028
    %v4030 = vlaneseq
    %v4031 = vshrl.u32 %v4030, 7
    %v4032 = vsub.s32 %v1794, %v4031
    %v4033 = vrot.slane %v3981, %v4032
    %v4034 = vlaneseq
    %v4035 = vshrl.u32 %v4034, 7
    %v4036 = vsub.s32 %v1794, %v4035
    %v4037 = vrot.slane %v3984, %v4036
    %v4038 = vlaneseq
    %v4039 = vshrl.u32 %v4038, 7
    %v4040 = vsub.s32 %v1794, %v4039
    %v4041 = vrot.slane %v3987, %v4040
    %v4042 = vlaneseq
    %v4043 = vshrl.u32 %v4042, 7
    %v4044 = vsub.s32 %v1794, %v4043
    %v4045 = vrot.slane %v3990, %v4044
    %v4046 = vlaneseq
    %v4047 = vshrl.u32 %v4046, 7
    %v4048 = vsub.s32 %v1794, %v4047
    %v4049 = vrot.slane %v3993, %v4048
    %v4050 = vlaneseq
    %v4051 = vshrl.u32 %v4050, 7
    %v4052 = vsub.s32 %v1794, %v4051
    %v4053 = vrot.slane %v3996, %v4052
    %v4054 = vlaneseq
    %v4055 = vshrl.u32 %v4054, 7
    %v4056 = vsub.s32 %v1794, %v4055
    %v4057 = vrot.slane %v3999, %v4056
    %v4058 = vlaneseq
    %v4059 = vshrl.u32 %v4058, 7
    %v4060 = vsub.s32 %v1794, %v4059
    %v4061 = vrot.slane %v4002, %v4060
    %v4062 = vlaneseq
    %v4063 = vshrl.u32 %v4062, 7
    %v4064 = vsub.s32 %v1794, %v4063
    %v4065 = vrot.slane %v4005, %v4064
    %v4066 = vlaneseq
    %v4067 = vshrl.u32 %v4066, 7
    %v4068 = vsub.s32 %v1794, %v4067
    %v4069 = vrot.slane %v4008, %v4068
    %v4070 = vlaneseq
    %v4071 = vshrl.u32 %v4070, 7
    %v4072 = vsub.s32 %v1794, %v4071
    %v4073 = vrot.slane %v4011, %v4072
    %v4074 = vlaneseq
    %v4075 = vshrl.u32 %v4074, 7
    %v4076 = vsub.s32 %v1794, %v4075
    %v4077 = vrot.slane %v4014, %v4076
    %v4078 = vlaneseq
    %v4079 = vshrl.u32 %v4078, 7
    %v4080 = vsub.s32 %v1794, %v4079
    %v4081 = vrot.slane %v4017, %v4080
    %v4082 = vsel %vm2051, %v4025, %v4021
    %v4083 = vsel %vm2053, %v4029, %v4082
    %v4084 = vsel %vm2055, %v4033, %v4083
    %v4085 = vsel %vm2057, %v4037, %v4084
    %v4086 = vsel %vm2059, %v4041, %v4085
    %v4087 = vsel %vm2061, %v4045, %v4086
    %v4088 = vsel %vm2063, %v4049, %v4087
    %v4089 = vsel %vm2051, %v4057, %v4053
    %v4090 = vsel %vm2053, %v4061, %v4089
    %v4091 = vsel %vm2055, %v4065, %v4090
    %v4092 = vsel %vm2057, %v4069, %v4091
    %v4093 = vsel %vm2059, %v4073, %v4092
    %v4094 = vsel %vm2061, %v4077, %v4093
    %v4095 = vsel %vm2063, %v4081, %v4094
    %v4096 = vpack.c.b16 %v4095, %v4088
    %v4098 = vsel %vm2122, %v4096, 0
    %v4101 = vsel %vm3893, %v39, 0
    %4103 = vmatprep.subr.bf16.mxu0 0
    %4104 = vmatpush1.bf16.msra.mxu0 %v4101
    %4105 = vmatprep.subr.bf16.mxu0 0
    %4106 = vmatpush1.bf16.msra.mxu0 0
    %4107 = vmatprep.subr.bf16.mxu0 0
    %4108 = vmatpush1.bf16.msra.mxu0 0
    %4109 = vmatprep.subr.bf16.mxu0 0
    %4110 = vmatpush1.bf16.msra.mxu0 0
    %4111 = vmatprep.subr.bf16.mxu0 0
    %4112 = vmatpush1.bf16.msra.mxu0 0
    %4113 = vmatprep.subr.bf16.mxu0 0
    %4114 = vmatpush1.bf16.msra.mxu0 0
    %4115 = vmatprep.subr.bf16.mxu0 0
    %4116 = vmatpush1.bf16.msra.mxu0 0
    %4117 = vmatprep.subr.bf16.mxu0 0
    %4118 = vmatpush1.bf16.msra.mxu0 0
    %4119 = vmatprep.subr.bf16.mxu0 0
    %4120 = vmatpush1.bf16.msra.mxu0 0
    %4121 = vmatprep.subr.bf16.mxu0 0
    %4122 = vmatpush1.bf16.msra.mxu0 0
    %4123 = vmatprep.subr.bf16.mxu0 0
    %4124 = vmatpush1.bf16.msra.mxu0 0
    %4125 = vmatprep.subr.bf16.mxu0 0
    %4126 = vmatpush1.bf16.msra.mxu0 0
    %4127 = vmatprep.subr.bf16.mxu0 0
    %4128 = vmatpush1.bf16.msra.mxu0 0
    %4129 = vmatprep.subr.bf16.mxu0 0
    %4130 = vmatpush1.bf16.msra.mxu0 0
    %4131 = vmatprep.subr.bf16.mxu0 0
    %4132 = vmatpush1.bf16.msra.mxu0 0
    %4133 = vmatprep.subr.bf16.mxu0 0
    %4134 = vmatpush1.bf16.msra.mxu0 0
    %4135 = vmatprep.mubr.bf16.mxu0 0
    %4136 = vmatmul.mubr.bf16.gmra.mrb[0].mxu0 %v4098
    %v4137 = vpop.f32.mrb[0].mxu0
    %v4138 = vadd.f32 0.0, %v4137
    %v4139 = vpop.f32.mrb[0].mxu0
    %v4140 = vpop.f32.mrb[0].mxu0
    %v4141 = vadd.f32 0.0, %v4140
    %v4142 = vpop.f32.mrb[0].mxu0
    %4143 = vdwg.mxu0
    %v4160 = vunpack.c.l.b16 %v3699
    %v4161 = vunpack.c.l.b16 %v3700
    %v4162 = vunpack.c.l.b16 %v3701
    %v4163 = vunpack.c.l.b16 %v3702
    %v4164 = vunpack.c.l.b16 %v3703
    %v4165 = vunpack.c.l.b16 %v3704
    %v4166 = vunpack.c.l.b16 %v3705
    %v4167 = vunpack.c.l.b16 %v3706
    %v4168 = vunpack.c.l.b16 %v3707
    %v4169 = vunpack.c.l.b16 %v3708
    %v4170 = vunpack.c.l.b16 %v3709
    %v4171 = vunpack.c.l.b16 %v3710
    %v4172 = vunpack.c.l.b16 %v3711
    %v4173 = vunpack.c.l.b16 %v3712
    %v4174 = vunpack.c.l.b16 %v3713
    %v4175 = vunpack.c.l.b16 %v3714
    %4176 = vset.pattern.permute.xlu0 0
    %4177 = vperm.xlu0 %4176, %v4160
    %v4178 = vpop.permute.xlu0 %4177
    %4179 = vset.pattern.permute.xlu0 0
    %4180 = vperm.xlu0 %4179, %v4161
    %v4181 = vpop.permute.xlu0 %4180
    %4182 = vset.pattern.permute.xlu0 0
    %4183 = vperm.xlu0 %4182, %v4162
    %v4184 = vpop.permute.xlu0 %4183
    %4185 = vset.pattern.permute.xlu0 0
    %4186 = vperm.xlu0 %4185, %v4163
    %v4187 = vpop.permute.xlu0 %4186
    %4188 = vset.pattern.permute.xlu0 0
    %4189 = vperm.xlu0 %4188, %v4164
    %v4190 = vpop.permute.xlu0 %4189
    %4191 = vset.pattern.permute.xlu0 0
    %4192 = vperm.xlu0 %4191, %v4165
    %v4193 = vpop.permute.xlu0 %4192
    %4194 = vset.pattern.permute.xlu0 0
    %4195 = vperm.xlu0 %4194, %v4166
    %v4196 = vpop.permute.xlu0 %4195
    %4197 = vset.pattern.permute.xlu0 0
    %4198 = vperm.xlu0 %4197, %v4167
    %v4199 = vpop.permute.xlu0 %4198
    %4200 = vset.pattern.permute.xlu0 0
    %4201 = vperm.xlu0 %4200, %v4168
    %v4202 = vpop.permute.xlu0 %4201
    %4203 = vset.pattern.permute.xlu0 0
    %4204 = vperm.xlu0 %4203, %v4169
    %v4205 = vpop.permute.xlu0 %4204
    %4206 = vset.pattern.permute.xlu0 0
    %4207 = vperm.xlu0 %4206, %v4170
    %v4208 = vpop.permute.xlu0 %4207
    %4209 = vset.pattern.permute.xlu0 0
    %4210 = vperm.xlu0 %4209, %v4171
    %v4211 = vpop.permute.xlu0 %4210
    %4212 = vset.pattern.permute.xlu0 0
    %4213 = vperm.xlu0 %4212, %v4172
    %v4214 = vpop.permute.xlu0 %4213
    %4215 = vset.pattern.permute.xlu0 0
    %4216 = vperm.xlu0 %4215, %v4173
    %v4217 = vpop.permute.xlu0 %4216
    %4218 = vset.pattern.permute.xlu0 0
    %4219 = vperm.xlu0 %4218, %v4174
    %v4220 = vpop.permute.xlu0 %4219
    %4221 = vset.pattern.permute.xlu0 0
    %4222 = vperm.xlu0 %4221, %v4175
    %v4223 = vpop.permute.xlu0 %4222
    %v4224 = vlaneseq
    %v4225 = vshrl.u32 %v4224, 7
    %v4226 = vsub.s32 %v1794, %v4225
    %v4227 = vrot.slane %v4178, %v4226
    %v4228 = vlaneseq
    %v4229 = vshrl.u32 %v4228, 7
    %v4230 = vsub.s32 %v1794, %v4229
    %v4231 = vrot.slane %v4181, %v4230
    %v4232 = vlaneseq
    %v4233 = vshrl.u32 %v4232, 7
    %v4234 = vsub.s32 %v1794, %v4233
    %v4235 = vrot.slane %v4184, %v4234
    %v4236 = vlaneseq
    %v4237 = vshrl.u32 %v4236, 7
    %v4238 = vsub.s32 %v1794, %v4237
    %v4239 = vrot.slane %v4187, %v4238
    %v4240 = vlaneseq
    %v4241 = vshrl.u32 %v4240, 7
    %v4242 = vsub.s32 %v1794, %v4241
    %v4243 = vrot.slane %v4190, %v4242
    %v4244 = vlaneseq
    %v4245 = vshrl.u32 %v4244, 7
    %v4246 = vsub.s32 %v1794, %v4245
    %v4247 = vrot.slane %v4193, %v4246
    %v4248 = vlaneseq
    %v4249 = vshrl.u32 %v4248, 7
    %v4250 = vsub.s32 %v1794, %v4249
    %v4251 = vrot.slane %v4196, %v4250
    %v4252 = vlaneseq
    %v4253 = vshrl.u32 %v4252, 7
    %v4254 = vsub.s32 %v1794, %v4253
    %v4255 = vrot.slane %v4199, %v4254
    %v4256 = vlaneseq
    %v4257 = vshrl.u32 %v4256, 7
    %v4258 = vsub.s32 %v1794, %v4257
    %v4259 = vrot.slane %v4202, %v4258
    %v4260 = vlaneseq
    %v4261 = vshrl.u32 %v4260, 7
    %v4262 = vsub.s32 %v1794, %v4261
    %v4263 = vrot.slane %v4205, %v4262
    %v4264 = vlaneseq
    %v4265 = vshrl.u32 %v4264, 7
    %v4266 = vsub.s32 %v1794, %v4265
    %v4267 = vrot.slane %v4208, %v4266
    %v4268 = vlaneseq
    %v4269 = vshrl.u32 %v4268, 7
    %v4270 = vsub.s32 %v1794, %v4269
    %v4271 = vrot.slane %v4211, %v4270
    %v4272 = vlaneseq
    %v4273 = vshrl.u32 %v4272, 7
    %v4274 = vsub.s32 %v1794, %v4273
    %v4275 = vrot.slane %v4214, %v4274
    %v4276 = vlaneseq
    %v4277 = vshrl.u32 %v4276, 7
    %v4278 = vsub.s32 %v1794, %v4277
    %v4279 = vrot.slane %v4217, %v4278
    %v4280 = vlaneseq
    %v4281 = vshrl.u32 %v4280, 7
    %v4282 = vsub.s32 %v1794, %v4281
    %v4283 = vrot.slane %v4220, %v4282
    %v4284 = vlaneseq
    %v4285 = vshrl.u32 %v4284, 7
    %v4286 = vsub.s32 %v1794, %v4285
    %v4287 = vrot.slane %v4223, %v4286
    %v4288 = vsel %vm2051, %v4231, %v4227
    %v4289 = vsel %vm2053, %v4235, %v4288
    %v4290 = vsel %vm2055, %v4239, %v4289
    %v4291 = vsel %vm2057, %v4243, %v4290
    %v4292 = vsel %vm2059, %v4247, %v4291
    %v4293 = vsel %vm2061, %v4251, %v4292
    %v4294 = vsel %vm2063, %v4255, %v4293
    %v4295 = vsel %vm2051, %v4263, %v4259
    %v4296 = vsel %vm2053, %v4267, %v4295
    %v4297 = vsel %vm2055, %v4271, %v4296
    %v4298 = vsel %vm2057, %v4275, %v4297
    %v4299 = vsel %vm2059, %v4279, %v4298
    %v4300 = vsel %vm2061, %v4283, %v4299
    %v4301 = vsel %vm2063, %v4287, %v4300
    %v4302 = vpack.c.b16 %v4301, %v4294
    %v4304 = vsel %vm2122, %v4302, 0
    %v4307 = vsel %vm3893, %v40, 0
    %4309 = vmatprep.subr.bf16.mxu0 0
    %4310 = vmatpush1.bf16.msra.mxu0 %v4307
    %4311 = vmatprep.subr.bf16.mxu0 0
    %4312 = vmatpush1.bf16.msra.mxu0 0
    %4313 = vmatprep.subr.bf16.mxu0 0
    %4314 = vmatpush1.bf16.msra.mxu0 0
    %4315 = vmatprep.subr.bf16.mxu0 0
    %4316 = vmatpush1.bf16.msra.mxu0 0
    %4317 = vmatprep.subr.bf16.mxu0 0
    %4318 = vmatpush1.bf16.msra.mxu0 0
    %4319 = vmatprep.subr.bf16.mxu0 0
    %4320 = vmatpush1.bf16.msra.mxu0 0
    %4321 = vmatprep.subr.bf16.mxu0 0
    %4322 = vmatpush1.bf16.msra.mxu0 0
    %4323 = vmatprep.subr.bf16.mxu0 0
    %4324 = vmatpush1.bf16.msra.mxu0 0
    %4325 = vmatprep.subr.bf16.mxu0 0
    %4326 = vmatpush1.bf16.msra.mxu0 0
    %4327 = vmatprep.subr.bf16.mxu0 0
    %4328 = vmatpush1.bf16.msra.mxu0 0
    %4329 = vmatprep.subr.bf16.mxu0 0
    %4330 = vmatpush1.bf16.msra.mxu0 0
    %4331 = vmatprep.subr.bf16.mxu0 0
    %4332 = vmatpush1.bf16.msra.mxu0 0
    %4333 = vmatprep.subr.bf16.mxu0 0
    %4334 = vmatpush1.bf16.msra.mxu0 0
    %4335 = vmatprep.subr.bf16.mxu0 0
    %4336 = vmatpush1.bf16.msra.mxu0 0
    %4337 = vmatprep.subr.bf16.mxu0 0
    %4338 = vmatpush1.bf16.msra.mxu0 0
    %4339 = vmatprep.subr.bf16.mxu0 0
    %4340 = vmatpush1.bf16.msra.mxu0 0
    %4341 = vmatprep.mubr.bf16.mxu0 0
    %4342 = vmatmul.mubr.bf16.gmra.mrb[0].mxu0 %v4304
    %v4343 = vpop.f32.mrb[0].mxu0
    %v4344 = vadd.f32 0.0, %v4343
    %v4345 = vpop.f32.mrb[0].mxu0
    %v4346 = vpop.f32.mrb[0].mxu0
    %v4347 = vadd.f32 0.0, %v4346
    %v4348 = vpop.f32.mrb[0].mxu0
    %4349 = vdwg.mxu0
    %v4366 = vunpack.c.l.b16 %v3715
    %v4367 = vunpack.c.l.b16 %v3716
    %v4368 = vunpack.c.l.b16 %v3717
    %v4369 = vunpack.c.l.b16 %v3718
    %v4370 = vunpack.c.l.b16 %v3719
    %v4371 = vunpack.c.l.b16 %v3720
    %v4372 = vunpack.c.l.b16 %v3721
    %v4373 = vunpack.c.l.b16 %v3722
    %v4374 = vunpack.c.l.b16 %v3723
    %v4375 = vunpack.c.l.b16 %v3724
    %v4376 = vunpack.c.l.b16 %v3725
    %v4377 = vunpack.c.l.b16 %v3726
    %v4378 = vunpack.c.l.b16 %v3727
    %v4379 = vunpack.c.l.b16 %v3728
    %v4380 = vunpack.c.l.b16 %v3729
    %v4381 = vunpack.c.l.b16 %v3730
    %4382 = vset.pattern.permute.xlu0 0
    %4383 = vperm.xlu0 %4382, %v4366
    %v4384 = vpop.permute.xlu0 %4383
    %4385 = vset.pattern.permute.xlu0 0
    %4386 = vperm.xlu0 %4385, %v4367
    %v4387 = vpop.permute.xlu0 %4386
    %4388 = vset.pattern.permute.xlu0 0
    %4389 = vperm.xlu0 %4388, %v4368
    %v4390 = vpop.permute.xlu0 %4389
    %4391 = vset.pattern.permute.xlu0 0
    %4392 = vperm.xlu0 %4391, %v4369
    %v4393 = vpop.permute.xlu0 %4392
    %4394 = vset.pattern.permute.xlu0 0
    %4395 = vperm.xlu0 %4394, %v4370
    %v4396 = vpop.permute.xlu0 %4395
    %4397 = vset.pattern.permute.xlu0 0
    %4398 = vperm.xlu0 %4397, %v4371
    %v4399 = vpop.permute.xlu0 %4398
    %4400 = vset.pattern.permute.xlu0 0
    %4401 = vperm.xlu0 %4400, %v4372
    %v4402 = vpop.permute.xlu0 %4401
    %4403 = vset.pattern.permute.xlu0 0
    %4404 = vperm.xlu0 %4403, %v4373
    %v4405 = vpop.permute.xlu0 %4404
    %4406 = vset.pattern.permute.xlu0 0
    %4407 = vperm.xlu0 %4406, %v4374
    %v4408 = vpop.permute.xlu0 %4407
    %4409 = vset.pattern.permute.xlu0 0
    %4410 = vperm.xlu0 %4409, %v4375
    %v4411 = vpop.permute.xlu0 %4410
    %4412 = vset.pattern.permute.xlu0 0
    %4413 = vperm.xlu0 %4412, %v4376
    %v4414 = vpop.permute.xlu0 %4413
    %4415 = vset.pattern.permute.xlu0 0
    %4416 = vperm.xlu0 %4415, %v4377
    %v4417 = vpop.permute.xlu0 %4416
    %4418 = vset.pattern.permute.xlu0 0
    %4419 = vperm.xlu0 %4418, %v4378
    %v4420 = vpop.permute.xlu0 %4419
    %4421 = vset.pattern.permute.xlu0 0
    %4422 = vperm.xlu0 %4421, %v4379
    %v4423 = vpop.permute.xlu0 %4422
    %4424 = vset.pattern.permute.xlu0 0
    %4425 = vperm.xlu0 %4424, %v4380
    %v4426 = vpop.permute.xlu0 %4425
    %4427 = vset.pattern.permute.xlu0 0
    %4428 = vperm.xlu0 %4427, %v4381
    %v4429 = vpop.permute.xlu0 %4428
    %v4430 = vlaneseq
    %v4431 = vshrl.u32 %v4430, 7
    %v4432 = vsub.s32 %v1794, %v4431
    %v4433 = vrot.slane %v4384, %v4432
    %v4434 = vlaneseq
    %v4435 = vshrl.u32 %v4434, 7
    %v4436 = vsub.s32 %v1794, %v4435
    %v4437 = vrot.slane %v4387, %v4436
    %v4438 = vlaneseq
    %v4439 = vshrl.u32 %v4438, 7
    %v4440 = vsub.s32 %v1794, %v4439
    %v4441 = vrot.slane %v4390, %v4440
    %v4442 = vlaneseq
    %v4443 = vshrl.u32 %v4442, 7
    %v4444 = vsub.s32 %v1794, %v4443
    %v4445 = vrot.slane %v4393, %v4444
    %v4446 = vlaneseq
    %v4447 = vshrl.u32 %v4446, 7
    %v4448 = vsub.s32 %v1794, %v4447
    %v4449 = vrot.slane %v4396, %v4448
    %v4450 = vlaneseq
    %v4451 = vshrl.u32 %v4450, 7
    %v4452 = vsub.s32 %v1794, %v4451
    %v4453 = vrot.slane %v4399, %v4452
    %v4454 = vlaneseq
    %v4455 = vshrl.u32 %v4454, 7
    %v4456 = vsub.s32 %v1794, %v4455
    %v4457 = vrot.slane %v4402, %v4456
    %v4458 = vlaneseq
    %v4459 = vshrl.u32 %v4458, 7
    %v4460 = vsub.s32 %v1794, %v4459
    %v4461 = vrot.slane %v4405, %v4460
    %v4462 = vlaneseq
    %v4463 = vshrl.u32 %v4462, 7
    %v4464 = vsub.s32 %v1794, %v4463
    %v4465 = vrot.slane %v4408, %v4464
    %v4466 = vlaneseq
    %v4467 = vshrl.u32 %v4466, 7
    %v4468 = vsub.s32 %v1794, %v4467
    %v4469 = vrot.slane %v4411, %v4468
    %v4470 = vlaneseq
    %v4471 = vshrl.u32 %v4470, 7
    %v4472 = vsub.s32 %v1794, %v4471
    %v4473 = vrot.slane %v4414, %v4472
    %v4474 = vlaneseq
    %v4475 = vshrl.u32 %v4474, 7
    %v4476 = vsub.s32 %v1794, %v4475
    %v4477 = vrot.slane %v4417, %v4476
    %v4478 = vlaneseq
    %v4479 = vshrl.u32 %v4478, 7
    %v4480 = vsub.s32 %v1794, %v4479
    %v4481 = vrot.slane %v4420, %v4480
    %v4482 = vlaneseq
    %v4483 = vshrl.u32 %v4482, 7
    %v4484 = vsub.s32 %v1794, %v4483
    %v4485 = vrot.slane %v4423, %v4484
    %v4486 = vlaneseq
    %v4487 = vshrl.u32 %v4486, 7
    %v4488 = vsub.s32 %v1794, %v4487
    %v4489 = vrot.slane %v4426, %v4488
    %v4490 = vlaneseq
    %v4491 = vshrl.u32 %v4490, 7
    %v4492 = vsub.s32 %v1794, %v4491
    %v4493 = vrot.slane %v4429, %v4492
    %v4494 = vsel %vm2051, %v4437, %v4433
    %v4495 = vsel %vm2053, %v4441, %v4494
    %v4496 = vsel %vm2055, %v4445, %v4495
    %v4497 = vsel %vm2057, %v4449, %v4496
    %v4498 = vsel %vm2059, %v4453, %v4497
    %v4499 = vsel %vm2061, %v4457, %v4498
    %v4500 = vsel %vm2063, %v4461, %v4499
    %v4501 = vsel %vm2051, %v4469, %v4465
    %v4502 = vsel %vm2053, %v4473, %v4501
    %v4503 = vsel %vm2055, %v4477, %v4502
    %v4504 = vsel %vm2057, %v4481, %v4503
    %v4505 = vsel %vm2059, %v4485, %v4504
    %v4506 = vsel %vm2061, %v4489, %v4505
    %v4507 = vsel %vm2063, %v4493, %v4506
    %v4508 = vpack.c.b16 %v4507, %v4500
    %v4510 = vsel %vm2122, %v4508, 0
    %v4513 = vsel %vm3893, %v41, 0
    %4515 = vmatprep.subr.bf16.mxu0 0
    %4516 = vmatpush1.bf16.msra.mxu0 %v4513
    %4517 = vmatprep.subr.bf16.mxu0 0
    %4518 = vmatpush1.bf16.msra.mxu0 0
    %4519 = vmatprep.subr.bf16.mxu0 0
    %4520 = vmatpush1.bf16.msra.mxu0 0
    %4521 = vmatprep.subr.bf16.mxu0 0
    %4522 = vmatpush1.bf16.msra.mxu0 0
    %4523 = vmatprep.subr.bf16.mxu0 0
    %4524 = vmatpush1.bf16.msra.mxu0 0
    %4525 = vmatprep.subr.bf16.mxu0 0
    %4526 = vmatpush1.bf16.msra.mxu0 0
    %4527 = vmatprep.subr.bf16.mxu0 0
    %4528 = vmatpush1.bf16.msra.mxu0 0
    %4529 = vmatprep.subr.bf16.mxu0 0
    %4530 = vmatpush1.bf16.msra.mxu0 0
    %4531 = vmatprep.subr.bf16.mxu0 0
    %4532 = vmatpush1.bf16.msra.mxu0 0
    %4533 = vmatprep.subr.bf16.mxu0 0
    %4534 = vmatpush1.bf16.msra.mxu0 0
    %4535 = vmatprep.subr.bf16.mxu0 0
    %4536 = vmatpush1.bf16.msra.mxu0 0
    %4537 = vmatprep.subr.bf16.mxu0 0
    %4538 = vmatpush1.bf16.msra.mxu0 0
    %4539 = vmatprep.subr.bf16.mxu0 0
    %4540 = vmatpush1.bf16.msra.mxu0 0
    %4541 = vmatprep.subr.bf16.mxu0 0
    %4542 = vmatpush1.bf16.msra.mxu0 0
    %4543 = vmatprep.subr.bf16.mxu0 0
    %4544 = vmatpush1.bf16.msra.mxu0 0
    %4545 = vmatprep.subr.bf16.mxu0 0
    %4546 = vmatpush1.bf16.msra.mxu0 0
    %4547 = vmatprep.mubr.bf16.mxu0 0
    %4548 = vmatmul.mubr.bf16.gmra.mrb[0].mxu0 %v4510
    %v4549 = vpop.f32.mrb[0].mxu0
    %v4550 = vadd.f32 0.0, %v4549
    %v4551 = vpop.f32.mrb[0].mxu0
    %v4552 = vpop.f32.mrb[0].mxu0
    %v4553 = vadd.f32 0.0, %v4552
    %v4554 = vpop.f32.mrb[0].mxu0
    %4555 = vdwg.mxu0
    %4556 = vst [vmem:[#allocation2] sm:$0xff] %v3932
    %4557 = vst [vmem:[#allocation2 + $0x8] sm:$0xff] %v3935
    %4558 = vst [vmem:[#allocation2 + $0x10] sm:$0xff] %v4138
    %4559 = vst [vmem:[#allocation2 + $0x18] sm:$0xff] %v4141
    %4560 = vst [vmem:[#allocation2 + $0x20] sm:$0xff] %v4344
    %4561 = vst [vmem:[#allocation2 + $0x28] sm:$0xff] %v4347
    %4562 = vst [vmem:[#allocation2 + $0x30] sm:$0xff] %v4550
    %4563 = vst [vmem:[#allocation2 + $0x38] sm:$0xff] %v4553
    // Predicated region
    $region22: #{_attention_forward_impl.1} parent=1 // pred_check
      _
    $region23: #{_attention_forward_impl.1} parent=1 // pred_check_branch
      %4565 = sbr.rel (0) target = $region25
    $region24: #{_attention_forward_impl.1} parent=1 // pred_region
      %s4567 = ssub.s32 1024, 1024
      %4568 = vsyncadd [#allocation3], %s4567
      %s4569 = sshll.u32 [#allocation2], 4
      %s4570 = int_to_ptr.vmem [resolvable:$true] %s4569
      %4575 = dma.vmem_to_hbm [thread:$0]  %s4570, 1024, %s5, [#allocation3], 128, 128, 8
    $region25: #{_attention_forward_impl.1} parent=1 // pred_fallthru
      _
    // Predicated region
    $region26: #{_attention_forward_impl.1} parent=1 // pred_check
      _
    $region27: #{_attention_forward_impl.1} parent=1 // pred_check_branch
      %4577 = sbr.rel (0) target = $region29
    $region28: #{_attention_forward_impl.1} parent=1 // pred_region
      %4578 = dma.done [#allocation3], 1024
    $region29: #{_attention_forward_impl.1} parent=1 // pred_fallthru
      _
    %4579 = vsyncpa [#allocation3], 1

</llo_original>
